<compile_context>
chip_gen: v7x
topology: tpu7x:2x2x1
jax: 0.10.0
libtpu: 0.0.40
codegen_flags: <defaults>
</compile_context>

<pallas_src>
import functools

import jax
import jax.numpy as jnp
from jax.experimental import pallas as pl
from jax.experimental.pallas import tpu as pltpu

HIDDEN = 32
SLAB_LANES = 128          # packed-parameter slab width (one vreg lane span)

# --- packed parameter slab column layout (f32, shape (32, 128), ~16 KB) ---
_W2_OFF, _W3_OFF, _W4_OFF = 0, 32, 64      # (32,32) hidden weights
_W1_OFF = 96                               # (32,2) first-layer weight
_W5_OFF = 98                               # (32,1) last-layer weight (w5^T)
_B1_OFF, _B2_OFF, _B3_OFF, _B4_OFF = 99, 100, 101, 102   # (32,) biases
_B5_OFF = 103                              # scalar bias at row 0


def pack_params(params):
    """Pack torch-layout params [(W(out,in), b(out,))...] into one (32,128) slab."""
    (w1, b1), (w2, b2), (w3, b3), (w4, b4), (w5, b5) = params
    slab = jnp.zeros((HIDDEN, SLAB_LANES), jnp.float32)
    slab = slab.at[:, _W2_OFF:_W2_OFF + 32].set(w2)
    slab = slab.at[:, _W3_OFF:_W3_OFF + 32].set(w3)
    slab = slab.at[:, _W4_OFF:_W4_OFF + 32].set(w4)
    slab = slab.at[:, _W1_OFF:_W1_OFF + 2].set(w1)
    slab = slab.at[:, _W5_OFF].set(w5[0, :])        # (1,32) -> column
    slab = slab.at[:, _B1_OFF].set(b1)
    slab = slab.at[:, _B2_OFF].set(b2)
    slab = slab.at[:, _B3_OFF].set(b3)
    slab = slab.at[:, _B4_OFF].set(b4)
    slab = slab.at[0, _B5_OFF].set(b5[0])
    return slab


def mlp_kernel(x_ref, p_ref, o_ref):
    """One batch tile, batch-on-lanes layout.

    x_ref : (2, TM)    one collocation point per lane column
    p_ref : (32, 128)  packed parameter slab (single DMA, constant block)
    o_ref : (1, TM)    lane-dense output store
    """
    x = x_ref[...]                                   # (2, TM) f32
    p = p_ref[...]                                   # (32, 128) f32

    # Layer 1: K=2 contraction -> two VPU broadcast FMAs (no MXU K-padding).
    w1 = p[:, _W1_OFF:_W1_OFF + 2]                   # (32, 2)
    b1 = p[:, _B1_OFF:_B1_OFF + 1]                   # (32, 1)
    h = w1[:, 0:1] * x[0:1, :] + w1[:, 1:2] * x[1:2, :] + b1
    h = jnp.tanh(h)                                  # (32, TM)

    # Hidden layers 2-4: (32,32) @ (32,TM) on the MXU, f32 accumulation.
    for w_off, b_off in ((_W2_OFF, _B2_OFF),
                         (_W3_OFF, _B3_OFF),
                         (_W4_OFF, _B4_OFF)):
        w = p[:, w_off:w_off + 32]                   # (32, 32)
        b = p[:, b_off:b_off + 1]                    # (32, 1)
        h = jnp.tanh(jnp.dot(w, h, preferred_element_type=jnp.float32) + b)

    # Final Linear(32,1): broadcast-multiply + sublane reduction (VPU/XLU),
    # avoids a 1-useful-row MXU pass.
    w5 = p[:, _W5_OFF:_W5_OFF + 1]                   # (32, 1)
    b5 = p[0:1, _B5_OFF:_B5_OFF + 1]                 # (1, 1)
    y = jnp.sum(w5 * h, axis=0, keepdims=True) + b5  # (1, TM)
    o_ref[...] = y.astype(o_ref.dtype)


def mlp_forward_lane_major(x_lane, packed, *, tm=2048):
    """Primary (zero-plumbing) API.

    x_lane : (2, N_pad) f32, N_pad a multiple of `tm` (tm a multiple of 128).
    packed : (32, 128)  slab from pack_params.
    returns: (1, N_pad) f32, lane-major (padded tail columns are garbage).

    tm=2048 -> even tile counts for typical PINN batches (both v7x TCs busy
    under "parallel"); on single-TC v5e/v6e larger tm just amortizes step
    overhead.  VMEM footprint is <1 MiB regardless of generation.
    """
    two, n_pad = x_lane.shape
    assert two == 2
    assert tm % 128 == 0, "tile must be a multiple of 128 (lane width)"
    assert n_pad % tm == 0, "pad the batch to a multiple of the tile"
    n_tiles = n_pad // tm

    return pl.pallas_call(
        mlp_kernel,
        out_shape=jax.ShapeDtypeStruct((1, n_pad), x_lane.dtype),
        grid_spec=pltpu.PrefetchScalarGridSpec(
            num_scalar_prefetch=0,
            grid=(n_tiles,),
            in_specs=[
                pl.BlockSpec((2, tm), lambda i: (0, i)),              # x tile
                pl.BlockSpec((HIDDEN, SLAB_LANES), lambda i: (0, 0)),  # slab
            ],
            out_specs=pl.BlockSpec((1, tm), lambda i: (0, i)),
        ),
        compiler_params=pltpu.CompilerParams(
            dimension_semantics=("parallel",)),
    )(x_lane, packed)


@functools.partial(jax.jit, static_argnames=("tm",))
def mlp_forward(x, packed, *, tm=2048):
    """PyTorch-interface compatibility wrapper: (N, 2) -> (N, 1).

    Jitted so the pad/transpose and the final slice compile into the same XLA
    program as the kernel call.  Latency-critical callers should keep data in
    (2, N) lane-major form and use mlp_forward_lane_major directly.
    """
    N, in_dim = x.shape
    assert in_dim == 2
    n_pad = pl.cdiv(N, tm) * tm
    x_lane = jnp.zeros((2, n_pad), x.dtype).at[:, :N].set(x.T)
    out = mlp_forward_lane_major(x_lane, packed, tm=tm)
    return out[0, :N].reshape(N, 1)


def init_params(key):
    """torch.nn.Linear default init (U[-1/sqrt(fan_in), 1/sqrt(fan_in)]).
    Weights in torch layout (out_features, in_features); biases (out,)."""
    dims = [(2, 32), (32, 32), (32, 32), (32, 32), (32, 1)]
    params = []
    for (fan_in, fan_out) in dims:
        key, kw, kb = jax.random.split(key, 3)
        bound = 1.0 / jnp.sqrt(float(fan_in))
        w = jax.random.uniform(kw, (fan_out, fan_in), jnp.float32, -bound, bound)
        b = jax.random.uniform(kb, (fan_out,), jnp.float32, -bound, bound)
        params.append((w, b))
    return params


def mlp_reference(x, params):
    h = x
    for i, (w, b) in enumerate(params):
        h = h @ w.T + b
        if i < len(params) - 1:
            h = jnp.tanh(h)
    return h


if __name__ == "__main__":
    key = jax.random.PRNGKey(0)
    key, kx = jax.random.split(key)

    # PINN-style input: N collocation points with (x, t) coordinates.
    # N is intentionally NOT a multiple of the tile to exercise the padding
    # path; with tm=2048 it gives exactly 2 grid steps (one per v7x core).
    N = 4000
    x = jax.random.uniform(kx, (N, 2), jnp.float32, -1.0, 1.0)

    params = init_params(key)
    packed = pack_params(params)          # one-time (32,128) parameter slab

    out = mlp_forward(x, packed, tm=2048)
    out = jax.block_until_ready(out)

    ref = mlp_reference(x, params)
    assert out.shape == (N, 1)
    assert jnp.allclose(out, ref, atol=1e-5, rtol=1e-5), "mismatch vs reference"

    print("KERNEL_OK")
</pallas_src>

<mosaic_0001>
module attributes {stable_mosaic.version = 11 : i64} {
  func.func @mlp_kernel(%arg0: i32, %arg1: memref<2x2048xf32, #tpu.memory_space<vmem>>, %arg2: memref<32x128xf32, #tpu.memory_space<vmem>>, %arg3: memref<1x2048xf32, #tpu.memory_space<vmem>>) attributes {dimension_semantics = [#tpu.dimension_semantics<parallel>], iteration_bounds = array<i64: 2>, scalar_prefetch = 0 : i64, scratch_operands = 0 : i64, tpu.core_type = #tpu.core_type<tc>, window_params = [{transform_indices = @transform_0, window_bounds = array<i64: 2, 2048>}, {pipeline_mode = #tpu.pipeline_mode<synchronous>, transform_indices = @transform_1, window_bounds = array<i64: 32, 128>}, {transform_indices = @transform_2, window_bounds = array<i64: 1, 2048>}]} {
    %c0 = arith.constant 0 : index
    %c0_0 = arith.constant 0 : index
    %0 = vector.load %arg1[%c0, %c0_0] : memref<2x2048xf32, #tpu.memory_space<vmem>>, vector<2x2048xf32>
    %c0_1 = arith.constant 0 : index
    %c0_2 = arith.constant 0 : index
    %1 = vector.load %arg2[%c0_1, %c0_2] : memref<32x128xf32, #tpu.memory_space<vmem>>, vector<32x128xf32>
    %2 = vector.extract_strided_slice %1 {offsets = [0, 96], sizes = [32, 2], strides = [1, 1]} : vector<32x128xf32> to vector<32x2xf32>
    %3 = vector.extract_strided_slice %1 {offsets = [0, 99], sizes = [32, 1], strides = [1, 1]} : vector<32x128xf32> to vector<32x1xf32>
    %4 = vector.extract_strided_slice %2 {offsets = [0, 0], sizes = [32, 1], strides = [1, 1]} : vector<32x2xf32> to vector<32x1xf32>
    %5 = vector.extract_strided_slice %0 {offsets = [0, 0], sizes = [1, 2048], strides = [1, 1]} : vector<2x2048xf32> to vector<1x2048xf32>
    %6 = vector.broadcast %4 : vector<32x1xf32> to vector<32x2048xf32>
    %7 = vector.broadcast %5 : vector<1x2048xf32> to vector<32x2048xf32>
    %8 = arith.mulf %6, %7 : vector<32x2048xf32>
    %9 = vector.extract_strided_slice %2 {offsets = [0, 1], sizes = [32, 1], strides = [1, 1]} : vector<32x2xf32> to vector<32x1xf32>
    %10 = vector.extract_strided_slice %0 {offsets = [1, 0], sizes = [1, 2048], strides = [1, 1]} : vector<2x2048xf32> to vector<1x2048xf32>
    %11 = vector.broadcast %9 : vector<32x1xf32> to vector<32x2048xf32>
    %12 = vector.broadcast %10 : vector<1x2048xf32> to vector<32x2048xf32>
    %13 = arith.mulf %11, %12 : vector<32x2048xf32>
    %14 = arith.addf %8, %13 : vector<32x2048xf32>
    %15 = vector.broadcast %3 : vector<32x1xf32> to vector<32x2048xf32>
    %16 = arith.addf %14, %15 : vector<32x2048xf32>
    %17 = math.tanh %16 : vector<32x2048xf32>
    %18 = vector.extract_strided_slice %1 {offsets = [0, 0], sizes = [32, 32], strides = [1, 1]} : vector<32x128xf32> to vector<32x32xf32>
    %19 = vector.extract_strided_slice %1 {offsets = [0, 100], sizes = [32, 1], strides = [1, 1]} : vector<32x128xf32> to vector<32x1xf32>
    %cst = arith.constant dense<0.000000e+00> : vector<32x2048xf32>
    %20 = tpu.matmul %18, %17, %cst {dimension_numbers = #tpu.dot_dimension_numbers<[1], [0], [0], [1], [0, 0, 1, 1], [], []>} : vector<32x32xf32>, vector<32x2048xf32>, vector<32x2048xf32> -> vector<32x2048xf32>
    %21 = vector.broadcast %19 : vector<32x1xf32> to vector<32x2048xf32>
    %22 = arith.addf %20, %21 : vector<32x2048xf32>
    %23 = math.tanh %22 : vector<32x2048xf32>
    %24 = vector.extract_strided_slice %1 {offsets = [0, 32], sizes = [32, 32], strides = [1, 1]} : vector<32x128xf32> to vector<32x32xf32>
    %25 = vector.extract_strided_slice %1 {offsets = [0, 101], sizes = [32, 1], strides = [1, 1]} : vector<32x128xf32> to vector<32x1xf32>
    %cst_3 = arith.constant dense<0.000000e+00> : vector<32x2048xf32>
    %26 = tpu.matmul %24, %23, %cst_3 {dimension_numbers = #tpu.dot_dimension_numbers<[1], [0], [0], [1], [0, 0, 1, 1], [], []>} : vector<32x32xf32>, vector<32x2048xf32>, vector<32x2048xf32> -> vector<32x2048xf32>
    %27 = vector.broadcast %25 : vector<32x1xf32> to vector<32x2048xf32>
    %28 = arith.addf %26, %27 : vector<32x2048xf32>
    %29 = math.tanh %28 : vector<32x2048xf32>
    %30 = vector.extract_strided_slice %1 {offsets = [0, 64], sizes = [32, 32], strides = [1, 1]} : vector<32x128xf32> to vector<32x32xf32>
    %31 = vector.extract_strided_slice %1 {offsets = [0, 102], sizes = [32, 1], strides = [1, 1]} : vector<32x128xf32> to vector<32x1xf32>
    %cst_4 = arith.constant dense<0.000000e+00> : vector<32x2048xf32>
    %32 = tpu.matmul %30, %29, %cst_4 {dimension_numbers = #tpu.dot_dimension_numbers<[1], [0], [0], [1], [0, 0, 1, 1], [], []>} : vector<32x32xf32>, vector<32x2048xf32>, vector<32x2048xf32> -> vector<32x2048xf32>
    %33 = vector.broadcast %31 : vector<32x1xf32> to vector<32x2048xf32>
    %34 = arith.addf %32, %33 : vector<32x2048xf32>
    %35 = math.tanh %34 : vector<32x2048xf32>
    %36 = vector.extract_strided_slice %1 {offsets = [0, 98], sizes = [32, 1], strides = [1, 1]} : vector<32x128xf32> to vector<32x1xf32>
    %37 = vector.extract_strided_slice %1 {offsets = [0, 103], sizes = [1, 1], strides = [1, 1]} : vector<32x128xf32> to vector<1x1xf32>
    %38 = vector.broadcast %36 : vector<32x1xf32> to vector<32x2048xf32>
    %39 = arith.mulf %38, %35 : vector<32x2048xf32>
    %cst_5 = arith.constant dense<0.000000e+00> : vector<2048xf32>
    %40 = vector.multi_reduction <add>, %39, %cst_5 [0] : vector<32x2048xf32> to vector<2048xf32>
    %41 = vector.shape_cast %40 : vector<2048xf32> to vector<1x2048xf32>
    %42 = vector.broadcast %37 : vector<1x1xf32> to vector<1x2048xf32>
    %43 = arith.addf %41, %42 : vector<1x2048xf32>
    %c0_6 = arith.constant 0 : index
    %c0_7 = arith.constant 0 : index
    %44 = vector.load %arg3[%c0_6, %c0_7] : memref<1x2048xf32, #tpu.memory_space<vmem>>, vector<1x2048xf32>
    tpu.vector_store %arg3[%c0_6, %c0_7], %43 {strides = array<i32>} : memref<1x2048xf32, #tpu.memory_space<vmem>>, vector<1x2048xf32>,
    return
  }
  func.func @transform_0(%arg0: i32) -> (i32, i32) {
    %c0_i32 = arith.constant 0 : i32
    %c0_i32_0 = arith.constant 0 : i32
    return %c0_i32, %arg0 : i32, i32
  }
  func.func @transform_1(%arg0: i32) -> (i32, i32) {
    %c0_i32 = arith.constant 0 : i32
    %c0_i32_0 = arith.constant 0 : i32
    %c0_i32_1 = arith.constant 0 : i32
    return %c0_i32, %c0_i32_0 : i32, i32
  }
  func.func @transform_2(%arg0: i32) -> (i32, i32) {
    %c0_i32 = arith.constant 0 : i32
    %c0_i32_0 = arith.constant 0 : i32
    return %c0_i32, %arg0 : i32, i32
  }
}

</mosaic_0001>

<llo_original>
// kernel: mlp_forward.1
$region0: #{mlp_forward.1}
  #allocation0 [shape = 'u32[]', space=smem, size = 0x4, offset = 0x4, fixed_abs, tag = 'smem constant byte address 0x4 - core index']
  #allocation1 [shape = 'u32[144,128]{1,0:T(1,128)}', space=vmem, size = 0x12000, scoped, tag = 'internal scratch']
  %s0 = inlined_call_operand.vmem [shape: f32[2,4096], index: 0, kind: input, shape index: {}]
  %s1 = inlined_call_operand.vmem [shape: f32[32,128], index: 1, kind: input, shape index: {}]
  %s2 = inlined_call_operand.vmem [shape: f32[1,4096], index: 2, kind: output, shape index: {}]
  %s3 = sld [smem:[#allocation0]]
  $region41: #{mlp_forward.1} parent=0
    _
  %s5 = ssub.s32 1, %s3
  %s6 = scalar_select 0, %s5, %s3
  loop: start=0, step=1, limit=4
  $region2: #{mlp_forward.1} parent=0 // loop_pre_header
    _
  $region3: #{mlp_forward.1} parent=0 // loop_header
    %s8 = sphi 0, %s12
    %p9 = scmp.ge.s32.totalorder %s8, 4
    %s18 = sphi 0, %s20
    %s21 = sphi 0, %s18
    %s22 = sphi 0, %s21
    %s38 = sphi 0, %s22
    %s42 = sphi 0, %s42
    %s44 = sphi 0, %s42
    %s45 = sphi 0, %s44
    %s59 = sphi 0, %s45
    %s65 = sphi 0, %s67
    %s68 = sphi 0, %s65
    %s69 = sphi 0, %s68
    %s85 = sphi 0, %s69
  $region4: #{mlp_forward.1} parent=0 // loop_header_branch
    %11 = sbr.rel (%p9) target = $region8
  $region5: #{mlp_forward.1} parent=0 // loop_body
    %s13 = ssub.s32 %s8, 1
    %s14 = ssub.s32 %s8, 2
    %s15 = sadd.s32 %s8, 1
    %s16 = ssub.s32 %s8, %s15
    %p17 = scmp.eq.s32.totalorder %s16, 0
    %s19 = sadd.s32 %s18, 1
    %s20 = scalar_select %p17, %s18, %s19
    %p23 = pneg %p17
    %p24 = scmp.eq.s32.totalorder %s8, 1
    %p25 = por %p23, %p24
    %p26 = scmp.ne.s32.totalorder %s18, %s21
    %p27 = scmp.eq.s32.totalorder %s8, 0
    %p28 = por %p26, %p27
    %p29 = scmp.ne.s32.totalorder %s18, %s21
    %p30 = scmp.eq.s32.totalorder %s13, 1
    %p31 = por %p29, %p30
    %p32 = scmp.ne.s32.totalorder %s21, %s22
    %p33 = scmp.eq.s32.totalorder %s13, 0
    %p34 = por %p32, %p33
    %p35 = scmp.ne.s32.totalorder %s21, %s22
    %p36 = scmp.eq.s32.totalorder %s14, 1
    %p37 = por %p35, %p36
    %p39 = scmp.ne.s32.totalorder %s22, %s38
    %p40 = scmp.eq.s32.totalorder %s14, 0
    %p41 = por %p39, %p40
    %s43 = sadd.s32 %s42, 1
    %p46 = scmp.eq.s32.totalorder %s8, 1
    %p47 = scmp.ne.s32.totalorder %s42, %s44
    %p48 = scmp.eq.s32.totalorder %s8, 0
    %p49 = por %p47, %p48
    %p50 = scmp.ne.s32.totalorder %s42, %s44
    %p51 = scmp.eq.s32.totalorder %s13, 1
    %p52 = por %p50, %p51
    %p53 = scmp.ne.s32.totalorder %s44, %s45
    %p54 = scmp.eq.s32.totalorder %s13, 0
    %p55 = por %p53, %p54
    %p56 = scmp.ne.s32.totalorder %s44, %s45
    %p57 = scmp.eq.s32.totalorder %s14, 1
    %p58 = por %p56, %p57
    %p60 = scmp.ne.s32.totalorder %s45, %s59
    %p61 = scmp.eq.s32.totalorder %s14, 0
    %p62 = por %p60, %p61
    %s63 = ssub.s32 %s8, %s15
    %p64 = scmp.eq.s32.totalorder %s63, 0
    %s66 = sadd.s32 %s65, 1
    %s67 = scalar_select %p64, %s65, %s66
    %p70 = pneg %p64
    %p71 = scmp.eq.s32.totalorder %s8, 1
    %p72 = por %p70, %p71
    %p73 = scmp.ne.s32.totalorder %s65, %s68
    %p74 = scmp.eq.s32.totalorder %s8, 0
    %p75 = por %p73, %p74
    %p76 = scmp.ne.s32.totalorder %s65, %s68
    %p77 = scmp.eq.s32.totalorder %s13, 1
    %p78 = por %p76, %p77
    %p79 = scmp.ne.s32.totalorder %s68, %s69
    %p80 = scmp.eq.s32.totalorder %s13, 0
    %p81 = por %p79, %p80
    %p82 = scmp.ne.s32.totalorder %s68, %s69
    %p83 = scmp.eq.s32.totalorder %s14, 1
    %p84 = por %p82, %p83
    %p86 = scmp.ne.s32.totalorder %s69, %s85
    %p87 = scmp.eq.s32.totalorder %s14, 0
    %p88 = por %p86, %p87
    %p89 = scmp.le.s32.totalorder 1, %s8
    %p90 = scmp.lt.s32.totalorder %s8, 3
    %p91 = pnand %p89, %p90
    %p92 = pneg %p91
    // Predicated region
    $region9: #{mlp_forward.1} parent=5 // pred_check
      _
    $region10: #{mlp_forward.1} parent=5 // pred_check_branch
      %94 = sbr.rel (%p91) target = $region12
    $region11: #{mlp_forward.1} parent=5 // pred_region
      %s95 = ssub.s32 %s8, 1
      // Predicated region
      $region13: #{mlp_forward.1} parent=11 // pred_check
        %p96 = pneg %p55
      $region14: #{mlp_forward.1} parent=11 // pred_check_branch
        %98 = sbr.rel (%p96) target = $region16
      $region15: #{mlp_forward.1} parent=11 // pred_region
        _
      $region16: #{mlp_forward.1} parent=11 // pred_fallthru
        _
    $region12: #{mlp_forward.1} parent=5 // pred_fallthru
      _
    %p99 = scmp.lt.s32.totalorder %s8, 2
    // Predicated region
    $region17: #{mlp_forward.1} parent=5 // pred_check
      %p100 = pneg %p99
    $region18: #{mlp_forward.1} parent=5 // pred_check_branch
      %102 = sbr.rel (%p100) target = $region20
    $region19: #{mlp_forward.1} parent=5 // pred_region
      // Predicated region
      $region21: #{mlp_forward.1} parent=19 // pred_check
        %p103 = pneg %p28
      $region22: #{mlp_forward.1} parent=19 // pred_check_branch
        %105 = sbr.rel (%p103) target = $region24
      $region23: #{mlp_forward.1} parent=19 // pred_region
        %s106 = smul.u32 16, %s8
        %p107 = scmp.lt.s32.totalorder %s106, 31
        %s108 = scalar_select %p107, %s106, 31
        %s109 = smul.addr %s108, 2
        %s110 = scalar_lea.vmem %s0, %s109
        %s111 = smul.u32 16, %s8
      $region24: #{mlp_forward.1} parent=19 // pred_fallthru
        _
    $region20: #{mlp_forward.1} parent=5 // pred_fallthru
      _
    %p112 = scmp.le.s32.totalorder 1, %s8
    %p113 = scmp.lt.s32.totalorder %s8, 3
    %p114 = pnand %p112, %p113
    %p115 = pneg %p114
    // Predicated region
    $region25: #{mlp_forward.1} parent=5 // pred_check
      _
    $region26: #{mlp_forward.1} parent=5 // pred_check_branch
      %117 = sbr.rel (%p114) target = $region28
    $region27: #{mlp_forward.1} parent=5 // pred_region
      %s118 = ssub.s32 %s8, 1
      %s119 = smul.u32 16, %s13
      %p120 = scmp.lt.s32.totalorder %s119, 31
      %s121 = scalar_select %p120, %s119, 31
      %s122 = smul.addr %s121, 2
      %s123 = scalar_lea.vmem %s0, %s122
      %p124 = pneg %p34
      %p125 = pneg %p31
      %p126 = pneg %p55
      %p127 = pneg %p52
      %p128 = pneg %p81
      %p129 = pneg %p78
      %s130 = smul.u32 16, %s13
      %p131 = scmp.lt.s32.totalorder %s130, 31
      %s132 = scalar_select %p131, %s130, 31
      %s133 = scalar_lea.vmem %s2, %s132
      %s134 = smul.u32 16, %s13
      %p135 = scmp.lt.s32.totalorder %s134, 31
      %s136 = scalar_select %p135, %s134, 31
      %s137 = smul.addr %s136, 2
      %s138 = scalar_lea.vmem %s0, %s137
      %s139 = smul.u32 16, %s13
      %s140 = smul.u32 16, %s13
      %p141 = scmp.lt.s32.totalorder %s140, 31
      %s142 = scalar_select %p141, %s140, 31
      %s143 = scalar_lea.vmem %s2, %s142
      %s144 = smul.u32 16, %s13
      %v145 = vld [vmem:[%s138] sm:$0xff]
      %v146 = vld [vmem:[%s138 + $0x8] sm:$0xff]
      %v147 = vld [vmem:[%s138 + $0x10] sm:$0xff]
      %v148 = vld [vmem:[%s138 + $0x18] sm:$0xff]
      %v149 = vld [vmem:[%s1] sm:$0xff]
      %v150 = vld [vmem:[%s1 + $0x8] sm:$0xff]
      %v151 = vld [vmem:[%s1 + $0x10] sm:$0xff]
      %v152 = vld [vmem:[%s1 + $0x18] sm:$0xff]
      %154 = vset.pattern.permute.xlu0 96
      %155 = vperm.xlu0 %154, %v149
      %v156 = vpop.permute.xlu0 %155
      %159 = vset.pattern.permute.xlu0 96
      %160 = vperm.xlu0 %159, %v150
      %v161 = vpop.permute.xlu0 %160
      %164 = vset.pattern.permute.xlu0 96
      %165 = vperm.xlu0 %164, %v151
      %v166 = vpop.permute.xlu0 %165
      %169 = vset.pattern.permute.xlu0 96
      %170 = vperm.xlu0 %169, %v152
      %v171 = vpop.permute.xlu0 %170
      %v177 = vlaneseq
      %v178 = vshrl.u32 %v177, 7
      %v179 = vsub.s32 0, %v178
      %v180 = vrot.slane %v145, %v179
      %v181 = vlaneseq
      %v182 = vshrl.u32 %v181, 7
      %v183 = vsub.s32 2, %v182
      %v184 = vrot.slane %v145, %v183
      %v185 = vlaneseq
      %v186 = vshrl.u32 %v185, 7
      %v187 = vsub.s32 4, %v186
      %v188 = vrot.slane %v145, %v187
      %v189 = vlaneseq
      %v190 = vshrl.u32 %v189, 7
      %v191 = vsub.s32 6, %v190
      %v192 = vrot.slane %v145, %v191
      %v193 = vlaneseq
      %v194 = vshrl.u32 %v193, 7
      %v195 = vsub.s32 0, %v194
      %v196 = vrot.slane %v146, %v195
      %v197 = vlaneseq
      %v198 = vshrl.u32 %v197, 7
      %v199 = vsub.s32 2, %v198
      %v200 = vrot.slane %v146, %v199
      %v201 = vlaneseq
      %v202 = vshrl.u32 %v201, 7
      %v203 = vsub.s32 4, %v202
      %v204 = vrot.slane %v146, %v203
      %v205 = vlaneseq
      %v206 = vshrl.u32 %v205, 7
      %v207 = vsub.s32 6, %v206
      %v208 = vrot.slane %v146, %v207
      %v209 = vlaneseq
      %v210 = vshrl.u32 %v209, 7
      %v211 = vsub.s32 0, %v210
      %v212 = vrot.slane %v147, %v211
      %v213 = vlaneseq
      %v214 = vshrl.u32 %v213, 7
      %v215 = vsub.s32 2, %v214
      %v216 = vrot.slane %v147, %v215
      %v217 = vlaneseq
      %v218 = vshrl.u32 %v217, 7
      %v219 = vsub.s32 4, %v218
      %v220 = vrot.slane %v147, %v219
      %v221 = vlaneseq
      %v222 = vshrl.u32 %v221, 7
      %v223 = vsub.s32 6, %v222
      %v224 = vrot.slane %v147, %v223
      %v225 = vlaneseq
      %v226 = vshrl.u32 %v225, 7
      %v227 = vsub.s32 0, %v226
      %v228 = vrot.slane %v148, %v227
      %v229 = vlaneseq
      %v230 = vshrl.u32 %v229, 7
      %v231 = vsub.s32 2, %v230
      %v232 = vrot.slane %v148, %v231
      %v233 = vlaneseq
      %v234 = vshrl.u32 %v233, 7
      %v235 = vsub.s32 4, %v234
      %v236 = vrot.slane %v148, %v235
      %v237 = vlaneseq
      %v238 = vshrl.u32 %v237, 7
      %v239 = vsub.s32 6, %v238
      %v240 = vrot.slane %v148, %v239
      %v257 = vlaneseq
      %v258 = vshrl.u32 %v257, 7
      %v259 = vsub.s32 0, %v258
      %v260 = vrot.slane %v180, %v259
      %v261 = vlaneseq
      %v262 = vshrl.u32 %v261, 7
      %v263 = vsub.s32 0, %v262
      %v264 = vrot.slane %v184, %v263
      %v265 = vlaneseq
      %v266 = vshrl.u32 %v265, 7
      %v267 = vsub.s32 0, %v266
      %v268 = vrot.slane %v188, %v267
      %v269 = vlaneseq
      %v270 = vshrl.u32 %v269, 7
      %v271 = vsub.s32 0, %v270
      %v272 = vrot.slane %v192, %v271
      %v273 = vlaneseq
      %v274 = vshrl.u32 %v273, 7
      %v275 = vsub.s32 0, %v274
      %v276 = vrot.slane %v196, %v275
      %v277 = vlaneseq
      %v278 = vshrl.u32 %v277, 7
      %v279 = vsub.s32 0, %v278
      %v280 = vrot.slane %v200, %v279
      %v281 = vlaneseq
      %v282 = vshrl.u32 %v281, 7
      %v283 = vsub.s32 0, %v282
      %v284 = vrot.slane %v204, %v283
      %v285 = vlaneseq
      %v286 = vshrl.u32 %v285, 7
      %v287 = vsub.s32 0, %v286
      %v288 = vrot.slane %v208, %v287
      %v289 = vlaneseq
      %v290 = vshrl.u32 %v289, 7
      %v291 = vsub.s32 0, %v290
      %v292 = vrot.slane %v212, %v291
      %v293 = vlaneseq
      %v294 = vshrl.u32 %v293, 7
      %v295 = vsub.s32 0, %v294
      %v296 = vrot.slane %v216, %v295
      %v297 = vlaneseq
      %v298 = vshrl.u32 %v297, 7
      %v299 = vsub.s32 0, %v298
      %v300 = vrot.slane %v220, %v299
      %v301 = vlaneseq
      %v302 = vshrl.u32 %v301, 7
      %v303 = vsub.s32 0, %v302
      %v304 = vrot.slane %v224, %v303
      %v305 = vlaneseq
      %v306 = vshrl.u32 %v305, 7
      %v307 = vsub.s32 0, %v306
      %v308 = vrot.slane %v228, %v307
      %v309 = vlaneseq
      %v310 = vshrl.u32 %v309, 7
      %v311 = vsub.s32 0, %v310
      %v312 = vrot.slane %v232, %v311
      %v313 = vlaneseq
      %v314 = vshrl.u32 %v313, 7
      %v315 = vsub.s32 0, %v314
      %v316 = vrot.slane %v236, %v315
      %v317 = vlaneseq
      %v318 = vshrl.u32 %v317, 7
      %v319 = vsub.s32 0, %v318
      %v320 = vrot.slane %v240, %v319
      %v321 = vmul.f32 %v156, %v260
      %v322 = vmul.f32 %v156, %v264
      %v323 = vmul.f32 %v156, %v268
      %v324 = vmul.f32 %v156, %v272
      %v325 = vmul.f32 %v156, %v276
      %v326 = vmul.f32 %v156, %v280
      %v327 = vmul.f32 %v156, %v284
      %v328 = vmul.f32 %v156, %v288
      %v329 = vmul.f32 %v156, %v292
      %v330 = vmul.f32 %v156, %v296
      %v331 = vmul.f32 %v156, %v300
      %v332 = vmul.f32 %v156, %v304
      %v333 = vmul.f32 %v156, %v308
      %v334 = vmul.f32 %v156, %v312
      %v335 = vmul.f32 %v156, %v316
      %v336 = vmul.f32 %v156, %v320
      %v337 = vmul.f32 %v161, %v260
      %v338 = vmul.f32 %v161, %v264
      %v339 = vmul.f32 %v161, %v268
      %v340 = vmul.f32 %v161, %v272
      %v341 = vmul.f32 %v161, %v276
      %v342 = vmul.f32 %v161, %v280
      %v343 = vmul.f32 %v161, %v284
      %v344 = vmul.f32 %v161, %v288
      %v345 = vmul.f32 %v161, %v292
      %v346 = vmul.f32 %v161, %v296
      %v347 = vmul.f32 %v161, %v300
      %v348 = vmul.f32 %v161, %v304
      %v349 = vmul.f32 %v161, %v308
      %v350 = vmul.f32 %v161, %v312
      %v351 = vmul.f32 %v161, %v316
      %v352 = vmul.f32 %v161, %v320
      %v353 = vmul.f32 %v166, %v260
      %v354 = vmul.f32 %v166, %v264
      %v355 = vmul.f32 %v166, %v268
      %v356 = vmul.f32 %v166, %v272
      %v357 = vmul.f32 %v166, %v276
      %v358 = vmul.f32 %v166, %v280
      %v359 = vmul.f32 %v166, %v284
      %v360 = vmul.f32 %v166, %v288
      %v361 = vmul.f32 %v166, %v292
      %v362 = vmul.f32 %v166, %v296
      %v363 = vmul.f32 %v166, %v300
      %v364 = vmul.f32 %v166, %v304
      %v365 = vmul.f32 %v166, %v308
      %v366 = vmul.f32 %v166, %v312
      %v367 = vmul.f32 %v166, %v316
      %v368 = vmul.f32 %v166, %v320
      %v369 = vmul.f32 %v171, %v260
      %v370 = vmul.f32 %v171, %v264
      %v371 = vmul.f32 %v171, %v268
      %v372 = vmul.f32 %v171, %v272
      %v373 = vmul.f32 %v171, %v276
      %v374 = vmul.f32 %v171, %v280
      %v375 = vmul.f32 %v171, %v284
      %v376 = vmul.f32 %v171, %v288
      %v377 = vmul.f32 %v171, %v292
      %v378 = vmul.f32 %v171, %v296
      %v379 = vmul.f32 %v171, %v300
      %v380 = vmul.f32 %v171, %v304
      %v381 = vmul.f32 %v171, %v308
      %v382 = vmul.f32 %v171, %v312
      %v383 = vmul.f32 %v171, %v316
      %v384 = vmul.f32 %v171, %v320
      %385 = vset.pattern.permute.xlu0 97
      %386 = vperm.xlu0 %385, %v149
      %v387 = vpop.permute.xlu0 %386
      %389 = vset.pattern.permute.xlu0 97
      %390 = vperm.xlu0 %389, %v150
      %v391 = vpop.permute.xlu0 %390
      %393 = vset.pattern.permute.xlu0 97
      %394 = vperm.xlu0 %393, %v151
      %v395 = vpop.permute.xlu0 %394
      %397 = vset.pattern.permute.xlu0 97
      %398 = vperm.xlu0 %397, %v152
      %v399 = vpop.permute.xlu0 %398
      %v401 = vlaneseq
      %v402 = vshrl.u32 %v401, 7
      %v403 = vsub.s32 1, %v402
      %v404 = vrot.slane %v145, %v403
      %v405 = vlaneseq
      %v406 = vshrl.u32 %v405, 7
      %v407 = vsub.s32 3, %v406
      %v408 = vrot.slane %v145, %v407
      %v409 = vlaneseq
      %v410 = vshrl.u32 %v409, 7
      %v411 = vsub.s32 5, %v410
      %v412 = vrot.slane %v145, %v411
      %v413 = vlaneseq
      %v414 = vshrl.u32 %v413, 7
      %v415 = vsub.s32 7, %v414
      %v416 = vrot.slane %v145, %v415
      %v417 = vlaneseq
      %v418 = vshrl.u32 %v417, 7
      %v419 = vsub.s32 1, %v418
      %v420 = vrot.slane %v146, %v419
      %v421 = vlaneseq
      %v422 = vshrl.u32 %v421, 7
      %v423 = vsub.s32 3, %v422
      %v424 = vrot.slane %v146, %v423
      %v425 = vlaneseq
      %v426 = vshrl.u32 %v425, 7
      %v427 = vsub.s32 5, %v426
      %v428 = vrot.slane %v146, %v427
      %v429 = vlaneseq
      %v430 = vshrl.u32 %v429, 7
      %v431 = vsub.s32 7, %v430
      %v432 = vrot.slane %v146, %v431
      %v433 = vlaneseq
      %v434 = vshrl.u32 %v433, 7
      %v435 = vsub.s32 1, %v434
      %v436 = vrot.slane %v147, %v435
      %v437 = vlaneseq
      %v438 = vshrl.u32 %v437, 7
      %v439 = vsub.s32 3, %v438
      %v440 = vrot.slane %v147, %v439
      %v441 = vlaneseq
      %v442 = vshrl.u32 %v441, 7
      %v443 = vsub.s32 5, %v442
      %v444 = vrot.slane %v147, %v443
      %v445 = vlaneseq
      %v446 = vshrl.u32 %v445, 7
      %v447 = vsub.s32 7, %v446
      %v448 = vrot.slane %v147, %v447
      %v449 = vlaneseq
      %v450 = vshrl.u32 %v449, 7
      %v451 = vsub.s32 1, %v450
      %v452 = vrot.slane %v148, %v451
      %v453 = vlaneseq
      %v454 = vshrl.u32 %v453, 7
      %v455 = vsub.s32 3, %v454
      %v456 = vrot.slane %v148, %v455
      %v457 = vlaneseq
      %v458 = vshrl.u32 %v457, 7
      %v459 = vsub.s32 5, %v458
      %v460 = vrot.slane %v148, %v459
      %v461 = vlaneseq
      %v462 = vshrl.u32 %v461, 7
      %v463 = vsub.s32 7, %v462
      %v464 = vrot.slane %v148, %v463
      %v481 = vlaneseq
      %v482 = vshrl.u32 %v481, 7
      %v483 = vsub.s32 1, %v482
      %v484 = vrot.slane %v404, %v483
      %v485 = vlaneseq
      %v486 = vshrl.u32 %v485, 7
      %v487 = vsub.s32 1, %v486
      %v488 = vrot.slane %v408, %v487
      %v489 = vlaneseq
      %v490 = vshrl.u32 %v489, 7
      %v491 = vsub.s32 1, %v490
      %v492 = vrot.slane %v412, %v491
      %v493 = vlaneseq
      %v494 = vshrl.u32 %v493, 7
      %v495 = vsub.s32 1, %v494
      %v496 = vrot.slane %v416, %v495
      %v497 = vlaneseq
      %v498 = vshrl.u32 %v497, 7
      %v499 = vsub.s32 1, %v498
      %v500 = vrot.slane %v420, %v499
      %v501 = vlaneseq
      %v502 = vshrl.u32 %v501, 7
      %v503 = vsub.s32 1, %v502
      %v504 = vrot.slane %v424, %v503
      %v505 = vlaneseq
      %v506 = vshrl.u32 %v505, 7
      %v507 = vsub.s32 1, %v506
      %v508 = vrot.slane %v428, %v507
      %v509 = vlaneseq
      %v510 = vshrl.u32 %v509, 7
      %v511 = vsub.s32 1, %v510
      %v512 = vrot.slane %v432, %v511
      %v513 = vlaneseq
      %v514 = vshrl.u32 %v513, 7
      %v515 = vsub.s32 1, %v514
      %v516 = vrot.slane %v436, %v515
      %v517 = vlaneseq
      %v518 = vshrl.u32 %v517, 7
      %v519 = vsub.s32 1, %v518
      %v520 = vrot.slane %v440, %v519
      %v521 = vlaneseq
      %v522 = vshrl.u32 %v521, 7
      %v523 = vsub.s32 1, %v522
      %v524 = vrot.slane %v444, %v523
      %v525 = vlaneseq
      %v526 = vshrl.u32 %v525, 7
      %v527 = vsub.s32 1, %v526
      %v528 = vrot.slane %v448, %v527
      %v529 = vlaneseq
      %v530 = vshrl.u32 %v529, 7
      %v531 = vsub.s32 1, %v530
      %v532 = vrot.slane %v452, %v531
      %v533 = vlaneseq
      %v534 = vshrl.u32 %v533, 7
      %v535 = vsub.s32 1, %v534
      %v536 = vrot.slane %v456, %v535
      %v537 = vlaneseq
      %v538 = vshrl.u32 %v537, 7
      %v539 = vsub.s32 1, %v538
      %v540 = vrot.slane %v460, %v539
      %v541 = vlaneseq
      %v542 = vshrl.u32 %v541, 7
      %v543 = vsub.s32 1, %v542
      %v544 = vrot.slane %v464, %v543
      %v545 = vmul.f32 %v387, %v484
      %v546 = vmul.f32 %v387, %v488
      %v547 = vmul.f32 %v387, %v492
      %v548 = vmul.f32 %v387, %v496
      %v549 = vmul.f32 %v387, %v500
      %v550 = vmul.f32 %v387, %v504
      %v551 = vmul.f32 %v387, %v508
      %v552 = vmul.f32 %v387, %v512
      %v553 = vmul.f32 %v387, %v516
      %v554 = vmul.f32 %v387, %v520
      %v555 = vmul.f32 %v387, %v524
      %v556 = vmul.f32 %v387, %v528
      %v557 = vmul.f32 %v387, %v532
      %v558 = vmul.f32 %v387, %v536
      %v559 = vmul.f32 %v387, %v540
      %v560 = vmul.f32 %v387, %v544
      %v561 = vmul.f32 %v391, %v484
      %v562 = vmul.f32 %v391, %v488
      %v563 = vmul.f32 %v391, %v492
      %v564 = vmul.f32 %v391, %v496
      %v565 = vmul.f32 %v391, %v500
      %v566 = vmul.f32 %v391, %v504
      %v567 = vmul.f32 %v391, %v508
      %v568 = vmul.f32 %v391, %v512
      %v569 = vmul.f32 %v391, %v516
      %v570 = vmul.f32 %v391, %v520
      %v571 = vmul.f32 %v391, %v524
      %v572 = vmul.f32 %v391, %v528
      %v573 = vmul.f32 %v391, %v532
      %v574 = vmul.f32 %v391, %v536
      %v575 = vmul.f32 %v391, %v540
      %v576 = vmul.f32 %v391, %v544
      %v577 = vmul.f32 %v395, %v484
      %v578 = vmul.f32 %v395, %v488
      %v579 = vmul.f32 %v395, %v492
      %v580 = vmul.f32 %v395, %v496
      %v581 = vmul.f32 %v395, %v500
      %v582 = vmul.f32 %v395, %v504
      %v583 = vmul.f32 %v395, %v508
      %v584 = vmul.f32 %v395, %v512
      %v585 = vmul.f32 %v395, %v516
      %v586 = vmul.f32 %v395, %v520
      %v587 = vmul.f32 %v395, %v524
      %v588 = vmul.f32 %v395, %v528
      %v589 = vmul.f32 %v395, %v532
      %v590 = vmul.f32 %v395, %v536
      %v591 = vmul.f32 %v395, %v540
      %v592 = vmul.f32 %v395, %v544
      %v593 = vmul.f32 %v399, %v484
      %v594 = vmul.f32 %v399, %v488
      %v595 = vmul.f32 %v399, %v492
      %v596 = vmul.f32 %v399, %v496
      %v597 = vmul.f32 %v399, %v500
      %v598 = vmul.f32 %v399, %v504
      %v599 = vmul.f32 %v399, %v508
      %v600 = vmul.f32 %v399, %v512
      %v601 = vmul.f32 %v399, %v516
      %v602 = vmul.f32 %v399, %v520
      %v603 = vmul.f32 %v399, %v524
      %v604 = vmul.f32 %v399, %v528
      %v605 = vmul.f32 %v399, %v532
      %v606 = vmul.f32 %v399, %v536
      %v607 = vmul.f32 %v399, %v540
      %v608 = vmul.f32 %v399, %v544
      %v609 = vadd.f32 %v321, %v545
      %v610 = vadd.f32 %v322, %v546
      %v611 = vadd.f32 %v323, %v547
      %v612 = vadd.f32 %v324, %v548
      %v613 = vadd.f32 %v325, %v549
      %v614 = vadd.f32 %v326, %v550
      %v615 = vadd.f32 %v327, %v551
      %v616 = vadd.f32 %v328, %v552
      %v617 = vadd.f32 %v329, %v553
      %v618 = vadd.f32 %v330, %v554
      %v619 = vadd.f32 %v331, %v555
      %v620 = vadd.f32 %v332, %v556
      %v621 = vadd.f32 %v333, %v557
      %v622 = vadd.f32 %v334, %v558
      %v623 = vadd.f32 %v335, %v559
      %v624 = vadd.f32 %v336, %v560
      %v625 = vadd.f32 %v337, %v561
      %v626 = vadd.f32 %v338, %v562
      %v627 = vadd.f32 %v339, %v563
      %v628 = vadd.f32 %v340, %v564
      %v629 = vadd.f32 %v341, %v565
      %v630 = vadd.f32 %v342, %v566
      %v631 = vadd.f32 %v343, %v567
      %v632 = vadd.f32 %v344, %v568
      %v633 = vadd.f32 %v345, %v569
      %v634 = vadd.f32 %v346, %v570
      %v635 = vadd.f32 %v347, %v571
      %v636 = vadd.f32 %v348, %v572
      %v637 = vadd.f32 %v349, %v573
      %v638 = vadd.f32 %v350, %v574
      %v639 = vadd.f32 %v351, %v575
      %v640 = vadd.f32 %v352, %v576
      %v641 = vadd.f32 %v353, %v577
      %v642 = vadd.f32 %v354, %v578
      %v643 = vadd.f32 %v355, %v579
      %v644 = vadd.f32 %v356, %v580
      %v645 = vadd.f32 %v357, %v581
      %v646 = vadd.f32 %v358, %v582
      %v647 = vadd.f32 %v359, %v583
      %v648 = vadd.f32 %v360, %v584
      %v649 = vadd.f32 %v361, %v585
      %v650 = vadd.f32 %v362, %v586
      %v651 = vadd.f32 %v363, %v587
      %v652 = vadd.f32 %v364, %v588
      %v653 = vadd.f32 %v365, %v589
      %v654 = vadd.f32 %v366, %v590
      %v655 = vadd.f32 %v367, %v591
      %v656 = vadd.f32 %v368, %v592
      %v657 = vadd.f32 %v369, %v593
      %v658 = vadd.f32 %v370, %v594
      %v659 = vadd.f32 %v371, %v595
      %v660 = vadd.f32 %v372, %v596
      %v661 = vadd.f32 %v373, %v597
      %v662 = vadd.f32 %v374, %v598
      %v663 = vadd.f32 %v375, %v599
      %v664 = vadd.f32 %v376, %v600
      %v665 = vadd.f32 %v377, %v601
      %v666 = vadd.f32 %v378, %v602
      %v667 = vadd.f32 %v379, %v603
      %v668 = vadd.f32 %v380, %v604
      %v669 = vadd.f32 %v381, %v605
      %v670 = vadd.f32 %v382, %v606
      %v671 = vadd.f32 %v383, %v607
      %v672 = vadd.f32 %v384, %v608
      %673 = vset.pattern.permute.xlu0 99
      %674 = vperm.xlu0 %673, %v149
      %v675 = vpop.permute.xlu0 %674
      %677 = vset.pattern.permute.xlu0 99
      %678 = vperm.xlu0 %677, %v150
      %v679 = vpop.permute.xlu0 %678
      %681 = vset.pattern.permute.xlu0 99
      %682 = vperm.xlu0 %681, %v151
      %v683 = vpop.permute.xlu0 %682
      %685 = vset.pattern.permute.xlu0 99
      %686 = vperm.xlu0 %685, %v152
      %v687 = vpop.permute.xlu0 %686
      %v689 = vadd.f32 %v609, %v675
      %v690 = vadd.f32 %v610, %v675
      %v691 = vadd.f32 %v611, %v675
      %v692 = vadd.f32 %v612, %v675
      %v693 = vadd.f32 %v613, %v675
      %v694 = vadd.f32 %v614, %v675
      %v695 = vadd.f32 %v615, %v675
      %v696 = vadd.f32 %v616, %v675
      %v697 = vadd.f32 %v617, %v675
      %v698 = vadd.f32 %v618, %v675
      %v699 = vadd.f32 %v619, %v675
      %v700 = vadd.f32 %v620, %v675
      %v701 = vadd.f32 %v621, %v675
      %v702 = vadd.f32 %v622, %v675
      %v703 = vadd.f32 %v623, %v675
      %v704 = vadd.f32 %v624, %v675
      %v705 = vadd.f32 %v625, %v679
      %v706 = vadd.f32 %v626, %v679
      %v707 = vadd.f32 %v627, %v679
      %v708 = vadd.f32 %v628, %v679
      %v709 = vadd.f32 %v629, %v679
      %v710 = vadd.f32 %v630, %v679
      %v711 = vadd.f32 %v631, %v679
      %v712 = vadd.f32 %v632, %v679
      %v713 = vadd.f32 %v633, %v679
      %v714 = vadd.f32 %v634, %v679
      %v715 = vadd.f32 %v635, %v679
      %v716 = vadd.f32 %v636, %v679
      %v717 = vadd.f32 %v637, %v679
      %v718 = vadd.f32 %v638, %v679
      %v719 = vadd.f32 %v639, %v679
      %v720 = vadd.f32 %v640, %v679
      %v721 = vadd.f32 %v641, %v683
      %v722 = vadd.f32 %v642, %v683
      %v723 = vadd.f32 %v643, %v683
      %v724 = vadd.f32 %v644, %v683
      %v725 = vadd.f32 %v645, %v683
      %v726 = vadd.f32 %v646, %v683
      %v727 = vadd.f32 %v647, %v683
      %v728 = vadd.f32 %v648, %v683
      %v729 = vadd.f32 %v649, %v683
      %v730 = vadd.f32 %v650, %v683
      %v731 = vadd.f32 %v651, %v683
      %v732 = vadd.f32 %v652, %v683
      %v733 = vadd.f32 %v653, %v683
      %v734 = vadd.f32 %v654, %v683
      %v735 = vadd.f32 %v655, %v683
      %v736 = vadd.f32 %v656, %v683
      %v737 = vadd.f32 %v657, %v687
      %v738 = vadd.f32 %v658, %v687
      %v739 = vadd.f32 %v659, %v687
      %v740 = vadd.f32 %v660, %v687
      %v741 = vadd.f32 %v661, %v687
      %v742 = vadd.f32 %v662, %v687
      %v743 = vadd.f32 %v663, %v687
      %v744 = vadd.f32 %v664, %v687
      %v745 = vadd.f32 %v665, %v687
      %v746 = vadd.f32 %v666, %v687
      %v747 = vadd.f32 %v667, %v687
      %v748 = vadd.f32 %v668, %v687
      %v749 = vadd.f32 %v669, %v687
      %v750 = vadd.f32 %v670, %v687
      %v751 = vadd.f32 %v671, %v687
      %v752 = vadd.f32 %v672, %v687
      %v753 = vtanh.pop %v689
      %v754 = vtanh.pop %v690
      %v755 = vtanh.pop %v691
      %v756 = vtanh.pop %v692
      %v757 = vtanh.pop %v693
      %v758 = vtanh.pop %v694
      %v759 = vtanh.pop %v695
      %v760 = vtanh.pop %v696
      %v761 = vtanh.pop %v697
      %v762 = vtanh.pop %v698
      %v763 = vtanh.pop %v699
      %v764 = vtanh.pop %v700
      %v765 = vtanh.pop %v701
      %v766 = vtanh.pop %v702
      %v767 = vtanh.pop %v703
      %v768 = vtanh.pop %v704
      %v769 = vtanh.pop %v705
      %v770 = vtanh.pop %v706
      %v771 = vtanh.pop %v707
      %v772 = vtanh.pop %v708
      %v773 = vtanh.pop %v709
      %v774 = vtanh.pop %v710
      %v775 = vtanh.pop %v711
      %v776 = vtanh.pop %v712
      %v777 = vtanh.pop %v713
      %v778 = vtanh.pop %v714
      %v779 = vtanh.pop %v715
      %v780 = vtanh.pop %v716
      %v781 = vtanh.pop %v717
      %v782 = vtanh.pop %v718
      %v783 = vtanh.pop %v719
      %v784 = vtanh.pop %v720
      %v785 = vtanh.pop %v721
      %v786 = vtanh.pop %v722
      %v787 = vtanh.pop %v723
      %v788 = vtanh.pop %v724
      %v789 = vtanh.pop %v725
      %v790 = vtanh.pop %v726
      %v791 = vtanh.pop %v727
      %v792 = vtanh.pop %v728
      %v793 = vtanh.pop %v729
      %v794 = vtanh.pop %v730
      %v795 = vtanh.pop %v731
      %v796 = vtanh.pop %v732
      %v797 = vtanh.pop %v733
      %v798 = vtanh.pop %v734
      %v799 = vtanh.pop %v735
      %v800 = vtanh.pop %v736
      %v801 = vtanh.pop %v737
      %v802 = vtanh.pop %v738
      %v803 = vtanh.pop %v739
      %v804 = vtanh.pop %v740
      %v805 = vtanh.pop %v741
      %v806 = vtanh.pop %v742
      %v807 = vtanh.pop %v743
      %v808 = vtanh.pop %v744
      %v809 = vtanh.pop %v745
      %v810 = vtanh.pop %v746
      %v811 = vtanh.pop %v747
      %v812 = vtanh.pop %v748
      %v813 = vtanh.pop %v749
      %v814 = vtanh.pop %v750
      %v815 = vtanh.pop %v751
      %v816 = vtanh.pop %v752
      %817 = vset.pattern.permute.xlu0 100
      %818 = vperm.xlu0 %817, %v149
      %v819 = vpop.permute.xlu0 %818
      %821 = vset.pattern.permute.xlu0 100
      %822 = vperm.xlu0 %821, %v150
      %v823 = vpop.permute.xlu0 %822
      %825 = vset.pattern.permute.xlu0 100
      %826 = vperm.xlu0 %825, %v151
      %v827 = vpop.permute.xlu0 %826
      %829 = vset.pattern.permute.xlu0 100
      %830 = vperm.xlu0 %829, %v152
      %v831 = vpop.permute.xlu0 %830
      %vm833 = vcmask 261120
      %v834 = vsel %vm833, %v149, 0
      %v836 = vsel %vm833, %v150, 0
      %v838 = vsel %vm833, %v151, 0
      %v840 = vsel %vm833, %v152, 0
      %842 = vmatprep.subr.mxu0 %v754
      %843 = vmatpush1.msra.mxu0 %v753
      %844 = vmatprep.subr.mxu0 %v770
      %845 = vmatpush1.msra.mxu0 %v769
      %846 = vmatprep.subr.mxu0 %v786
      %847 = vmatpush1.msra.mxu0 %v785
      %848 = vmatprep.subr.mxu0 %v802
      %849 = vmatpush1.msra.mxu0 %v801
      %850 = vmatprep.subr.mxu0 0.0
      %851 = vmatpush1.msra.mxu0 0.0
      %852 = vmatprep.subr.mxu0 0.0
      %853 = vmatpush1.msra.mxu0 0.0
      %854 = vmatprep.subr.mxu0 0.0
      %855 = vmatpush1.msra.mxu0 0.0
      %856 = vmatprep.subr.mxu0 0.0
      %857 = vmatpush1.msra.mxu0 0.0
      %858 = vmatprep.subr.mxu0 0.0
      %859 = vmatpush1.msra.mxu0 0.0
      %860 = vmatprep.subr.mxu0 0.0
      %861 = vmatpush1.msra.mxu0 0.0
      %862 = vmatprep.subr.mxu0 0.0
      %863 = vmatpush1.msra.mxu0 0.0
      %864 = vmatprep.subr.mxu0 0.0
      %865 = vmatpush1.msra.mxu0 0.0
      %866 = vmatprep.subr.mxu0 0.0
      %867 = vmatpush1.msra.mxu0 0.0
      %868 = vmatprep.subr.mxu0 0.0
      %869 = vmatpush1.msra.mxu0 0.0
      %870 = vmatprep.subr.mxu0 0.0
      %871 = vmatpush1.msra.mxu0 0.0
      %872 = vmatprep.subr.mxu0 0.0
      %873 = vmatpush1.msra.mxu0 0.0
      %874 = vmatprep.subr.mxu0 0.0
      %875 = vmatpush1.msra.mxu0 0.0
      %876 = vmatprep.subr.mxu0 0.0
      %877 = vmatpush1.msra.mxu0 0.0
      %878 = vmatprep.subr.mxu0 0.0
      %879 = vmatpush1.msra.mxu0 0.0
      %880 = vmatprep.subr.mxu0 0.0
      %881 = vmatpush1.msra.mxu0 0.0
      %882 = vmatprep.subr.mxu0 0.0
      %883 = vmatpush1.msra.mxu0 0.0
      %884 = vmatprep.subr.mxu0 0.0
      %885 = vmatpush1.msra.mxu0 0.0
      %886 = vmatprep.subr.mxu0 0.0
      %887 = vmatpush1.msra.mxu0 0.0
      %888 = vmatprep.subr.mxu0 0.0
      %889 = vmatpush1.msra.mxu0 0.0
      %890 = vmatprep.subr.mxu0 0.0
      %891 = vmatpush1.msra.mxu0 0.0
      %892 = vmatprep.subr.mxu0 0.0
      %893 = vmatpush1.msra.mxu0 0.0
      %894 = vmatprep.subr.mxu0 0.0
      %895 = vmatpush1.msra.mxu0 0.0
      %896 = vmatprep.subr.mxu0 0.0
      %897 = vmatpush1.msra.mxu0 0.0
      %898 = vmatprep.subr.mxu0 0.0
      %899 = vmatpush1.msra.mxu0 0.0
      %900 = vmatprep.subr.mxu0 0.0
      %901 = vmatpush1.msra.mxu0 0.0
      %902 = vmatprep.subr.mxu0 0.0
      %903 = vmatpush1.msra.mxu0 0.0
      %904 = vmatprep.subr.mxu0 0.0
      %905 = vmatpush1.msra.mxu0 0.0
      %906 = vmatprep.mubr.f32.mxu0 0.0
      %907 = vmatmul.mubr.f32.gmra.mrb[0].mxu0 %v834
      %v908 = vpop.f32.mrb[0].mxu0
      %v909 = vadd.f32 %v819, %v908
      %v910 = vpop.f32.mrb[0].mxu0
      %v911 = vadd.f32 %v819, %v910
      %912 = vmatprep.mubr.f32.mxu0 0.0
      %913 = vmatmul.mubr.f32.gmra.mrb[0].mxu0 %v836
      %v914 = vpop.f32.mrb[0].mxu0
      %v915 = vadd.f32 %v823, %v914
      %v916 = vpop.f32.mrb[0].mxu0
      %v917 = vadd.f32 %v823, %v916
      %918 = vmatprep.mubr.f32.mxu0 0.0
      %919 = vmatmul.mubr.f32.gmra.mrb[0].mxu0 %v838
      %v920 = vpop.f32.mrb[0].mxu0
      %v921 = vadd.f32 %v827, %v920
      %v922 = vpop.f32.mrb[0].mxu0
      %v923 = vadd.f32 %v827, %v922
      %924 = vmatprep.mubr.f32.mxu0 0.0
      %925 = vmatmul.mubr.f32.gmra.mrb[0].mxu0 %v840
      %v926 = vpop.f32.mrb[0].mxu0
      %v927 = vadd.f32 %v831, %v926
      %v928 = vpop.f32.mrb[0].mxu0
      %v929 = vadd.f32 %v831, %v928
      %930 = vdwg.mxu0
      %931 = vmatprep.subr.mxu0 %v756
      %932 = vmatpush1.msra.mxu0 %v755
      %933 = vmatprep.subr.mxu0 %v772
      %934 = vmatpush1.msra.mxu0 %v771
      %935 = vmatprep.subr.mxu0 %v788
      %936 = vmatpush1.msra.mxu0 %v787
      %937 = vmatprep.subr.mxu0 %v804
      %938 = vmatpush1.msra.mxu0 %v803
      %939 = vmatprep.subr.mxu0 0.0
      %940 = vmatpush1.msra.mxu0 0.0
      %941 = vmatprep.subr.mxu0 0.0
      %942 = vmatpush1.msra.mxu0 0.0
      %943 = vmatprep.subr.mxu0 0.0
      %944 = vmatpush1.msra.mxu0 0.0
      %945 = vmatprep.subr.mxu0 0.0
      %946 = vmatpush1.msra.mxu0 0.0
      %947 = vmatprep.subr.mxu0 0.0
      %948 = vmatpush1.msra.mxu0 0.0
      %949 = vmatprep.subr.mxu0 0.0
      %950 = vmatpush1.msra.mxu0 0.0
      %951 = vmatprep.subr.mxu0 0.0
      %952 = vmatpush1.msra.mxu0 0.0
      %953 = vmatprep.subr.mxu0 0.0
      %954 = vmatpush1.msra.mxu0 0.0
      %955 = vmatprep.subr.mxu0 0.0
      %956 = vmatpush1.msra.mxu0 0.0
      %957 = vmatprep.subr.mxu0 0.0
      %958 = vmatpush1.msra.mxu0 0.0
      %959 = vmatprep.subr.mxu0 0.0
      %960 = vmatpush1.msra.mxu0 0.0
      %961 = vmatprep.subr.mxu0 0.0
      %962 = vmatpush1.msra.mxu0 0.0
      %963 = vmatprep.subr.mxu0 0.0
      %964 = vmatpush1.msra.mxu0 0.0
      %965 = vmatprep.subr.mxu0 0.0
      %966 = vmatpush1.msra.mxu0 0.0
      %967 = vmatprep.subr.mxu0 0.0
      %968 = vmatpush1.msra.mxu0 0.0
      %969 = vmatprep.subr.mxu0 0.0
      %970 = vmatpush1.msra.mxu0 0.0
      %971 = vmatprep.subr.mxu0 0.0
      %972 = vmatpush1.msra.mxu0 0.0
      %973 = vmatprep.subr.mxu0 0.0
      %974 = vmatpush1.msra.mxu0 0.0
      %975 = vmatprep.subr.mxu0 0.0
      %976 = vmatpush1.msra.mxu0 0.0
      %977 = vmatprep.subr.mxu0 0.0
      %978 = vmatpush1.msra.mxu0 0.0
      %979 = vmatprep.subr.mxu0 0.0
      %980 = vmatpush1.msra.mxu0 0.0
      %981 = vmatprep.subr.mxu0 0.0
      %982 = vmatpush1.msra.mxu0 0.0
      %983 = vmatprep.subr.mxu0 0.0
      %984 = vmatpush1.msra.mxu0 0.0
      %985 = vmatprep.subr.mxu0 0.0
      %986 = vmatpush1.msra.mxu0 0.0
      %987 = vmatprep.subr.mxu0 0.0
      %988 = vmatpush1.msra.mxu0 0.0
      %989 = vmatprep.subr.mxu0 0.0
      %990 = vmatpush1.msra.mxu0 0.0
      %991 = vmatprep.subr.mxu0 0.0
      %992 = vmatpush1.msra.mxu0 0.0
      %993 = vmatprep.subr.mxu0 0.0
      %994 = vmatpush1.msra.mxu0 0.0
      %995 = vmatprep.mubr.f32.mxu0 0.0
      %996 = vmatmul.mubr.f32.gmra.mrb[0].mxu0 %v834
      %v997 = vpop.f32.mrb[0].mxu0
      %v998 = vadd.f32 %v819, %v997
      %v999 = vpop.f32.mrb[0].mxu0
      %v1000 = vadd.f32 %v819, %v999
      %1001 = vmatprep.mubr.f32.mxu0 0.0
      %1002 = vmatmul.mubr.f32.gmra.mrb[0].mxu0 %v836
      %v1003 = vpop.f32.mrb[0].mxu0
      %v1004 = vadd.f32 %v823, %v1003
      %v1005 = vpop.f32.mrb[0].mxu0
      %v1006 = vadd.f32 %v823, %v1005
      %1007 = vmatprep.mubr.f32.mxu0 0.0
      %1008 = vmatmul.mubr.f32.gmra.mrb[0].mxu0 %v838
      %v1009 = vpop.f32.mrb[0].mxu0
      %v1010 = vadd.f32 %v827, %v1009
      %v1011 = vpop.f32.mrb[0].mxu0
      %v1012 = vadd.f32 %v827, %v1011
      %1013 = vmatprep.mubr.f32.mxu0 0.0
      %1014 = vmatmul.mubr.f32.gmra.mrb[0].mxu0 %v840
      %v1015 = vpop.f32.mrb[0].mxu0
      %v1016 = vadd.f32 %v831, %v1015
      %v1017 = vpop.f32.mrb[0].mxu0
      %v1018 = vadd.f32 %v831, %v1017
      %1019 = vdwg.mxu0
      %1020 = vmatprep.subr.mxu0 %v758
      %1021 = vmatpush1.msra.mxu0 %v757
      %1022 = vmatprep.subr.mxu0 %v774
      %1023 = vmatpush1.msra.mxu0 %v773
      %1024 = vmatprep.subr.mxu0 %v790
      %1025 = vmatpush1.msra.mxu0 %v789
      %1026 = vmatprep.subr.mxu0 %v806
      %1027 = vmatpush1.msra.mxu0 %v805
      %1028 = vmatprep.subr.mxu0 0.0
      %1029 = vmatpush1.msra.mxu0 0.0
      %1030 = vmatprep.subr.mxu0 0.0
      %1031 = vmatpush1.msra.mxu0 0.0
      %1032 = vmatprep.subr.mxu0 0.0
      %1033 = vmatpush1.msra.mxu0 0.0
      %1034 = vmatprep.subr.mxu0 0.0
      %1035 = vmatpush1.msra.mxu0 0.0
      %1036 = vmatprep.subr.mxu0 0.0
      %1037 = vmatpush1.msra.mxu0 0.0
      %1038 = vmatprep.subr.mxu0 0.0
      %1039 = vmatpush1.msra.mxu0 0.0
      %1040 = vmatprep.subr.mxu0 0.0
      %1041 = vmatpush1.msra.mxu0 0.0
      %1042 = vmatprep.subr.mxu0 0.0
      %1043 = vmatpush1.msra.mxu0 0.0
      %1044 = vmatprep.subr.mxu0 0.0
      %1045 = vmatpush1.msra.mxu0 0.0
      %1046 = vmatprep.subr.mxu0 0.0
      %1047 = vmatpush1.msra.mxu0 0.0
      %1048 = vmatprep.subr.mxu0 0.0
      %1049 = vmatpush1.msra.mxu0 0.0
      %1050 = vmatprep.subr.mxu0 0.0
      %1051 = vmatpush1.msra.mxu0 0.0
      %1052 = vmatprep.subr.mxu0 0.0
      %1053 = vmatpush1.msra.mxu0 0.0
      %1054 = vmatprep.subr.mxu0 0.0
      %1055 = vmatpush1.msra.mxu0 0.0
      %1056 = vmatprep.subr.mxu0 0.0
      %1057 = vmatpush1.msra.mxu0 0.0
      %1058 = vmatprep.subr.mxu0 0.0
      %1059 = vmatpush1.msra.mxu0 0.0
      %1060 = vmatprep.subr.mxu0 0.0
      %1061 = vmatpush1.msra.mxu0 0.0
      %1062 = vmatprep.subr.mxu0 0.0
      %1063 = vmatpush1.msra.mxu0 0.0
      %1064 = vmatprep.subr.mxu0 0.0
      %1065 = vmatpush1.msra.mxu0 0.0
      %1066 = vmatprep.subr.mxu0 0.0
      %1067 = vmatpush1.msra.mxu0 0.0
      %1068 = vmatprep.subr.mxu0 0.0
      %1069 = vmatpush1.msra.mxu0 0.0
      %1070 = vmatprep.subr.mxu0 0.0
      %1071 = vmatpush1.msra.mxu0 0.0
      %1072 = vmatprep.subr.mxu0 0.0
      %1073 = vmatpush1.msra.mxu0 0.0
      %1074 = vmatprep.subr.mxu0 0.0
      %1075 = vmatpush1.msra.mxu0 0.0
      %1076 = vmatprep.subr.mxu0 0.0
      %1077 = vmatpush1.msra.mxu0 0.0
      %1078 = vmatprep.subr.mxu0 0.0
      %1079 = vmatpush1.msra.mxu0 0.0
      %1080 = vmatprep.subr.mxu0 0.0
      %1081 = vmatpush1.msra.mxu0 0.0
      %1082 = vmatprep.subr.mxu0 0.0
      %1083 = vmatpush1.msra.mxu0 0.0
      %1084 = vmatprep.mubr.f32.mxu0 0.0
      %1085 = vmatmul.mubr.f32.gmra.mrb[0].mxu0 %v834
      %v1086 = vpop.f32.mrb[0].mxu0
      %v1087 = vadd.f32 %v819, %v1086
      %v1088 = vpop.f32.mrb[0].mxu0
      %v1089 = vadd.f32 %v819, %v1088
      %1090 = vmatprep.mubr.f32.mxu0 0.0
      %1091 = vmatmul.mubr.f32.gmra.mrb[0].mxu0 %v836
      %v1092 = vpop.f32.mrb[0].mxu0
      %v1093 = vadd.f32 %v823, %v1092
      %v1094 = vpop.f32.mrb[0].mxu0
      %v1095 = vadd.f32 %v823, %v1094
      %1096 = vmatprep.mubr.f32.mxu0 0.0
      %1097 = vmatmul.mubr.f32.gmra.mrb[0].mxu0 %v838
      %v1098 = vpop.f32.mrb[0].mxu0
      %v1099 = vadd.f32 %v827, %v1098
      %v1100 = vpop.f32.mrb[0].mxu0
      %v1101 = vadd.f32 %v827, %v1100
      %1102 = vmatprep.mubr.f32.mxu0 0.0
      %1103 = vmatmul.mubr.f32.gmra.mrb[0].mxu0 %v840
      %v1104 = vpop.f32.mrb[0].mxu0
      %v1105 = vadd.f32 %v831, %v1104
      %v1106 = vpop.f32.mrb[0].mxu0
      %v1107 = vadd.f32 %v831, %v1106
      %1108 = vdwg.mxu0
      %1109 = vmatprep.subr.mxu0 %v760
      %1110 = vmatpush1.msra.mxu0 %v759
      %1111 = vmatprep.subr.mxu0 %v776
      %1112 = vmatpush1.msra.mxu0 %v775
      %1113 = vmatprep.subr.mxu0 %v792
      %1114 = vmatpush1.msra.mxu0 %v791
      %1115 = vmatprep.subr.mxu0 %v808
      %1116 = vmatpush1.msra.mxu0 %v807
      %1117 = vmatprep.subr.mxu0 0.0
      %1118 = vmatpush1.msra.mxu0 0.0
      %1119 = vmatprep.subr.mxu0 0.0
      %1120 = vmatpush1.msra.mxu0 0.0
      %1121 = vmatprep.subr.mxu0 0.0
      %1122 = vmatpush1.msra.mxu0 0.0
      %1123 = vmatprep.subr.mxu0 0.0
      %1124 = vmatpush1.msra.mxu0 0.0
      %1125 = vmatprep.subr.mxu0 0.0
      %1126 = vmatpush1.msra.mxu0 0.0
      %1127 = vmatprep.subr.mxu0 0.0
      %1128 = vmatpush1.msra.mxu0 0.0
      %1129 = vmatprep.subr.mxu0 0.0
      %1130 = vmatpush1.msra.mxu0 0.0
      %1131 = vmatprep.subr.mxu0 0.0
      %1132 = vmatpush1.msra.mxu0 0.0
      %1133 = vmatprep.subr.mxu0 0.0
      %1134 = vmatpush1.msra.mxu0 0.0
      %1135 = vmatprep.subr.mxu0 0.0
      %1136 = vmatpush1.msra.mxu0 0.0
      %1137 = vmatprep.subr.mxu0 0.0
      %1138 = vmatpush1.msra.mxu0 0.0
      %1139 = vmatprep.subr.mxu0 0.0
      %1140 = vmatpush1.msra.mxu0 0.0
      %1141 = vmatprep.subr.mxu0 0.0
      %1142 = vmatpush1.msra.mxu0 0.0
      %1143 = vmatprep.subr.mxu0 0.0
      %1144 = vmatpush1.msra.mxu0 0.0
      %1145 = vmatprep.subr.mxu0 0.0
      %1146 = vmatpush1.msra.mxu0 0.0
      %1147 = vmatprep.subr.mxu0 0.0
      %1148 = vmatpush1.msra.mxu0 0.0
      %1149 = vmatprep.subr.mxu0 0.0
      %1150 = vmatpush1.msra.mxu0 0.0
      %1151 = vmatprep.subr.mxu0 0.0
      %1152 = vmatpush1.msra.mxu0 0.0
      %1153 = vmatprep.subr.mxu0 0.0
      %1154 = vmatpush1.msra.mxu0 0.0
      %1155 = vmatprep.subr.mxu0 0.0
      %1156 = vmatpush1.msra.mxu0 0.0
      %1157 = vmatprep.subr.mxu0 0.0
      %1158 = vmatpush1.msra.mxu0 0.0
      %1159 = vmatprep.subr.mxu0 0.0
      %1160 = vmatpush1.msra.mxu0 0.0
      %1161 = vmatprep.subr.mxu0 0.0
      %1162 = vmatpush1.msra.mxu0 0.0
      %1163 = vmatprep.subr.mxu0 0.0
      %1164 = vmatpush1.msra.mxu0 0.0
      %1165 = vmatprep.subr.mxu0 0.0
      %1166 = vmatpush1.msra.mxu0 0.0
      %1167 = vmatprep.subr.mxu0 0.0
      %1168 = vmatpush1.msra.mxu0 0.0
      %1169 = vmatprep.subr.mxu0 0.0
      %1170 = vmatpush1.msra.mxu0 0.0
      %1171 = vmatprep.subr.mxu0 0.0
      %1172 = vmatpush1.msra.mxu0 0.0
      %1173 = vmatprep.mubr.f32.mxu0 0.0
      %1174 = vmatmul.mubr.f32.gmra.mrb[0].mxu0 %v834
      %v1175 = vpop.f32.mrb[0].mxu0
      %v1176 = vadd.f32 %v819, %v1175
      %v1177 = vpop.f32.mrb[0].mxu0
      %v1178 = vadd.f32 %v819, %v1177
      %1179 = vmatprep.mubr.f32.mxu0 0.0
      %1180 = vmatmul.mubr.f32.gmra.mrb[0].mxu0 %v836
      %v1181 = vpop.f32.mrb[0].mxu0
      %v1182 = vadd.f32 %v823, %v1181
      %v1183 = vpop.f32.mrb[0].mxu0
      %v1184 = vadd.f32 %v823, %v1183
      %1185 = vmatprep.mubr.f32.mxu0 0.0
      %1186 = vmatmul.mubr.f32.gmra.mrb[0].mxu0 %v838
      %v1187 = vpop.f32.mrb[0].mxu0
      %v1188 = vadd.f32 %v827, %v1187
      %v1189 = vpop.f32.mrb[0].mxu0
      %v1190 = vadd.f32 %v827, %v1189
      %1191 = vmatprep.mubr.f32.mxu0 0.0
      %1192 = vmatmul.mubr.f32.gmra.mrb[0].mxu0 %v840
      %v1193 = vpop.f32.mrb[0].mxu0
      %v1194 = vadd.f32 %v831, %v1193
      %v1195 = vpop.f32.mrb[0].mxu0
      %v1196 = vadd.f32 %v831, %v1195
      %1197 = vdwg.mxu0
      %1198 = vmatprep.subr.mxu0 %v762
      %1199 = vmatpush1.msra.mxu0 %v761
      %1200 = vmatprep.subr.mxu0 %v778
      %1201 = vmatpush1.msra.mxu0 %v777
      %1202 = vmatprep.subr.mxu0 %v794
      %1203 = vmatpush1.msra.mxu0 %v793
      %1204 = vmatprep.subr.mxu0 %v810
      %1205 = vmatpush1.msra.mxu0 %v809
      %1206 = vmatprep.subr.mxu0 0.0
      %1207 = vmatpush1.msra.mxu0 0.0
      %1208 = vmatprep.subr.mxu0 0.0
      %1209 = vmatpush1.msra.mxu0 0.0
      %1210 = vmatprep.subr.mxu0 0.0
      %1211 = vmatpush1.msra.mxu0 0.0
      %1212 = vmatprep.subr.mxu0 0.0
      %1213 = vmatpush1.msra.mxu0 0.0
      %1214 = vmatprep.subr.mxu0 0.0
      %1215 = vmatpush1.msra.mxu0 0.0
      %1216 = vmatprep.subr.mxu0 0.0
      %1217 = vmatpush1.msra.mxu0 0.0
      %1218 = vmatprep.subr.mxu0 0.0
      %1219 = vmatpush1.msra.mxu0 0.0
      %1220 = vmatprep.subr.mxu0 0.0
      %1221 = vmatpush1.msra.mxu0 0.0
      %1222 = vmatprep.subr.mxu0 0.0
      %1223 = vmatpush1.msra.mxu0 0.0
      %1224 = vmatprep.subr.mxu0 0.0
      %1225 = vmatpush1.msra.mxu0 0.0
      %1226 = vmatprep.subr.mxu0 0.0
      %1227 = vmatpush1.msra.mxu0 0.0
      %1228 = vmatprep.subr.mxu0 0.0
      %1229 = vmatpush1.msra.mxu0 0.0
      %1230 = vmatprep.subr.mxu0 0.0
      %1231 = vmatpush1.msra.mxu0 0.0
      %1232 = vmatprep.subr.mxu0 0.0
      %1233 = vmatpush1.msra.mxu0 0.0
      %1234 = vmatprep.subr.mxu0 0.0
      %1235 = vmatpush1.msra.mxu0 0.0
      %1236 = vmatprep.subr.mxu0 0.0
      %1237 = vmatpush1.msra.mxu0 0.0
      %1238 = vmatprep.subr.mxu0 0.0
      %1239 = vmatpush1.msra.mxu0 0.0
      %1240 = vmatprep.subr.mxu0 0.0
      %1241 = vmatpush1.msra.mxu0 0.0
      %1242 = vmatprep.subr.mxu0 0.0
      %1243 = vmatpush1.msra.mxu0 0.0
      %1244 = vmatprep.subr.mxu0 0.0
      %1245 = vmatpush1.msra.mxu0 0.0
      %1246 = vmatprep.subr.mxu0 0.0
      %1247 = vmatpush1.msra.mxu0 0.0
      %1248 = vmatprep.subr.mxu0 0.0
      %1249 = vmatpush1.msra.mxu0 0.0
      %1250 = vmatprep.subr.mxu0 0.0
      %1251 = vmatpush1.msra.mxu0 0.0
      %1252 = vmatprep.subr.mxu0 0.0
      %1253 = vmatpush1.msra.mxu0 0.0
      %1254 = vmatprep.subr.mxu0 0.0
      %1255 = vmatpush1.msra.mxu0 0.0
      %1256 = vmatprep.subr.mxu0 0.0
      %1257 = vmatpush1.msra.mxu0 0.0
      %1258 = vmatprep.subr.mxu0 0.0
      %1259 = vmatpush1.msra.mxu0 0.0
      %1260 = vmatprep.subr.mxu0 0.0
      %1261 = vmatpush1.msra.mxu0 0.0
      %1262 = vmatprep.mubr.f32.mxu0 0.0
      %1263 = vmatmul.mubr.f32.gmra.mrb[0].mxu0 %v834
      %v1264 = vpop.f32.mrb[0].mxu0
      %v1265 = vadd.f32 %v819, %v1264
      %v1266 = vpop.f32.mrb[0].mxu0
      %v1267 = vadd.f32 %v819, %v1266
      %1268 = vmatprep.mubr.f32.mxu0 0.0
      %1269 = vmatmul.mubr.f32.gmra.mrb[0].mxu0 %v836
      %v1270 = vpop.f32.mrb[0].mxu0
      %v1271 = vadd.f32 %v823, %v1270
      %v1272 = vpop.f32.mrb[0].mxu0
      %v1273 = vadd.f32 %v823, %v1272
      %1274 = vmatprep.mubr.f32.mxu0 0.0
      %1275 = vmatmul.mubr.f32.gmra.mrb[0].mxu0 %v838
      %v1276 = vpop.f32.mrb[0].mxu0
      %v1277 = vadd.f32 %v827, %v1276
      %v1278 = vpop.f32.mrb[0].mxu0
      %v1279 = vadd.f32 %v827, %v1278
      %1280 = vmatprep.mubr.f32.mxu0 0.0
      %1281 = vmatmul.mubr.f32.gmra.mrb[0].mxu0 %v840
      %v1282 = vpop.f32.mrb[0].mxu0
      %v1283 = vadd.f32 %v831, %v1282
      %v1284 = vpop.f32.mrb[0].mxu0
      %v1285 = vadd.f32 %v831, %v1284
      %1286 = vdwg.mxu0
      %1287 = vmatprep.subr.mxu0 %v764
      %1288 = vmatpush1.msra.mxu0 %v763
      %1289 = vmatprep.subr.mxu0 %v780
      %1290 = vmatpush1.msra.mxu0 %v779
      %1291 = vmatprep.subr.mxu0 %v796
      %1292 = vmatpush1.msra.mxu0 %v795
      %1293 = vmatprep.subr.mxu0 %v812
      %1294 = vmatpush1.msra.mxu0 %v811
      %1295 = vmatprep.subr.mxu0 0.0
      %1296 = vmatpush1.msra.mxu0 0.0
      %1297 = vmatprep.subr.mxu0 0.0
      %1298 = vmatpush1.msra.mxu0 0.0
      %1299 = vmatprep.subr.mxu0 0.0
      %1300 = vmatpush1.msra.mxu0 0.0
      %1301 = vmatprep.subr.mxu0 0.0
      %1302 = vmatpush1.msra.mxu0 0.0
      %1303 = vmatprep.subr.mxu0 0.0
      %1304 = vmatpush1.msra.mxu0 0.0
      %1305 = vmatprep.subr.mxu0 0.0
      %1306 = vmatpush1.msra.mxu0 0.0
      %1307 = vmatprep.subr.mxu0 0.0
      %1308 = vmatpush1.msra.mxu0 0.0
      %1309 = vmatprep.subr.mxu0 0.0
      %1310 = vmatpush1.msra.mxu0 0.0
      %1311 = vmatprep.subr.mxu0 0.0
      %1312 = vmatpush1.msra.mxu0 0.0
      %1313 = vmatprep.subr.mxu0 0.0
      %1314 = vmatpush1.msra.mxu0 0.0
      %1315 = vmatprep.subr.mxu0 0.0
      %1316 = vmatpush1.msra.mxu0 0.0
      %1317 = vmatprep.subr.mxu0 0.0
      %1318 = vmatpush1.msra.mxu0 0.0
      %1319 = vmatprep.subr.mxu0 0.0
      %1320 = vmatpush1.msra.mxu0 0.0
      %1321 = vmatprep.subr.mxu0 0.0
      %1322 = vmatpush1.msra.mxu0 0.0
      %1323 = vmatprep.subr.mxu0 0.0
      %1324 = vmatpush1.msra.mxu0 0.0
      %1325 = vmatprep.subr.mxu0 0.0
      %1326 = vmatpush1.msra.mxu0 0.0
      %1327 = vmatprep.subr.mxu0 0.0
      %1328 = vmatpush1.msra.mxu0 0.0
      %1329 = vmatprep.subr.mxu0 0.0
      %1330 = vmatpush1.msra.mxu0 0.0
      %1331 = vmatprep.subr.mxu0 0.0
      %1332 = vmatpush1.msra.mxu0 0.0
      %1333 = vmatprep.subr.mxu0 0.0
      %1334 = vmatpush1.msra.mxu0 0.0
      %1335 = vmatprep.subr.mxu0 0.0
      %1336 = vmatpush1.msra.mxu0 0.0
      %1337 = vmatprep.subr.mxu0 0.0
      %1338 = vmatpush1.msra.mxu0 0.0
      %1339 = vmatprep.subr.mxu0 0.0
      %1340 = vmatpush1.msra.mxu0 0.0
      %1341 = vmatprep.subr.mxu0 0.0
      %1342 = vmatpush1.msra.mxu0 0.0
      %1343 = vmatprep.subr.mxu0 0.0
      %1344 = vmatpush1.msra.mxu0 0.0
      %1345 = vmatprep.subr.mxu0 0.0
      %1346 = vmatpush1.msra.mxu0 0.0
      %1347 = vmatprep.subr.mxu0 0.0
      %1348 = vmatpush1.msra.mxu0 0.0
      %1349 = vmatprep.subr.mxu0 0.0
      %1350 = vmatpush1.msra.mxu0 0.0
      %1351 = vmatprep.mubr.f32.mxu0 0.0
      %1352 = vmatmul.mubr.f32.gmra.mrb[0].mxu0 %v834
      %v1353 = vpop.f32.mrb[0].mxu0
      %v1354 = vadd.f32 %v819, %v1353
      %v1355 = vpop.f32.mrb[0].mxu0
      %v1356 = vadd.f32 %v819, %v1355
      %1357 = vmatprep.mubr.f32.mxu0 0.0
      %1358 = vmatmul.mubr.f32.gmra.mrb[0].mxu0 %v836
      %v1359 = vpop.f32.mrb[0].mxu0
      %v1360 = vadd.f32 %v823, %v1359
      %v1361 = vpop.f32.mrb[0].mxu0
      %v1362 = vadd.f32 %v823, %v1361
      %1363 = vmatprep.mubr.f32.mxu0 0.0
      %1364 = vmatmul.mubr.f32.gmra.mrb[0].mxu0 %v838
      %v1365 = vpop.f32.mrb[0].mxu0
      %v1366 = vadd.f32 %v827, %v1365
      %v1367 = vpop.f32.mrb[0].mxu0
      %v1368 = vadd.f32 %v827, %v1367
      %1369 = vmatprep.mubr.f32.mxu0 0.0
      %1370 = vmatmul.mubr.f32.gmra.mrb[0].mxu0 %v840
      %v1371 = vpop.f32.mrb[0].mxu0
      %v1372 = vadd.f32 %v831, %v1371
      %v1373 = vpop.f32.mrb[0].mxu0
      %v1374 = vadd.f32 %v831, %v1373
      %1375 = vdwg.mxu0
      %1376 = vmatprep.subr.mxu0 %v766
      %1377 = vmatpush1.msra.mxu0 %v765
      %1378 = vmatprep.subr.mxu0 %v782
      %1379 = vmatpush1.msra.mxu0 %v781
      %1380 = vmatprep.subr.mxu0 %v798
      %1381 = vmatpush1.msra.mxu0 %v797
      %1382 = vmatprep.subr.mxu0 %v814
      %1383 = vmatpush1.msra.mxu0 %v813
      %1384 = vmatprep.subr.mxu0 0.0
      %1385 = vmatpush1.msra.mxu0 0.0
      %1386 = vmatprep.subr.mxu0 0.0
      %1387 = vmatpush1.msra.mxu0 0.0
      %1388 = vmatprep.subr.mxu0 0.0
      %1389 = vmatpush1.msra.mxu0 0.0
      %1390 = vmatprep.subr.mxu0 0.0
      %1391 = vmatpush1.msra.mxu0 0.0
      %1392 = vmatprep.subr.mxu0 0.0
      %1393 = vmatpush1.msra.mxu0 0.0
      %1394 = vmatprep.subr.mxu0 0.0
      %1395 = vmatpush1.msra.mxu0 0.0
      %1396 = vmatprep.subr.mxu0 0.0
      %1397 = vmatpush1.msra.mxu0 0.0
      %1398 = vmatprep.subr.mxu0 0.0
      %1399 = vmatpush1.msra.mxu0 0.0
      %1400 = vmatprep.subr.mxu0 0.0
      %1401 = vmatpush1.msra.mxu0 0.0
      %1402 = vmatprep.subr.mxu0 0.0
      %1403 = vmatpush1.msra.mxu0 0.0
      %1404 = vmatprep.subr.mxu0 0.0
      %1405 = vmatpush1.msra.mxu0 0.0
      %1406 = vmatprep.subr.mxu0 0.0
      %1407 = vmatpush1.msra.mxu0 0.0
      %1408 = vmatprep.subr.mxu0 0.0
      %1409 = vmatpush1.msra.mxu0 0.0
      %1410 = vmatprep.subr.mxu0 0.0
      %1411 = vmatpush1.msra.mxu0 0.0
      %1412 = vmatprep.subr.mxu0 0.0
      %1413 = vmatpush1.msra.mxu0 0.0
      %1414 = vmatprep.subr.mxu0 0.0
      %1415 = vmatpush1.msra.mxu0 0.0
      %1416 = vmatprep.subr.mxu0 0.0
      %1417 = vmatpush1.msra.mxu0 0.0
      %1418 = vmatprep.subr.mxu0 0.0
      %1419 = vmatpush1.msra.mxu0 0.0
      %1420 = vmatprep.subr.mxu0 0.0
      %1421 = vmatpush1.msra.mxu0 0.0
      %1422 = vmatprep.subr.mxu0 0.0
      %1423 = vmatpush1.msra.mxu0 0.0
      %1424 = vmatprep.subr.mxu0 0.0
      %1425 = vmatpush1.msra.mxu0 0.0
      %1426 = vmatprep.subr.mxu0 0.0
      %1427 = vmatpush1.msra.mxu0 0.0
      %1428 = vmatprep.subr.mxu0 0.0
      %1429 = vmatpush1.msra.mxu0 0.0
      %1430 = vmatprep.subr.mxu0 0.0
      %1431 = vmatpush1.msra.mxu0 0.0
      %1432 = vmatprep.subr.mxu0 0.0
      %1433 = vmatpush1.msra.mxu0 0.0
      %1434 = vmatprep.subr.mxu0 0.0
      %1435 = vmatpush1.msra.mxu0 0.0
      %1436 = vmatprep.subr.mxu0 0.0
      %1437 = vmatpush1.msra.mxu0 0.0
      %1438 = vmatprep.subr.mxu0 0.0
      %1439 = vmatpush1.msra.mxu0 0.0
      %1440 = vmatprep.mubr.f32.mxu0 0.0
      %1441 = vmatmul.mubr.f32.gmra.mrb[0].mxu0 %v834
      %v1442 = vpop.f32.mrb[0].mxu0
      %v1443 = vadd.f32 %v819, %v1442
      %v1444 = vpop.f32.mrb[0].mxu0
      %v1445 = vadd.f32 %v819, %v1444
      %1446 = vmatprep.mubr.f32.mxu0 0.0
      %1447 = vmatmul.mubr.f32.gmra.mrb[0].mxu0 %v836
      %v1448 = vpop.f32.mrb[0].mxu0
      %v1449 = vadd.f32 %v823, %v1448
      %v1450 = vpop.f32.mrb[0].mxu0
      %v1451 = vadd.f32 %v823, %v1450
      %1452 = vmatprep.mubr.f32.mxu0 0.0
      %1453 = vmatmul.mubr.f32.gmra.mrb[0].mxu0 %v838
      %v1454 = vpop.f32.mrb[0].mxu0
      %v1455 = vadd.f32 %v827, %v1454
      %v1456 = vpop.f32.mrb[0].mxu0
      %v1457 = vadd.f32 %v827, %v1456
      %1458 = vmatprep.mubr.f32.mxu0 0.0
      %1459 = vmatmul.mubr.f32.gmra.mrb[0].mxu0 %v840
      %v1460 = vpop.f32.mrb[0].mxu0
      %v1461 = vadd.f32 %v831, %v1460
      %v1462 = vpop.f32.mrb[0].mxu0
      %v1463 = vadd.f32 %v831, %v1462
      %1464 = vdwg.mxu0
      %1465 = vmatprep.subr.mxu0 %v768
      %1466 = vmatpush1.msra.mxu0 %v767
      %1467 = vmatprep.subr.mxu0 %v784
      %1468 = vmatpush1.msra.mxu0 %v783
      %1469 = vmatprep.subr.mxu0 %v800
      %1470 = vmatpush1.msra.mxu0 %v799
      %1471 = vmatprep.subr.mxu0 %v816
      %1472 = vmatpush1.msra.mxu0 %v815
      %1473 = vmatprep.subr.mxu0 0.0
      %1474 = vmatpush1.msra.mxu0 0.0
      %1475 = vmatprep.subr.mxu0 0.0
      %1476 = vmatpush1.msra.mxu0 0.0
      %1477 = vmatprep.subr.mxu0 0.0
      %1478 = vmatpush1.msra.mxu0 0.0
      %1479 = vmatprep.subr.mxu0 0.0
      %1480 = vmatpush1.msra.mxu0 0.0
      %1481 = vmatprep.subr.mxu0 0.0
      %1482 = vmatpush1.msra.mxu0 0.0
      %1483 = vmatprep.subr.mxu0 0.0
      %1484 = vmatpush1.msra.mxu0 0.0
      %1485 = vmatprep.subr.mxu0 0.0
      %1486 = vmatpush1.msra.mxu0 0.0
      %1487 = vmatprep.subr.mxu0 0.0
      %1488 = vmatpush1.msra.mxu0 0.0
      %1489 = vmatprep.subr.mxu0 0.0
      %1490 = vmatpush1.msra.mxu0 0.0
      %1491 = vmatprep.subr.mxu0 0.0
      %1492 = vmatpush1.msra.mxu0 0.0
      %1493 = vmatprep.subr.mxu0 0.0
      %1494 = vmatpush1.msra.mxu0 0.0
      %1495 = vmatprep.subr.mxu0 0.0
      %1496 = vmatpush1.msra.mxu0 0.0
      %1497 = vmatprep.subr.mxu0 0.0
      %1498 = vmatpush1.msra.mxu0 0.0
      %1499 = vmatprep.subr.mxu0 0.0
      %1500 = vmatpush1.msra.mxu0 0.0
      %1501 = vmatprep.subr.mxu0 0.0
      %1502 = vmatpush1.msra.mxu0 0.0
      %1503 = vmatprep.subr.mxu0 0.0
      %1504 = vmatpush1.msra.mxu0 0.0
      %1505 = vmatprep.subr.mxu0 0.0
      %1506 = vmatpush1.msra.mxu0 0.0
      %1507 = vmatprep.subr.mxu0 0.0
      %1508 = vmatpush1.msra.mxu0 0.0
      %1509 = vmatprep.subr.mxu0 0.0
      %1510 = vmatpush1.msra.mxu0 0.0
      %1511 = vmatprep.subr.mxu0 0.0
      %1512 = vmatpush1.msra.mxu0 0.0
      %1513 = vmatprep.subr.mxu0 0.0
      %1514 = vmatpush1.msra.mxu0 0.0
      %1515 = vmatprep.subr.mxu0 0.0
      %1516 = vmatpush1.msra.mxu0 0.0
      %1517 = vmatprep.subr.mxu0 0.0
      %1518 = vmatpush1.msra.mxu0 0.0
      %1519 = vmatprep.subr.mxu0 0.0
      %1520 = vmatpush1.msra.mxu0 0.0
      %1521 = vmatprep.subr.mxu0 0.0
      %1522 = vmatpush1.msra.mxu0 0.0
      %1523 = vmatprep.subr.mxu0 0.0
      %1524 = vmatpush1.msra.mxu0 0.0
      %1525 = vmatprep.subr.mxu0 0.0
      %1526 = vmatpush1.msra.mxu0 0.0
      %1527 = vmatprep.subr.mxu0 0.0
      %1528 = vmatpush1.msra.mxu0 0.0
      %1529 = vmatprep.mubr.f32.mxu0 0.0
      %1530 = vmatmul.mubr.f32.gmra.mrb[0].mxu0 %v834
      %v1531 = vpop.f32.mrb[0].mxu0
      %v1532 = vadd.f32 %v819, %v1531
      %v1533 = vpop.f32.mrb[0].mxu0
      %v1534 = vadd.f32 %v819, %v1533
      %1535 = vmatprep.mubr.f32.mxu0 0.0
      %1536 = vmatmul.mubr.f32.gmra.mrb[0].mxu0 %v836
      %v1537 = vpop.f32.mrb[0].mxu0
      %v1538 = vadd.f32 %v823, %v1537
      %v1539 = vpop.f32.mrb[0].mxu0
      %v1540 = vadd.f32 %v823, %v1539
      %1541 = vmatprep.mubr.f32.mxu0 0.0
      %1542 = vmatmul.mubr.f32.gmra.mrb[0].mxu0 %v838
      %v1543 = vpop.f32.mrb[0].mxu0
      %v1544 = vadd.f32 %v827, %v1543
      %v1545 = vpop.f32.mrb[0].mxu0
      %v1546 = vadd.f32 %v827, %v1545
      %1547 = vmatprep.mubr.f32.mxu0 0.0
      %1548 = vmatmul.mubr.f32.gmra.mrb[0].mxu0 %v840
      %v1549 = vpop.f32.mrb[0].mxu0
      %v1550 = vadd.f32 %v831, %v1549
      %v1551 = vpop.f32.mrb[0].mxu0
      %v1552 = vadd.f32 %v831, %v1551
      %1553 = vdwg.mxu0
      %v1554 = vtanh.pop %v909
      %v1555 = vtanh.pop %v911
      %v1556 = vtanh.pop %v998
      %v1557 = vtanh.pop %v1000
      %v1558 = vtanh.pop %v1087
      %v1559 = vtanh.pop %v1089
      %v1560 = vtanh.pop %v1176
      %v1561 = vtanh.pop %v1178
      %v1562 = vtanh.pop %v1265
      %v1563 = vtanh.pop %v1267
      %v1564 = vtanh.pop %v1354
      %v1565 = vtanh.pop %v1356
      %v1566 = vtanh.pop %v1443
      %v1567 = vtanh.pop %v1445
      %v1568 = vtanh.pop %v1532
      %v1569 = vtanh.pop %v1534
      %v1570 = vtanh.pop %v915
      %v1571 = vtanh.pop %v917
      %v1572 = vtanh.pop %v1004
      %v1573 = vtanh.pop %v1006
      %v1574 = vtanh.pop %v1093
      %v1575 = vtanh.pop %v1095
      %v1576 = vtanh.pop %v1182
      %v1577 = vtanh.pop %v1184
      %v1578 = vtanh.pop %v1271
      %v1579 = vtanh.pop %v1273
      %v1580 = vtanh.pop %v1360
      %v1581 = vtanh.pop %v1362
      %v1582 = vtanh.pop %v1449
      %v1583 = vtanh.pop %v1451
      %v1584 = vtanh.pop %v1538
      %v1585 = vtanh.pop %v1540
      %v1586 = vtanh.pop %v921
      %v1587 = vtanh.pop %v923
      %v1588 = vtanh.pop %v1010
      %v1589 = vtanh.pop %v1012
      %v1590 = vtanh.pop %v1099
      %v1591 = vtanh.pop %v1101
      %v1592 = vtanh.pop %v1188
      %v1593 = vtanh.pop %v1190
      %v1594 = vtanh.pop %v1277
      %v1595 = vtanh.pop %v1279
      %v1596 = vtanh.pop %v1366
      %v1597 = vtanh.pop %v1368
      %v1598 = vtanh.pop %v1455
      %v1599 = vtanh.pop %v1457
      %v1600 = vtanh.pop %v1544
      %v1601 = vtanh.pop %v1546
      %v1602 = vtanh.pop %v927
      %v1603 = vtanh.pop %v929
      %v1604 = vtanh.pop %v1016
      %v1605 = vtanh.pop %v1018
      %v1606 = vtanh.pop %v1105
      %v1607 = vtanh.pop %v1107
      %v1608 = vtanh.pop %v1194
      %v1609 = vtanh.pop %v1196
      %v1610 = vtanh.pop %v1283
      %v1611 = vtanh.pop %v1285
      %v1612 = vtanh.pop %v1372
      %v1613 = vtanh.pop %v1374
      %v1614 = vtanh.pop %v1461
      %v1615 = vtanh.pop %v1463
      %v1616 = vtanh.pop %v1550
      %v1617 = vtanh.pop %v1552
      %1618 = vset.pattern.permute.xlu0 101
      %1619 = vperm.xlu0 %1618, %v149
      %v1620 = vpop.permute.xlu0 %1619
      %1622 = vset.pattern.permute.xlu0 101
      %1623 = vperm.xlu0 %1622, %v150
      %v1624 = vpop.permute.xlu0 %1623
      %1626 = vset.pattern.permute.xlu0 101
      %1627 = vperm.xlu0 %1626, %v151
      %v1628 = vpop.permute.xlu0 %1627
      %1630 = vset.pattern.permute.xlu0 101
      %1631 = vperm.xlu0 %1630, %v152
      %v1632 = vpop.permute.xlu0 %1631
      %1634 = vrot.lane.b32.xlu0 %v149, 96
      %v1635 = vpop.permute.xlu0 %1634
      %1636 = vrot.lane.b32.xlu0 %v150, 96
      %v1637 = vpop.permute.xlu0 %1636
      %1638 = vrot.lane.b32.xlu0 %v151, 96
      %v1639 = vpop.permute.xlu0 %1638
      %1640 = vrot.lane.b32.xlu0 %v152, 96
      %v1641 = vpop.permute.xlu0 %1640
      %v1642 = vsel %vm833, %v1635, 0
      %v1644 = vsel %vm833, %v1637, 0
      %v1646 = vsel %vm833, %v1639, 0
      %v1648 = vsel %vm833, %v1641, 0
      %1650 = vmatprep.subr.mxu0 %v1555
      %1651 = vmatpush1.msra.mxu0 %v1554
      %1652 = vmatprep.subr.mxu0 %v1571
      %1653 = vmatpush1.msra.mxu0 %v1570
      %1654 = vmatprep.subr.mxu0 %v1587
      %1655 = vmatpush1.msra.mxu0 %v1586
      %1656 = vmatprep.subr.mxu0 %v1603
      %1657 = vmatpush1.msra.mxu0 %v1602
      %1658 = vmatprep.subr.mxu0 0.0
      %1659 = vmatpush1.msra.mxu0 0.0
      %1660 = vmatprep.subr.mxu0 0.0
      %1661 = vmatpush1.msra.mxu0 0.0
      %1662 = vmatprep.subr.mxu0 0.0
      %1663 = vmatpush1.msra.mxu0 0.0
      %1664 = vmatprep.subr.mxu0 0.0
      %1665 = vmatpush1.msra.mxu0 0.0
      %1666 = vmatprep.subr.mxu0 0.0
      %1667 = vmatpush1.msra.mxu0 0.0
      %1668 = vmatprep.subr.mxu0 0.0
      %1669 = vmatpush1.msra.mxu0 0.0
      %1670 = vmatprep.subr.mxu0 0.0
      %1671 = vmatpush1.msra.mxu0 0.0
      %1672 = vmatprep.subr.mxu0 0.0
      %1673 = vmatpush1.msra.mxu0 0.0
      %1674 = vmatprep.subr.mxu0 0.0
      %1675 = vmatpush1.msra.mxu0 0.0
      %1676 = vmatprep.subr.mxu0 0.0
      %1677 = vmatpush1.msra.mxu0 0.0
      %1678 = vmatprep.subr.mxu0 0.0
      %1679 = vmatpush1.msra.mxu0 0.0
      %1680 = vmatprep.subr.mxu0 0.0
      %1681 = vmatpush1.msra.mxu0 0.0
      %1682 = vmatprep.subr.mxu0 0.0
      %1683 = vmatpush1.msra.mxu0 0.0
      %1684 = vmatprep.subr.mxu0 0.0
      %1685 = vmatpush1.msra.mxu0 0.0
      %1686 = vmatprep.subr.mxu0 0.0
      %1687 = vmatpush1.msra.mxu0 0.0
      %1688 = vmatprep.subr.mxu0 0.0
      %1689 = vmatpush1.msra.mxu0 0.0
      %1690 = vmatprep.subr.mxu0 0.0
      %1691 = vmatpush1.msra.mxu0 0.0
      %1692 = vmatprep.subr.mxu0 0.0
      %1693 = vmatpush1.msra.mxu0 0.0
      %1694 = vmatprep.subr.mxu0 0.0
      %1695 = vmatpush1.msra.mxu0 0.0
      %1696 = vmatprep.subr.mxu0 0.0
      %1697 = vmatpush1.msra.mxu0 0.0
      %1698 = vmatprep.subr.mxu0 0.0
      %1699 = vmatpush1.msra.mxu0 0.0
      %1700 = vmatprep.subr.mxu0 0.0
      %1701 = vmatpush1.msra.mxu0 0.0
      %1702 = vmatprep.subr.mxu0 0.0
      %1703 = vmatpush1.msra.mxu0 0.0
      %1704 = vmatprep.subr.mxu0 0.0
      %1705 = vmatpush1.msra.mxu0 0.0
      %1706 = vmatprep.subr.mxu0 0.0
      %1707 = vmatpush1.msra.mxu0 0.0
      %1708 = vmatprep.subr.mxu0 0.0
      %1709 = vmatpush1.msra.mxu0 0.0
      %1710 = vmatprep.subr.mxu0 0.0
      %1711 = vmatpush1.msra.mxu0 0.0
      %1712 = vmatprep.subr.mxu0 0.0
      %1713 = vmatpush1.msra.mxu0 0.0
      %1714 = vmatprep.mubr.f32.mxu0 0.0
      %1715 = vmatmul.mubr.f32.gmra.mrb[0].mxu0 %v1642
      %v1716 = vpop.f32.mrb[0].mxu0
      %v1717 = vadd.f32 %v1620, %v1716
      %v1718 = vpop.f32.mrb[0].mxu0
      %v1719 = vadd.f32 %v1620, %v1718
      %1720 = vmatprep.mubr.f32.mxu0 0.0
      %1721 = vmatmul.mubr.f32.gmra.mrb[0].mxu0 %v1644
      %v1722 = vpop.f32.mrb[0].mxu0
      %v1723 = vadd.f32 %v1624, %v1722
      %v1724 = vpop.f32.mrb[0].mxu0
      %v1725 = vadd.f32 %v1624, %v1724
      %1726 = vmatprep.mubr.f32.mxu0 0.0
      %1727 = vmatmul.mubr.f32.gmra.mrb[0].mxu0 %v1646
      %v1728 = vpop.f32.mrb[0].mxu0
      %v1729 = vadd.f32 %v1628, %v1728
      %v1730 = vpop.f32.mrb[0].mxu0
      %v1731 = vadd.f32 %v1628, %v1730
      %1732 = vmatprep.mubr.f32.mxu0 0.0
      %1733 = vmatmul.mubr.f32.gmra.mrb[0].mxu0 %v1648
      %v1734 = vpop.f32.mrb[0].mxu0
      %v1735 = vadd.f32 %v1632, %v1734
      %v1736 = vpop.f32.mrb[0].mxu0
      %v1737 = vadd.f32 %v1632, %v1736
      %1738 = vdwg.mxu0
      %1739 = vmatprep.subr.mxu0 %v1557
      %1740 = vmatpush1.msra.mxu0 %v1556
      %1741 = vmatprep.subr.mxu0 %v1573
      %1742 = vmatpush1.msra.mxu0 %v1572
      %1743 = vmatprep.subr.mxu0 %v1589
      %1744 = vmatpush1.msra.mxu0 %v1588
      %1745 = vmatprep.subr.mxu0 %v1605
      %1746 = vmatpush1.msra.mxu0 %v1604
      %1747 = vmatprep.subr.mxu0 0.0
      %1748 = vmatpush1.msra.mxu0 0.0
      %1749 = vmatprep.subr.mxu0 0.0
      %1750 = vmatpush1.msra.mxu0 0.0
      %1751 = vmatprep.subr.mxu0 0.0
      %1752 = vmatpush1.msra.mxu0 0.0
      %1753 = vmatprep.subr.mxu0 0.0
      %1754 = vmatpush1.msra.mxu0 0.0
      %1755 = vmatprep.subr.mxu0 0.0
      %1756 = vmatpush1.msra.mxu0 0.0
      %1757 = vmatprep.subr.mxu0 0.0
      %1758 = vmatpush1.msra.mxu0 0.0
      %1759 = vmatprep.subr.mxu0 0.0
      %1760 = vmatpush1.msra.mxu0 0.0
      %1761 = vmatprep.subr.mxu0 0.0
      %1762 = vmatpush1.msra.mxu0 0.0
      %1763 = vmatprep.subr.mxu0 0.0
      %1764 = vmatpush1.msra.mxu0 0.0
      %1765 = vmatprep.subr.mxu0 0.0
      %1766 = vmatpush1.msra.mxu0 0.0
      %1767 = vmatprep.subr.mxu0 0.0
      %1768 = vmatpush1.msra.mxu0 0.0
      %1769 = vmatprep.subr.mxu0 0.0
      %1770 = vmatpush1.msra.mxu0 0.0
      %1771 = vmatprep.subr.mxu0 0.0
      %1772 = vmatpush1.msra.mxu0 0.0
      %1773 = vmatprep.subr.mxu0 0.0
      %1774 = vmatpush1.msra.mxu0 0.0
      %1775 = vmatprep.subr.mxu0 0.0
      %1776 = vmatpush1.msra.mxu0 0.0
      %1777 = vmatprep.subr.mxu0 0.0
      %1778 = vmatpush1.msra.mxu0 0.0
      %1779 = vmatprep.subr.mxu0 0.0
      %1780 = vmatpush1.msra.mxu0 0.0
      %1781 = vmatprep.subr.mxu0 0.0
      %1782 = vmatpush1.msra.mxu0 0.0
      %1783 = vmatprep.subr.mxu0 0.0
      %1784 = vmatpush1.msra.mxu0 0.0
      %1785 = vmatprep.subr.mxu0 0.0
      %1786 = vmatpush1.msra.mxu0 0.0
      %1787 = vmatprep.subr.mxu0 0.0
      %1788 = vmatpush1.msra.mxu0 0.0
      %1789 = vmatprep.subr.mxu0 0.0
      %1790 = vmatpush1.msra.mxu0 0.0
      %1791 = vmatprep.subr.mxu0 0.0
      %1792 = vmatpush1.msra.mxu0 0.0
      %1793 = vmatprep.subr.mxu0 0.0
      %1794 = vmatpush1.msra.mxu0 0.0
      %1795 = vmatprep.subr.mxu0 0.0
      %1796 = vmatpush1.msra.mxu0 0.0
      %1797 = vmatprep.subr.mxu0 0.0
      %1798 = vmatpush1.msra.mxu0 0.0
      %1799 = vmatprep.subr.mxu0 0.0
      %1800 = vmatpush1.msra.mxu0 0.0
      %1801 = vmatprep.subr.mxu0 0.0
      %1802 = vmatpush1.msra.mxu0 0.0
      %1803 = vmatprep.mubr.f32.mxu0 0.0
      %1804 = vmatmul.mubr.f32.gmra.mrb[0].mxu0 %v1642
      %v1805 = vpop.f32.mrb[0].mxu0
      %v1806 = vadd.f32 %v1620, %v1805
      %v1807 = vpop.f32.mrb[0].mxu0
      %v1808 = vadd.f32 %v1620, %v1807
      %1809 = vmatprep.mubr.f32.mxu0 0.0
      %1810 = vmatmul.mubr.f32.gmra.mrb[0].mxu0 %v1644
      %v1811 = vpop.f32.mrb[0].mxu0
      %v1812 = vadd.f32 %v1624, %v1811
      %v1813 = vpop.f32.mrb[0].mxu0
      %v1814 = vadd.f32 %v1624, %v1813
      %1815 = vmatprep.mubr.f32.mxu0 0.0
      %1816 = vmatmul.mubr.f32.gmra.mrb[0].mxu0 %v1646
      %v1817 = vpop.f32.mrb[0].mxu0
      %v1818 = vadd.f32 %v1628, %v1817
      %v1819 = vpop.f32.mrb[0].mxu0
      %v1820 = vadd.f32 %v1628, %v1819
      %1821 = vmatprep.mubr.f32.mxu0 0.0
      %1822 = vmatmul.mubr.f32.gmra.mrb[0].mxu0 %v1648
      %v1823 = vpop.f32.mrb[0].mxu0
      %v1824 = vadd.f32 %v1632, %v1823
      %v1825 = vpop.f32.mrb[0].mxu0
      %v1826 = vadd.f32 %v1632, %v1825
      %1827 = vdwg.mxu0
      %1828 = vmatprep.subr.mxu0 %v1559
      %1829 = vmatpush1.msra.mxu0 %v1558
      %1830 = vmatprep.subr.mxu0 %v1575
      %1831 = vmatpush1.msra.mxu0 %v1574
      %1832 = vmatprep.subr.mxu0 %v1591
      %1833 = vmatpush1.msra.mxu0 %v1590
      %1834 = vmatprep.subr.mxu0 %v1607
      %1835 = vmatpush1.msra.mxu0 %v1606
      %1836 = vmatprep.subr.mxu0 0.0
      %1837 = vmatpush1.msra.mxu0 0.0
      %1838 = vmatprep.subr.mxu0 0.0
      %1839 = vmatpush1.msra.mxu0 0.0
      %1840 = vmatprep.subr.mxu0 0.0
      %1841 = vmatpush1.msra.mxu0 0.0
      %1842 = vmatprep.subr.mxu0 0.0
      %1843 = vmatpush1.msra.mxu0 0.0
      %1844 = vmatprep.subr.mxu0 0.0
      %1845 = vmatpush1.msra.mxu0 0.0
      %1846 = vmatprep.subr.mxu0 0.0
      %1847 = vmatpush1.msra.mxu0 0.0
      %1848 = vmatprep.subr.mxu0 0.0
      %1849 = vmatpush1.msra.mxu0 0.0
      %1850 = vmatprep.subr.mxu0 0.0
      %1851 = vmatpush1.msra.mxu0 0.0
      %1852 = vmatprep.subr.mxu0 0.0
      %1853 = vmatpush1.msra.mxu0 0.0
      %1854 = vmatprep.subr.mxu0 0.0
      %1855 = vmatpush1.msra.mxu0 0.0
      %1856 = vmatprep.subr.mxu0 0.0
      %1857 = vmatpush1.msra.mxu0 0.0
      %1858 = vmatprep.subr.mxu0 0.0
      %1859 = vmatpush1.msra.mxu0 0.0
      %1860 = vmatprep.subr.mxu0 0.0
      %1861 = vmatpush1.msra.mxu0 0.0
      %1862 = vmatprep.subr.mxu0 0.0
      %1863 = vmatpush1.msra.mxu0 0.0
      %1864 = vmatprep.subr.mxu0 0.0
      %1865 = vmatpush1.msra.mxu0 0.0
      %1866 = vmatprep.subr.mxu0 0.0
      %1867 = vmatpush1.msra.mxu0 0.0
      %1868 = vmatprep.subr.mxu0 0.0
      %1869 = vmatpush1.msra.mxu0 0.0
      %1870 = vmatprep.subr.mxu0 0.0
      %1871 = vmatpush1.msra.mxu0 0.0
      %1872 = vmatprep.subr.mxu0 0.0
      %1873 = vmatpush1.msra.mxu0 0.0
      %1874 = vmatprep.subr.mxu0 0.0
      %1875 = vmatpush1.msra.mxu0 0.0
      %1876 = vmatprep.subr.mxu0 0.0
      %1877 = vmatpush1.msra.mxu0 0.0
      %1878 = vmatprep.subr.mxu0 0.0
      %1879 = vmatpush1.msra.mxu0 0.0
      %1880 = vmatprep.subr.mxu0 0.0
      %1881 = vmatpush1.msra.mxu0 0.0
      %1882 = vmatprep.subr.mxu0 0.0
      %1883 = vmatpush1.msra.mxu0 0.0
      %1884 = vmatprep.subr.mxu0 0.0
      %1885 = vmatpush1.msra.mxu0 0.0
      %1886 = vmatprep.subr.mxu0 0.0
      %1887 = vmatpush1.msra.mxu0 0.0
      %1888 = vmatprep.subr.mxu0 0.0
      %1889 = vmatpush1.msra.mxu0 0.0
      %1890 = vmatprep.subr.mxu0 0.0
      %1891 = vmatpush1.msra.mxu0 0.0
      %1892 = vmatprep.mubr.f32.mxu0 0.0
      %1893 = vmatmul.mubr.f32.gmra.mrb[0].mxu0 %v1642
      %v1894 = vpop.f32.mrb[0].mxu0
      %v1895 = vadd.f32 %v1620, %v1894
      %v1896 = vpop.f32.mrb[0].mxu0
      %v1897 = vadd.f32 %v1620, %v1896
      %1898 = vmatprep.mubr.f32.mxu0 0.0
      %1899 = vmatmul.mubr.f32.gmra.mrb[0].mxu0 %v1644
      %v1900 = vpop.f32.mrb[0].mxu0
      %v1901 = vadd.f32 %v1624, %v1900
      %v1902 = vpop.f32.mrb[0].mxu0
      %v1903 = vadd.f32 %v1624, %v1902
      %1904 = vmatprep.mubr.f32.mxu0 0.0
      %1905 = vmatmul.mubr.f32.gmra.mrb[0].mxu0 %v1646
      %v1906 = vpop.f32.mrb[0].mxu0
      %v1907 = vadd.f32 %v1628, %v1906
      %v1908 = vpop.f32.mrb[0].mxu0
      %v1909 = vadd.f32 %v1628, %v1908
      %1910 = vmatprep.mubr.f32.mxu0 0.0
      %1911 = vmatmul.mubr.f32.gmra.mrb[0].mxu0 %v1648
      %v1912 = vpop.f32.mrb[0].mxu0
      %v1913 = vadd.f32 %v1632, %v1912
      %v1914 = vpop.f32.mrb[0].mxu0
      %v1915 = vadd.f32 %v1632, %v1914
      %1916 = vdwg.mxu0
      %1917 = vmatprep.subr.mxu0 %v1561
      %1918 = vmatpush1.msra.mxu0 %v1560
      %1919 = vmatprep.subr.mxu0 %v1577
      %1920 = vmatpush1.msra.mxu0 %v1576
      %1921 = vmatprep.subr.mxu0 %v1593
      %1922 = vmatpush1.msra.mxu0 %v1592
      %1923 = vmatprep.subr.mxu0 %v1609
      %1924 = vmatpush1.msra.mxu0 %v1608
      %1925 = vmatprep.subr.mxu0 0.0
      %1926 = vmatpush1.msra.mxu0 0.0
      %1927 = vmatprep.subr.mxu0 0.0
      %1928 = vmatpush1.msra.mxu0 0.0
      %1929 = vmatprep.subr.mxu0 0.0
      %1930 = vmatpush1.msra.mxu0 0.0
      %1931 = vmatprep.subr.mxu0 0.0
      %1932 = vmatpush1.msra.mxu0 0.0
      %1933 = vmatprep.subr.mxu0 0.0
      %1934 = vmatpush1.msra.mxu0 0.0
      %1935 = vmatprep.subr.mxu0 0.0
      %1936 = vmatpush1.msra.mxu0 0.0
      %1937 = vmatprep.subr.mxu0 0.0
      %1938 = vmatpush1.msra.mxu0 0.0
      %1939 = vmatprep.subr.mxu0 0.0
      %1940 = vmatpush1.msra.mxu0 0.0
      %1941 = vmatprep.subr.mxu0 0.0
      %1942 = vmatpush1.msra.mxu0 0.0
      %1943 = vmatprep.subr.mxu0 0.0
      %1944 = vmatpush1.msra.mxu0 0.0
      %1945 = vmatprep.subr.mxu0 0.0
      %1946 = vmatpush1.msra.mxu0 0.0
      %1947 = vmatprep.subr.mxu0 0.0
      %1948 = vmatpush1.msra.mxu0 0.0
      %1949 = vmatprep.subr.mxu0 0.0
      %1950 = vmatpush1.msra.mxu0 0.0
      %1951 = vmatprep.subr.mxu0 0.0
      %1952 = vmatpush1.msra.mxu0 0.0
      %1953 = vmatprep.subr.mxu0 0.0
      %1954 = vmatpush1.msra.mxu0 0.0
      %1955 = vmatprep.subr.mxu0 0.0
      %1956 = vmatpush1.msra.mxu0 0.0
      %1957 = vmatprep.subr.mxu0 0.0
      %1958 = vmatpush1.msra.mxu0 0.0
      %1959 = vmatprep.subr.mxu0 0.0
      %1960 = vmatpush1.msra.mxu0 0.0
      %1961 = vmatprep.subr.mxu0 0.0
      %1962 = vmatpush1.msra.mxu0 0.0
      %1963 = vmatprep.subr.mxu0 0.0
      %1964 = vmatpush1.msra.mxu0 0.0
      %1965 = vmatprep.subr.mxu0 0.0
      %1966 = vmatpush1.msra.mxu0 0.0
      %1967 = vmatprep.subr.mxu0 0.0
      %1968 = vmatpush1.msra.mxu0 0.0
      %1969 = vmatprep.subr.mxu0 0.0
      %1970 = vmatpush1.msra.mxu0 0.0
      %1971 = vmatprep.subr.mxu0 0.0
      %1972 = vmatpush1.msra.mxu0 0.0
      %1973 = vmatprep.subr.mxu0 0.0
      %1974 = vmatpush1.msra.mxu0 0.0
      %1975 = vmatprep.subr.mxu0 0.0
      %1976 = vmatpush1.msra.mxu0 0.0
      %1977 = vmatprep.subr.mxu0 0.0
      %1978 = vmatpush1.msra.mxu0 0.0
      %1979 = vmatprep.subr.mxu0 0.0
      %1980 = vmatpush1.msra.mxu0 0.0
      %1981 = vmatprep.mubr.f32.mxu0 0.0
      %1982 = vmatmul.mubr.f32.gmra.mrb[0].mxu0 %v1642
      %v1983 = vpop.f32.mrb[0].mxu0
      %v1984 = vadd.f32 %v1620, %v1983
      %v1985 = vpop.f32.mrb[0].mxu0
      %v1986 = vadd.f32 %v1620, %v1985
      %1987 = vmatprep.mubr.f32.mxu0 0.0
      %1988 = vmatmul.mubr.f32.gmra.mrb[0].mxu0 %v1644
      %v1989 = vpop.f32.mrb[0].mxu0
      %v1990 = vadd.f32 %v1624, %v1989
      %v1991 = vpop.f32.mrb[0].mxu0
      %v1992 = vadd.f32 %v1624, %v1991
      %1993 = vmatprep.mubr.f32.mxu0 0.0
      %1994 = vmatmul.mubr.f32.gmra.mrb[0].mxu0 %v1646
      %v1995 = vpop.f32.mrb[0].mxu0
      %v1996 = vadd.f32 %v1628, %v1995
      %v1997 = vpop.f32.mrb[0].mxu0
      %v1998 = vadd.f32 %v1628, %v1997
      %1999 = vmatprep.mubr.f32.mxu0 0.0
      %2000 = vmatmul.mubr.f32.gmra.mrb[0].mxu0 %v1648
      %v2001 = vpop.f32.mrb[0].mxu0
      %v2002 = vadd.f32 %v1632, %v2001
      %v2003 = vpop.f32.mrb[0].mxu0
      %v2004 = vadd.f32 %v1632, %v2003
      %2005 = vdwg.mxu0
      %2006 = vmatprep.subr.mxu0 %v1563
      %2007 = vmatpush1.msra.mxu0 %v1562
      %2008 = vmatprep.subr.mxu0 %v1579
      %2009 = vmatpush1.msra.mxu0 %v1578
      %2010 = vmatprep.subr.mxu0 %v1595
      %2011 = vmatpush1.msra.mxu0 %v1594
      %2012 = vmatprep.subr.mxu0 %v1611
      %2013 = vmatpush1.msra.mxu0 %v1610
      %2014 = vmatprep.subr.mxu0 0.0
      %2015 = vmatpush1.msra.mxu0 0.0
      %2016 = vmatprep.subr.mxu0 0.0
      %2017 = vmatpush1.msra.mxu0 0.0
      %2018 = vmatprep.subr.mxu0 0.0
      %2019 = vmatpush1.msra.mxu0 0.0
      %2020 = vmatprep.subr.mxu0 0.0
      %2021 = vmatpush1.msra.mxu0 0.0
      %2022 = vmatprep.subr.mxu0 0.0
      %2023 = vmatpush1.msra.mxu0 0.0
      %2024 = vmatprep.subr.mxu0 0.0
      %2025 = vmatpush1.msra.mxu0 0.0
      %2026 = vmatprep.subr.mxu0 0.0
      %2027 = vmatpush1.msra.mxu0 0.0
      %2028 = vmatprep.subr.mxu0 0.0
      %2029 = vmatpush1.msra.mxu0 0.0
      %2030 = vmatprep.subr.mxu0 0.0
      %2031 = vmatpush1.msra.mxu0 0.0
      %2032 = vmatprep.subr.mxu0 0.0
      %2033 = vmatpush1.msra.mxu0 0.0
      %2034 = vmatprep.subr.mxu0 0.0
      %2035 = vmatpush1.msra.mxu0 0.0
      %2036 = vmatprep.subr.mxu0 0.0
      %2037 = vmatpush1.msra.mxu0 0.0
      %2038 = vmatprep.subr.mxu0 0.0
      %2039 = vmatpush1.msra.mxu0 0.0
      %2040 = vmatprep.subr.mxu0 0.0
      %2041 = vmatpush1.msra.mxu0 0.0
      %2042 = vmatprep.subr.mxu0 0.0
      %2043 = vmatpush1.msra.mxu0 0.0
      %2044 = vmatprep.subr.mxu0 0.0
      %2045 = vmatpush1.msra.mxu0 0.0
      %2046 = vmatprep.subr.mxu0 0.0
      %2047 = vmatpush1.msra.mxu0 0.0
      %2048 = vmatprep.subr.mxu0 0.0
      %2049 = vmatpush1.msra.mxu0 0.0
      %2050 = vmatprep.subr.mxu0 0.0
      %2051 = vmatpush1.msra.mxu0 0.0
      %2052 = vmatprep.subr.mxu0 0.0
      %2053 = vmatpush1.msra.mxu0 0.0
      %2054 = vmatprep.subr.mxu0 0.0
      %2055 = vmatpush1.msra.mxu0 0.0
      %2056 = vmatprep.subr.mxu0 0.0
      %2057 = vmatpush1.msra.mxu0 0.0
      %2058 = vmatprep.subr.mxu0 0.0
      %2059 = vmatpush1.msra.mxu0 0.0
      %2060 = vmatprep.subr.mxu0 0.0
      %2061 = vmatpush1.msra.mxu0 0.0
      %2062 = vmatprep.subr.mxu0 0.0
      %2063 = vmatpush1.msra.mxu0 0.0
      %2064 = vmatprep.subr.mxu0 0.0
      %2065 = vmatpush1.msra.mxu0 0.0
      %2066 = vmatprep.subr.mxu0 0.0
      %2067 = vmatpush1.msra.mxu0 0.0
      %2068 = vmatprep.subr.mxu0 0.0
      %2069 = vmatpush1.msra.mxu0 0.0
      %2070 = vmatprep.mubr.f32.mxu0 0.0
      %2071 = vmatmul.mubr.f32.gmra.mrb[0].mxu0 %v1642
      %v2072 = vpop.f32.mrb[0].mxu0
      %v2073 = vadd.f32 %v1620, %v2072
      %v2074 = vpop.f32.mrb[0].mxu0
      %v2075 = vadd.f32 %v1620, %v2074
      %2076 = vmatprep.mubr.f32.mxu0 0.0
      %2077 = vmatmul.mubr.f32.gmra.mrb[0].mxu0 %v1644
      %v2078 = vpop.f32.mrb[0].mxu0
      %v2079 = vadd.f32 %v1624, %v2078
      %v2080 = vpop.f32.mrb[0].mxu0
      %v2081 = vadd.f32 %v1624, %v2080
      %2082 = vmatprep.mubr.f32.mxu0 0.0
      %2083 = vmatmul.mubr.f32.gmra.mrb[0].mxu0 %v1646
      %v2084 = vpop.f32.mrb[0].mxu0
      %v2085 = vadd.f32 %v1628, %v2084
      %v2086 = vpop.f32.mrb[0].mxu0
      %v2087 = vadd.f32 %v1628, %v2086
      %2088 = vmatprep.mubr.f32.mxu0 0.0
      %2089 = vmatmul.mubr.f32.gmra.mrb[0].mxu0 %v1648
      %v2090 = vpop.f32.mrb[0].mxu0
      %v2091 = vadd.f32 %v1632, %v2090
      %v2092 = vpop.f32.mrb[0].mxu0
      %v2093 = vadd.f32 %v1632, %v2092
      %2094 = vdwg.mxu0
      %2095 = vmatprep.subr.mxu0 %v1565
      %2096 = vmatpush1.msra.mxu0 %v1564
      %2097 = vmatprep.subr.mxu0 %v1581
      %2098 = vmatpush1.msra.mxu0 %v1580
      %2099 = vmatprep.subr.mxu0 %v1597
      %2100 = vmatpush1.msra.mxu0 %v1596
      %2101 = vmatprep.subr.mxu0 %v1613
      %2102 = vmatpush1.msra.mxu0 %v1612
      %2103 = vmatprep.subr.mxu0 0.0
      %2104 = vmatpush1.msra.mxu0 0.0
      %2105 = vmatprep.subr.mxu0 0.0
      %2106 = vmatpush1.msra.mxu0 0.0
      %2107 = vmatprep.subr.mxu0 0.0
      %2108 = vmatpush1.msra.mxu0 0.0
      %2109 = vmatprep.subr.mxu0 0.0
      %2110 = vmatpush1.msra.mxu0 0.0
      %2111 = vmatprep.subr.mxu0 0.0
      %2112 = vmatpush1.msra.mxu0 0.0
      %2113 = vmatprep.subr.mxu0 0.0
      %2114 = vmatpush1.msra.mxu0 0.0
      %2115 = vmatprep.subr.mxu0 0.0
      %2116 = vmatpush1.msra.mxu0 0.0
      %2117 = vmatprep.subr.mxu0 0.0
      %2118 = vmatpush1.msra.mxu0 0.0
      %2119 = vmatprep.subr.mxu0 0.0
      %2120 = vmatpush1.msra.mxu0 0.0
      %2121 = vmatprep.subr.mxu0 0.0
      %2122 = vmatpush1.msra.mxu0 0.0
      %2123 = vmatprep.subr.mxu0 0.0
      %2124 = vmatpush1.msra.mxu0 0.0
      %2125 = vmatprep.subr.mxu0 0.0
      %2126 = vmatpush1.msra.mxu0 0.0
      %2127 = vmatprep.subr.mxu0 0.0
      %2128 = vmatpush1.msra.mxu0 0.0
      %2129 = vmatprep.subr.mxu0 0.0
      %2130 = vmatpush1.msra.mxu0 0.0
      %2131 = vmatprep.subr.mxu0 0.0
      %2132 = vmatpush1.msra.mxu0 0.0
      %2133 = vmatprep.subr.mxu0 0.0
      %2134 = vmatpush1.msra.mxu0 0.0
      %2135 = vmatprep.subr.mxu0 0.0
      %2136 = vmatpush1.msra.mxu0 0.0
      %2137 = vmatprep.subr.mxu0 0.0
      %2138 = vmatpush1.msra.mxu0 0.0
      %2139 = vmatprep.subr.mxu0 0.0
      %2140 = vmatpush1.msra.mxu0 0.0
      %2141 = vmatprep.subr.mxu0 0.0
      %2142 = vmatpush1.msra.mxu0 0.0
      %2143 = vmatprep.subr.mxu0 0.0
      %2144 = vmatpush1.msra.mxu0 0.0
      %2145 = vmatprep.subr.mxu0 0.0
      %2146 = vmatpush1.msra.mxu0 0.0
      %2147 = vmatprep.subr.mxu0 0.0
      %2148 = vmatpush1.msra.mxu0 0.0
      %2149 = vmatprep.subr.mxu0 0.0
      %2150 = vmatpush1.msra.mxu0 0.0
      %2151 = vmatprep.subr.mxu0 0.0
      %2152 = vmatpush1.msra.mxu0 0.0
      %2153 = vmatprep.subr.mxu0 0.0
      %2154 = vmatpush1.msra.mxu0 0.0
      %2155 = vmatprep.subr.mxu0 0.0
      %2156 = vmatpush1.msra.mxu0 0.0
      %2157 = vmatprep.subr.mxu0 0.0
      %2158 = vmatpush1.msra.mxu0 0.0
      %2159 = vmatprep.mubr.f32.mxu0 0.0
      %2160 = vmatmul.mubr.f32.gmra.mrb[0].mxu0 %v1642
      %v2161 = vpop.f32.mrb[0].mxu0
      %v2162 = vadd.f32 %v1620, %v2161
      %v2163 = vpop.f32.mrb[0].mxu0
      %v2164 = vadd.f32 %v1620, %v2163
      %2165 = vmatprep.mubr.f32.mxu0 0.0
      %2166 = vmatmul.mubr.f32.gmra.mrb[0].mxu0 %v1644
      %v2167 = vpop.f32.mrb[0].mxu0
      %v2168 = vadd.f32 %v1624, %v2167
      %v2169 = vpop.f32.mrb[0].mxu0
      %v2170 = vadd.f32 %v1624, %v2169
      %2171 = vmatprep.mubr.f32.mxu0 0.0
      %2172 = vmatmul.mubr.f32.gmra.mrb[0].mxu0 %v1646
      %v2173 = vpop.f32.mrb[0].mxu0
      %v2174 = vadd.f32 %v1628, %v2173
      %v2175 = vpop.f32.mrb[0].mxu0
      %v2176 = vadd.f32 %v1628, %v2175
      %2177 = vmatprep.mubr.f32.mxu0 0.0
      %2178 = vmatmul.mubr.f32.gmra.mrb[0].mxu0 %v1648
      %v2179 = vpop.f32.mrb[0].mxu0
      %v2180 = vadd.f32 %v1632, %v2179
      %v2181 = vpop.f32.mrb[0].mxu0
      %v2182 = vadd.f32 %v1632, %v2181
      %2183 = vdwg.mxu0
      %2184 = vmatprep.subr.mxu0 %v1567
      %2185 = vmatpush1.msra.mxu0 %v1566
      %2186 = vmatprep.subr.mxu0 %v1583
      %2187 = vmatpush1.msra.mxu0 %v1582
      %2188 = vmatprep.subr.mxu0 %v1599
      %2189 = vmatpush1.msra.mxu0 %v1598
      %2190 = vmatprep.subr.mxu0 %v1615
      %2191 = vmatpush1.msra.mxu0 %v1614
      %2192 = vmatprep.subr.mxu0 0.0
      %2193 = vmatpush1.msra.mxu0 0.0
      %2194 = vmatprep.subr.mxu0 0.0
      %2195 = vmatpush1.msra.mxu0 0.0
      %2196 = vmatprep.subr.mxu0 0.0
      %2197 = vmatpush1.msra.mxu0 0.0
      %2198 = vmatprep.subr.mxu0 0.0
      %2199 = vmatpush1.msra.mxu0 0.0
      %2200 = vmatprep.subr.mxu0 0.0
      %2201 = vmatpush1.msra.mxu0 0.0
      %2202 = vmatprep.subr.mxu0 0.0
      %2203 = vmatpush1.msra.mxu0 0.0
      %2204 = vmatprep.subr.mxu0 0.0
      %2205 = vmatpush1.msra.mxu0 0.0
      %2206 = vmatprep.subr.mxu0 0.0
      %2207 = vmatpush1.msra.mxu0 0.0
      %2208 = vmatprep.subr.mxu0 0.0
      %2209 = vmatpush1.msra.mxu0 0.0
      %2210 = vmatprep.subr.mxu0 0.0
      %2211 = vmatpush1.msra.mxu0 0.0
      %2212 = vmatprep.subr.mxu0 0.0
      %2213 = vmatpush1.msra.mxu0 0.0
      %2214 = vmatprep.subr.mxu0 0.0
      %2215 = vmatpush1.msra.mxu0 0.0
      %2216 = vmatprep.subr.mxu0 0.0
      %2217 = vmatpush1.msra.mxu0 0.0
      %2218 = vmatprep.subr.mxu0 0.0
      %2219 = vmatpush1.msra.mxu0 0.0
      %2220 = vmatprep.subr.mxu0 0.0
      %2221 = vmatpush1.msra.mxu0 0.0
      %2222 = vmatprep.subr.mxu0 0.0
      %2223 = vmatpush1.msra.mxu0 0.0
      %2224 = vmatprep.subr.mxu0 0.0
      %2225 = vmatpush1.msra.mxu0 0.0
      %2226 = vmatprep.subr.mxu0 0.0
      %2227 = vmatpush1.msra.mxu0 0.0
      %2228 = vmatprep.subr.mxu0 0.0
      %2229 = vmatpush1.msra.mxu0 0.0
      %2230 = vmatprep.subr.mxu0 0.0
      %2231 = vmatpush1.msra.mxu0 0.0
      %2232 = vmatprep.subr.mxu0 0.0
      %2233 = vmatpush1.msra.mxu0 0.0
      %2234 = vmatprep.subr.mxu0 0.0
      %2235 = vmatpush1.msra.mxu0 0.0
      %2236 = vmatprep.subr.mxu0 0.0
      %2237 = vmatpush1.msra.mxu0 0.0
      %2238 = vmatprep.subr.mxu0 0.0
      %2239 = vmatpush1.msra.mxu0 0.0
      %2240 = vmatprep.subr.mxu0 0.0
      %2241 = vmatpush1.msra.mxu0 0.0
      %2242 = vmatprep.subr.mxu0 0.0
      %2243 = vmatpush1.msra.mxu0 0.0
      %2244 = vmatprep.subr.mxu0 0.0
      %2245 = vmatpush1.msra.mxu0 0.0
      %2246 = vmatprep.subr.mxu0 0.0
      %2247 = vmatpush1.msra.mxu0 0.0
      %2248 = vmatprep.mubr.f32.mxu0 0.0
      %2249 = vmatmul.mubr.f32.gmra.mrb[0].mxu0 %v1642
      %v2250 = vpop.f32.mrb[0].mxu0
      %v2251 = vadd.f32 %v1620, %v2250
      %v2252 = vpop.f32.mrb[0].mxu0
      %v2253 = vadd.f32 %v1620, %v2252
      %2254 = vmatprep.mubr.f32.mxu0 0.0
      %2255 = vmatmul.mubr.f32.gmra.mrb[0].mxu0 %v1644
      %v2256 = vpop.f32.mrb[0].mxu0
      %v2257 = vadd.f32 %v1624, %v2256
      %v2258 = vpop.f32.mrb[0].mxu0
      %v2259 = vadd.f32 %v1624, %v2258
      %2260 = vmatprep.mubr.f32.mxu0 0.0
      %2261 = vmatmul.mubr.f32.gmra.mrb[0].mxu0 %v1646
      %v2262 = vpop.f32.mrb[0].mxu0
      %v2263 = vadd.f32 %v1628, %v2262
      %v2264 = vpop.f32.mrb[0].mxu0
      %v2265 = vadd.f32 %v1628, %v2264
      %2266 = vmatprep.mubr.f32.mxu0 0.0
      %2267 = vmatmul.mubr.f32.gmra.mrb[0].mxu0 %v1648
      %v2268 = vpop.f32.mrb[0].mxu0
      %v2269 = vadd.f32 %v1632, %v2268
      %v2270 = vpop.f32.mrb[0].mxu0
      %v2271 = vadd.f32 %v1632, %v2270
      %2272 = vdwg.mxu0
      %2273 = vmatprep.subr.mxu0 %v1569
      %2274 = vmatpush1.msra.mxu0 %v1568
      %2275 = vmatprep.subr.mxu0 %v1585
      %2276 = vmatpush1.msra.mxu0 %v1584
      %2277 = vmatprep.subr.mxu0 %v1601
      %2278 = vmatpush1.msra.mxu0 %v1600
      %2279 = vmatprep.subr.mxu0 %v1617
      %2280 = vmatpush1.msra.mxu0 %v1616
      %2281 = vmatprep.subr.mxu0 0.0
      %2282 = vmatpush1.msra.mxu0 0.0
      %2283 = vmatprep.subr.mxu0 0.0
      %2284 = vmatpush1.msra.mxu0 0.0
      %2285 = vmatprep.subr.mxu0 0.0
      %2286 = vmatpush1.msra.mxu0 0.0
      %2287 = vmatprep.subr.mxu0 0.0
      %2288 = vmatpush1.msra.mxu0 0.0
      %2289 = vmatprep.subr.mxu0 0.0
      %2290 = vmatpush1.msra.mxu0 0.0
      %2291 = vmatprep.subr.mxu0 0.0
      %2292 = vmatpush1.msra.mxu0 0.0
      %2293 = vmatprep.subr.mxu0 0.0
      %2294 = vmatpush1.msra.mxu0 0.0
      %2295 = vmatprep.subr.mxu0 0.0
      %2296 = vmatpush1.msra.mxu0 0.0
      %2297 = vmatprep.subr.mxu0 0.0
      %2298 = vmatpush1.msra.mxu0 0.0
      %2299 = vmatprep.subr.mxu0 0.0
      %2300 = vmatpush1.msra.mxu0 0.0
      %2301 = vmatprep.subr.mxu0 0.0
      %2302 = vmatpush1.msra.mxu0 0.0
      %2303 = vmatprep.subr.mxu0 0.0
      %2304 = vmatpush1.msra.mxu0 0.0
      %2305 = vmatprep.subr.mxu0 0.0
      %2306 = vmatpush1.msra.mxu0 0.0
      %2307 = vmatprep.subr.mxu0 0.0
      %2308 = vmatpush1.msra.mxu0 0.0
      %2309 = vmatprep.subr.mxu0 0.0
      %2310 = vmatpush1.msra.mxu0 0.0
      %2311 = vmatprep.subr.mxu0 0.0
      %2312 = vmatpush1.msra.mxu0 0.0
      %2313 = vmatprep.subr.mxu0 0.0
      %2314 = vmatpush1.msra.mxu0 0.0
      %2315 = vmatprep.subr.mxu0 0.0
      %2316 = vmatpush1.msra.mxu0 0.0
      %2317 = vmatprep.subr.mxu0 0.0
      %2318 = vmatpush1.msra.mxu0 0.0
      %2319 = vmatprep.subr.mxu0 0.0
      %2320 = vmatpush1.msra.mxu0 0.0
      %2321 = vmatprep.subr.mxu0 0.0
      %2322 = vmatpush1.msra.mxu0 0.0
      %2323 = vmatprep.subr.mxu0 0.0
      %2324 = vmatpush1.msra.mxu0 0.0
      %2325 = vmatprep.subr.mxu0 0.0
      %2326 = vmatpush1.msra.mxu0 0.0
      %2327 = vmatprep.subr.mxu0 0.0
      %2328 = vmatpush1.msra.mxu0 0.0
      %2329 = vmatprep.subr.mxu0 0.0
      %2330 = vmatpush1.msra.mxu0 0.0
      %2331 = vmatprep.subr.mxu0 0.0
      %2332 = vmatpush1.msra.mxu0 0.0
      %2333 = vmatprep.subr.mxu0 0.0
      %2334 = vmatpush1.msra.mxu0 0.0
      %2335 = vmatprep.subr.mxu0 0.0
      %2336 = vmatpush1.msra.mxu0 0.0
      %2337 = vmatprep.mubr.f32.mxu0 0.0
      %2338 = vmatmul.mubr.f32.gmra.mrb[0].mxu0 %v1642
      %v2339 = vpop.f32.mrb[0].mxu0
      %v2340 = vadd.f32 %v1620, %v2339
      %v2341 = vpop.f32.mrb[0].mxu0
      %v2342 = vadd.f32 %v1620, %v2341
      %2343 = vmatprep.mubr.f32.mxu0 0.0
      %2344 = vmatmul.mubr.f32.gmra.mrb[0].mxu0 %v1644
      %v2345 = vpop.f32.mrb[0].mxu0
      %v2346 = vadd.f32 %v1624, %v2345
      %v2347 = vpop.f32.mrb[0].mxu0
      %v2348 = vadd.f32 %v1624, %v2347
      %2349 = vmatprep.mubr.f32.mxu0 0.0
      %2350 = vmatmul.mubr.f32.gmra.mrb[0].mxu0 %v1646
      %v2351 = vpop.f32.mrb[0].mxu0
      %v2352 = vadd.f32 %v1628, %v2351
      %v2353 = vpop.f32.mrb[0].mxu0
      %v2354 = vadd.f32 %v1628, %v2353
      %2355 = vmatprep.mubr.f32.mxu0 0.0
      %2356 = vmatmul.mubr.f32.gmra.mrb[0].mxu0 %v1648
      %v2357 = vpop.f32.mrb[0].mxu0
      %v2358 = vadd.f32 %v1632, %v2357
      %v2359 = vpop.f32.mrb[0].mxu0
      %v2360 = vadd.f32 %v1632, %v2359
      %2361 = vdwg.mxu0
      %v2362 = vtanh.pop %v1717
      %v2363 = vtanh.pop %v1719
      %v2364 = vtanh.pop %v1806
      %v2365 = vtanh.pop %v1808
      %v2366 = vtanh.pop %v1895
      %v2367 = vtanh.pop %v1897
      %v2368 = vtanh.pop %v1984
      %v2369 = vtanh.pop %v1986
      %v2370 = vtanh.pop %v2073
      %v2371 = vtanh.pop %v2075
      %v2372 = vtanh.pop %v2162
      %v2373 = vtanh.pop %v2164
      %v2374 = vtanh.pop %v2251
      %v2375 = vtanh.pop %v2253
      %v2376 = vtanh.pop %v2340
      %v2377 = vtanh.pop %v2342
      %v2378 = vtanh.pop %v1723
      %v2379 = vtanh.pop %v1725
      %v2380 = vtanh.pop %v1812
      %v2381 = vtanh.pop %v1814
      %v2382 = vtanh.pop %v1901
      %v2383 = vtanh.pop %v1903
      %v2384 = vtanh.pop %v1990
      %v2385 = vtanh.pop %v1992
      %v2386 = vtanh.pop %v2079
      %v2387 = vtanh.pop %v2081
      %v2388 = vtanh.pop %v2168
      %v2389 = vtanh.pop %v2170
      %v2390 = vtanh.pop %v2257
      %v2391 = vtanh.pop %v2259
      %v2392 = vtanh.pop %v2346
      %v2393 = vtanh.pop %v2348
      %v2394 = vtanh.pop %v1729
      %v2395 = vtanh.pop %v1731
      %v2396 = vtanh.pop %v1818
      %v2397 = vtanh.pop %v1820
      %v2398 = vtanh.pop %v1907
      %v2399 = vtanh.pop %v1909
      %v2400 = vtanh.pop %v1996
      %v2401 = vtanh.pop %v1998
      %v2402 = vtanh.pop %v2085
      %v2403 = vtanh.pop %v2087
      %v2404 = vtanh.pop %v2174
      %v2405 = vtanh.pop %v2176
      %v2406 = vtanh.pop %v2263
      %v2407 = vtanh.pop %v2265
      %v2408 = vtanh.pop %v2352
      %v2409 = vtanh.pop %v2354
      %v2410 = vtanh.pop %v1735
      %v2411 = vtanh.pop %v1737
      %v2412 = vtanh.pop %v1824
      %v2413 = vtanh.pop %v1826
      %v2414 = vtanh.pop %v1913
      %v2415 = vtanh.pop %v1915
      %v2416 = vtanh.pop %v2002
      %v2417 = vtanh.pop %v2004
      %v2418 = vtanh.pop %v2091
      %v2419 = vtanh.pop %v2093
      %v2420 = vtanh.pop %v2180
      %v2421 = vtanh.pop %v2182
      %v2422 = vtanh.pop %v2269
      %v2423 = vtanh.pop %v2271
      %v2424 = vtanh.pop %v2358
      %v2425 = vtanh.pop %v2360
      %2426 = vset.pattern.permute.xlu0 102
      %2427 = vperm.xlu0 %2426, %v149
      %v2428 = vpop.permute.xlu0 %2427
      %2430 = vset.pattern.permute.xlu0 102
      %2431 = vperm.xlu0 %2430, %v150
      %v2432 = vpop.permute.xlu0 %2431
      %2434 = vset.pattern.permute.xlu0 102
      %2435 = vperm.xlu0 %2434, %v151
      %v2436 = vpop.permute.xlu0 %2435
      %2438 = vset.pattern.permute.xlu0 102
      %2439 = vperm.xlu0 %2438, %v152
      %v2440 = vpop.permute.xlu0 %2439
      %2442 = vrot.lane.b32.xlu0 %v149, 64
      %v2443 = vpop.permute.xlu0 %2442
      %2444 = vrot.lane.b32.xlu0 %v150, 64
      %v2445 = vpop.permute.xlu0 %2444
      %2446 = vrot.lane.b32.xlu0 %v151, 64
      %v2447 = vpop.permute.xlu0 %2446
      %2448 = vrot.lane.b32.xlu0 %v152, 64
      %v2449 = vpop.permute.xlu0 %2448
      %v2450 = vsel %vm833, %v2443, 0
      %v2452 = vsel %vm833, %v2445, 0
      %v2454 = vsel %vm833, %v2447, 0
      %v2456 = vsel %vm833, %v2449, 0
      %2458 = vmatprep.subr.mxu0 %v2363
      %2459 = vmatpush1.msra.mxu0 %v2362
      %2460 = vmatprep.subr.mxu0 %v2379
      %2461 = vmatpush1.msra.mxu0 %v2378
      %2462 = vmatprep.subr.mxu0 %v2395
      %2463 = vmatpush1.msra.mxu0 %v2394
      %2464 = vmatprep.subr.mxu0 %v2411
      %2465 = vmatpush1.msra.mxu0 %v2410
      %2466 = vmatprep.subr.mxu0 0.0
      %2467 = vmatpush1.msra.mxu0 0.0
      %2468 = vmatprep.subr.mxu0 0.0
      %2469 = vmatpush1.msra.mxu0 0.0
      %2470 = vmatprep.subr.mxu0 0.0
      %2471 = vmatpush1.msra.mxu0 0.0
      %2472 = vmatprep.subr.mxu0 0.0
      %2473 = vmatpush1.msra.mxu0 0.0
      %2474 = vmatprep.subr.mxu0 0.0
      %2475 = vmatpush1.msra.mxu0 0.0
      %2476 = vmatprep.subr.mxu0 0.0
      %2477 = vmatpush1.msra.mxu0 0.0
      %2478 = vmatprep.subr.mxu0 0.0
      %2479 = vmatpush1.msra.mxu0 0.0
      %2480 = vmatprep.subr.mxu0 0.0
      %2481 = vmatpush1.msra.mxu0 0.0
      %2482 = vmatprep.subr.mxu0 0.0
      %2483 = vmatpush1.msra.mxu0 0.0
      %2484 = vmatprep.subr.mxu0 0.0
      %2485 = vmatpush1.msra.mxu0 0.0
      %2486 = vmatprep.subr.mxu0 0.0
      %2487 = vmatpush1.msra.mxu0 0.0
      %2488 = vmatprep.subr.mxu0 0.0
      %2489 = vmatpush1.msra.mxu0 0.0
      %2490 = vmatprep.subr.mxu0 0.0
      %2491 = vmatpush1.msra.mxu0 0.0
      %2492 = vmatprep.subr.mxu0 0.0
      %2493 = vmatpush1.msra.mxu0 0.0
      %2494 = vmatprep.subr.mxu0 0.0
      %2495 = vmatpush1.msra.mxu0 0.0
      %2496 = vmatprep.subr.mxu0 0.0
      %2497 = vmatpush1.msra.mxu0 0.0
      %2498 = vmatprep.subr.mxu0 0.0
      %2499 = vmatpush1.msra.mxu0 0.0
      %2500 = vmatprep.subr.mxu0 0.0
      %2501 = vmatpush1.msra.mxu0 0.0
      %2502 = vmatprep.subr.mxu0 0.0
      %2503 = vmatpush1.msra.mxu0 0.0
      %2504 = vmatprep.subr.mxu0 0.0
      %2505 = vmatpush1.msra.mxu0 0.0
      %2506 = vmatprep.subr.mxu0 0.0
      %2507 = vmatpush1.msra.mxu0 0.0
      %2508 = vmatprep.subr.mxu0 0.0
      %2509 = vmatpush1.msra.mxu0 0.0
      %2510 = vmatprep.subr.mxu0 0.0
      %2511 = vmatpush1.msra.mxu0 0.0
      %2512 = vmatprep.subr.mxu0 0.0
      %2513 = vmatpush1.msra.mxu0 0.0
      %2514 = vmatprep.subr.mxu0 0.0
      %2515 = vmatpush1.msra.mxu0 0.0
      %2516 = vmatprep.subr.mxu0 0.0
      %2517 = vmatpush1.msra.mxu0 0.0
      %2518 = vmatprep.subr.mxu0 0.0
      %2519 = vmatpush1.msra.mxu0 0.0
      %2520 = vmatprep.subr.mxu0 0.0
      %2521 = vmatpush1.msra.mxu0 0.0
      %2522 = vmatprep.mubr.f32.mxu0 0.0
      %2523 = vmatmul.mubr.f32.gmra.mrb[0].mxu0 %v2450
      %v2524 = vpop.f32.mrb[0].mxu0
      %v2525 = vadd.f32 %v2428, %v2524
      %v2526 = vpop.f32.mrb[0].mxu0
      %v2527 = vadd.f32 %v2428, %v2526
      %2528 = vmatprep.mubr.f32.mxu0 0.0
      %2529 = vmatmul.mubr.f32.gmra.mrb[0].mxu0 %v2452
      %v2530 = vpop.f32.mrb[0].mxu0
      %v2531 = vadd.f32 %v2432, %v2530
      %v2532 = vpop.f32.mrb[0].mxu0
      %v2533 = vadd.f32 %v2432, %v2532
      %2534 = vmatprep.mubr.f32.mxu0 0.0
      %2535 = vmatmul.mubr.f32.gmra.mrb[0].mxu0 %v2454
      %v2536 = vpop.f32.mrb[0].mxu0
      %v2537 = vadd.f32 %v2436, %v2536
      %v2538 = vpop.f32.mrb[0].mxu0
      %v2539 = vadd.f32 %v2436, %v2538
      %2540 = vmatprep.mubr.f32.mxu0 0.0
      %2541 = vmatmul.mubr.f32.gmra.mrb[0].mxu0 %v2456
      %v2542 = vpop.f32.mrb[0].mxu0
      %v2543 = vadd.f32 %v2440, %v2542
      %v2544 = vpop.f32.mrb[0].mxu0
      %v2545 = vadd.f32 %v2440, %v2544
      %2546 = vdwg.mxu0
      %2547 = vmatprep.subr.mxu0 %v2365
      %2548 = vmatpush1.msra.mxu0 %v2364
      %2549 = vmatprep.subr.mxu0 %v2381
      %2550 = vmatpush1.msra.mxu0 %v2380
      %2551 = vmatprep.subr.mxu0 %v2397
      %2552 = vmatpush1.msra.mxu0 %v2396
      %2553 = vmatprep.subr.mxu0 %v2413
      %2554 = vmatpush1.msra.mxu0 %v2412
      %2555 = vmatprep.subr.mxu0 0.0
      %2556 = vmatpush1.msra.mxu0 0.0
      %2557 = vmatprep.subr.mxu0 0.0
      %2558 = vmatpush1.msra.mxu0 0.0
      %2559 = vmatprep.subr.mxu0 0.0
      %2560 = vmatpush1.msra.mxu0 0.0
      %2561 = vmatprep.subr.mxu0 0.0
      %2562 = vmatpush1.msra.mxu0 0.0
      %2563 = vmatprep.subr.mxu0 0.0
      %2564 = vmatpush1.msra.mxu0 0.0
      %2565 = vmatprep.subr.mxu0 0.0
      %2566 = vmatpush1.msra.mxu0 0.0
      %2567 = vmatprep.subr.mxu0 0.0
      %2568 = vmatpush1.msra.mxu0 0.0
      %2569 = vmatprep.subr.mxu0 0.0
      %2570 = vmatpush1.msra.mxu0 0.0
      %2571 = vmatprep.subr.mxu0 0.0
      %2572 = vmatpush1.msra.mxu0 0.0
      %2573 = vmatprep.subr.mxu0 0.0
      %2574 = vmatpush1.msra.mxu0 0.0
      %2575 = vmatprep.subr.mxu0 0.0
      %2576 = vmatpush1.msra.mxu0 0.0
      %2577 = vmatprep.subr.mxu0 0.0
      %2578 = vmatpush1.msra.mxu0 0.0
      %2579 = vmatprep.subr.mxu0 0.0
      %2580 = vmatpush1.msra.mxu0 0.0
      %2581 = vmatprep.subr.mxu0 0.0
      %2582 = vmatpush1.msra.mxu0 0.0
      %2583 = vmatprep.subr.mxu0 0.0
      %2584 = vmatpush1.msra.mxu0 0.0
      %2585 = vmatprep.subr.mxu0 0.0
      %2586 = vmatpush1.msra.mxu0 0.0
      %2587 = vmatprep.subr.mxu0 0.0
      %2588 = vmatpush1.msra.mxu0 0.0
      %2589 = vmatprep.subr.mxu0 0.0
      %2590 = vmatpush1.msra.mxu0 0.0
      %2591 = vmatprep.subr.mxu0 0.0
      %2592 = vmatpush1.msra.mxu0 0.0
      %2593 = vmatprep.subr.mxu0 0.0
      %2594 = vmatpush1.msra.mxu0 0.0
      %2595 = vmatprep.subr.mxu0 0.0
      %2596 = vmatpush1.msra.mxu0 0.0
      %2597 = vmatprep.subr.mxu0 0.0
      %2598 = vmatpush1.msra.mxu0 0.0
      %2599 = vmatprep.subr.mxu0 0.0
      %2600 = vmatpush1.msra.mxu0 0.0
      %2601 = vmatprep.subr.mxu0 0.0
      %2602 = vmatpush1.msra.mxu0 0.0
      %2603 = vmatprep.subr.mxu0 0.0
      %2604 = vmatpush1.msra.mxu0 0.0
      %2605 = vmatprep.subr.mxu0 0.0
      %2606 = vmatpush1.msra.mxu0 0.0
      %2607 = vmatprep.subr.mxu0 0.0
      %2608 = vmatpush1.msra.mxu0 0.0
      %2609 = vmatprep.subr.mxu0 0.0
      %2610 = vmatpush1.msra.mxu0 0.0
      %2611 = vmatprep.mubr.f32.mxu0 0.0
      %2612 = vmatmul.mubr.f32.gmra.mrb[0].mxu0 %v2450
      %v2613 = vpop.f32.mrb[0].mxu0
      %v2614 = vadd.f32 %v2428, %v2613
      %v2615 = vpop.f32.mrb[0].mxu0
      %v2616 = vadd.f32 %v2428, %v2615
      %2617 = vmatprep.mubr.f32.mxu0 0.0
      %2618 = vmatmul.mubr.f32.gmra.mrb[0].mxu0 %v2452
      %v2619 = vpop.f32.mrb[0].mxu0
      %v2620 = vadd.f32 %v2432, %v2619
      %v2621 = vpop.f32.mrb[0].mxu0
      %v2622 = vadd.f32 %v2432, %v2621
      %2623 = vmatprep.mubr.f32.mxu0 0.0
      %2624 = vmatmul.mubr.f32.gmra.mrb[0].mxu0 %v2454
      %v2625 = vpop.f32.mrb[0].mxu0
      %v2626 = vadd.f32 %v2436, %v2625
      %v2627 = vpop.f32.mrb[0].mxu0
      %v2628 = vadd.f32 %v2436, %v2627
      %2629 = vmatprep.mubr.f32.mxu0 0.0
      %2630 = vmatmul.mubr.f32.gmra.mrb[0].mxu0 %v2456
      %v2631 = vpop.f32.mrb[0].mxu0
      %v2632 = vadd.f32 %v2440, %v2631
      %v2633 = vpop.f32.mrb[0].mxu0
      %v2634 = vadd.f32 %v2440, %v2633
      %2635 = vdwg.mxu0
      %2636 = vmatprep.subr.mxu0 %v2367
      %2637 = vmatpush1.msra.mxu0 %v2366
      %2638 = vmatprep.subr.mxu0 %v2383
      %2639 = vmatpush1.msra.mxu0 %v2382
      %2640 = vmatprep.subr.mxu0 %v2399
      %2641 = vmatpush1.msra.mxu0 %v2398
      %2642 = vmatprep.subr.mxu0 %v2415
      %2643 = vmatpush1.msra.mxu0 %v2414
      %2644 = vmatprep.subr.mxu0 0.0
      %2645 = vmatpush1.msra.mxu0 0.0
      %2646 = vmatprep.subr.mxu0 0.0
      %2647 = vmatpush1.msra.mxu0 0.0
      %2648 = vmatprep.subr.mxu0 0.0
      %2649 = vmatpush1.msra.mxu0 0.0
      %2650 = vmatprep.subr.mxu0 0.0
      %2651 = vmatpush1.msra.mxu0 0.0
      %2652 = vmatprep.subr.mxu0 0.0
      %2653 = vmatpush1.msra.mxu0 0.0
      %2654 = vmatprep.subr.mxu0 0.0
      %2655 = vmatpush1.msra.mxu0 0.0
      %2656 = vmatprep.subr.mxu0 0.0
      %2657 = vmatpush1.msra.mxu0 0.0
      %2658 = vmatprep.subr.mxu0 0.0
      %2659 = vmatpush1.msra.mxu0 0.0
      %2660 = vmatprep.subr.mxu0 0.0
      %2661 = vmatpush1.msra.mxu0 0.0
      %2662 = vmatprep.subr.mxu0 0.0
      %2663 = vmatpush1.msra.mxu0 0.0
      %2664 = vmatprep.subr.mxu0 0.0
      %2665 = vmatpush1.msra.mxu0 0.0
      %2666 = vmatprep.subr.mxu0 0.0
      %2667 = vmatpush1.msra.mxu0 0.0
      %2668 = vmatprep.subr.mxu0 0.0
      %2669 = vmatpush1.msra.mxu0 0.0
      %2670 = vmatprep.subr.mxu0 0.0
      %2671 = vmatpush1.msra.mxu0 0.0
      %2672 = vmatprep.subr.mxu0 0.0
      %2673 = vmatpush1.msra.mxu0 0.0
      %2674 = vmatprep.subr.mxu0 0.0
      %2675 = vmatpush1.msra.mxu0 0.0
      %2676 = vmatprep.subr.mxu0 0.0
      %2677 = vmatpush1.msra.mxu0 0.0
      %2678 = vmatprep.subr.mxu0 0.0
      %2679 = vmatpush1.msra.mxu0 0.0
      %2680 = vmatprep.subr.mxu0 0.0
      %2681 = vmatpush1.msra.mxu0 0.0
      %2682 = vmatprep.subr.mxu0 0.0
      %2683 = vmatpush1.msra.mxu0 0.0
      %2684 = vmatprep.subr.mxu0 0.0
      %2685 = vmatpush1.msra.mxu0 0.0
      %2686 = vmatprep.subr.mxu0 0.0
      %2687 = vmatpush1.msra.mxu0 0.0
      %2688 = vmatprep.subr.mxu0 0.0
      %2689 = vmatpush1.msra.mxu0 0.0
      %2690 = vmatprep.subr.mxu0 0.0
      %2691 = vmatpush1.msra.mxu0 0.0
      %2692 = vmatprep.subr.mxu0 0.0
      %2693 = vmatpush1.msra.mxu0 0.0
      %2694 = vmatprep.subr.mxu0 0.0
      %2695 = vmatpush1.msra.mxu0 0.0
      %2696 = vmatprep.subr.mxu0 0.0
      %2697 = vmatpush1.msra.mxu0 0.0
      %2698 = vmatprep.subr.mxu0 0.0
      %2699 = vmatpush1.msra.mxu0 0.0
      %2700 = vmatprep.mubr.f32.mxu0 0.0
      %2701 = vmatmul.mubr.f32.gmra.mrb[0].mxu0 %v2450
      %v2702 = vpop.f32.mrb[0].mxu0
      %v2703 = vadd.f32 %v2428, %v2702
      %v2704 = vpop.f32.mrb[0].mxu0
      %v2705 = vadd.f32 %v2428, %v2704
      %2706 = vmatprep.mubr.f32.mxu0 0.0
      %2707 = vmatmul.mubr.f32.gmra.mrb[0].mxu0 %v2452
      %v2708 = vpop.f32.mrb[0].mxu0
      %v2709 = vadd.f32 %v2432, %v2708
      %v2710 = vpop.f32.mrb[0].mxu0
      %v2711 = vadd.f32 %v2432, %v2710
      %2712 = vmatprep.mubr.f32.mxu0 0.0
      %2713 = vmatmul.mubr.f32.gmra.mrb[0].mxu0 %v2454
      %v2714 = vpop.f32.mrb[0].mxu0
      %v2715 = vadd.f32 %v2436, %v2714
      %v2716 = vpop.f32.mrb[0].mxu0
      %v2717 = vadd.f32 %v2436, %v2716
      %2718 = vmatprep.mubr.f32.mxu0 0.0
      %2719 = vmatmul.mubr.f32.gmra.mrb[0].mxu0 %v2456
      %v2720 = vpop.f32.mrb[0].mxu0
      %v2721 = vadd.f32 %v2440, %v2720
      %v2722 = vpop.f32.mrb[0].mxu0
      %v2723 = vadd.f32 %v2440, %v2722
      %2724 = vdwg.mxu0
      %2725 = vmatprep.subr.mxu0 %v2369
      %2726 = vmatpush1.msra.mxu0 %v2368
      %2727 = vmatprep.subr.mxu0 %v2385
      %2728 = vmatpush1.msra.mxu0 %v2384
      %2729 = vmatprep.subr.mxu0 %v2401
      %2730 = vmatpush1.msra.mxu0 %v2400
      %2731 = vmatprep.subr.mxu0 %v2417
      %2732 = vmatpush1.msra.mxu0 %v2416
      %2733 = vmatprep.subr.mxu0 0.0
      %2734 = vmatpush1.msra.mxu0 0.0
      %2735 = vmatprep.subr.mxu0 0.0
      %2736 = vmatpush1.msra.mxu0 0.0
      %2737 = vmatprep.subr.mxu0 0.0
      %2738 = vmatpush1.msra.mxu0 0.0
      %2739 = vmatprep.subr.mxu0 0.0
      %2740 = vmatpush1.msra.mxu0 0.0
      %2741 = vmatprep.subr.mxu0 0.0
      %2742 = vmatpush1.msra.mxu0 0.0
      %2743 = vmatprep.subr.mxu0 0.0
      %2744 = vmatpush1.msra.mxu0 0.0
      %2745 = vmatprep.subr.mxu0 0.0
      %2746 = vmatpush1.msra.mxu0 0.0
      %2747 = vmatprep.subr.mxu0 0.0
      %2748 = vmatpush1.msra.mxu0 0.0
      %2749 = vmatprep.subr.mxu0 0.0
      %2750 = vmatpush1.msra.mxu0 0.0
      %2751 = vmatprep.subr.mxu0 0.0
      %2752 = vmatpush1.msra.mxu0 0.0
      %2753 = vmatprep.subr.mxu0 0.0
      %2754 = vmatpush1.msra.mxu0 0.0
      %2755 = vmatprep.subr.mxu0 0.0
      %2756 = vmatpush1.msra.mxu0 0.0
      %2757 = vmatprep.subr.mxu0 0.0
      %2758 = vmatpush1.msra.mxu0 0.0
      %2759 = vmatprep.subr.mxu0 0.0
      %2760 = vmatpush1.msra.mxu0 0.0
      %2761 = vmatprep.subr.mxu0 0.0
      %2762 = vmatpush1.msra.mxu0 0.0
      %2763 = vmatprep.subr.mxu0 0.0
      %2764 = vmatpush1.msra.mxu0 0.0
      %2765 = vmatprep.subr.mxu0 0.0
      %2766 = vmatpush1.msra.mxu0 0.0
      %2767 = vmatprep.subr.mxu0 0.0
      %2768 = vmatpush1.msra.mxu0 0.0
      %2769 = vmatprep.subr.mxu0 0.0
      %2770 = vmatpush1.msra.mxu0 0.0
      %2771 = vmatprep.subr.mxu0 0.0
      %2772 = vmatpush1.msra.mxu0 0.0
      %2773 = vmatprep.subr.mxu0 0.0
      %2774 = vmatpush1.msra.mxu0 0.0
      %2775 = vmatprep.subr.mxu0 0.0
      %2776 = vmatpush1.msra.mxu0 0.0
      %2777 = vmatprep.subr.mxu0 0.0
      %2778 = vmatpush1.msra.mxu0 0.0
      %2779 = vmatprep.subr.mxu0 0.0
      %2780 = vmatpush1.msra.mxu0 0.0
      %2781 = vmatprep.subr.mxu0 0.0
      %2782 = vmatpush1.msra.mxu0 0.0
      %2783 = vmatprep.subr.mxu0 0.0
      %2784 = vmatpush1.msra.mxu0 0.0
      %2785 = vmatprep.subr.mxu0 0.0
      %2786 = vmatpush1.msra.mxu0 0.0
      %2787 = vmatprep.subr.mxu0 0.0
      %2788 = vmatpush1.msra.mxu0 0.0
      %2789 = vmatprep.mubr.f32.mxu0 0.0
      %2790 = vmatmul.mubr.f32.gmra.mrb[0].mxu0 %v2450
      %v2791 = vpop.f32.mrb[0].mxu0
      %v2792 = vadd.f32 %v2428, %v2791
      %v2793 = vpop.f32.mrb[0].mxu0
      %v2794 = vadd.f32 %v2428, %v2793
      %2795 = vmatprep.mubr.f32.mxu0 0.0
      %2796 = vmatmul.mubr.f32.gmra.mrb[0].mxu0 %v2452
      %v2797 = vpop.f32.mrb[0].mxu0
      %v2798 = vadd.f32 %v2432, %v2797
      %v2799 = vpop.f32.mrb[0].mxu0
      %v2800 = vadd.f32 %v2432, %v2799
      %2801 = vmatprep.mubr.f32.mxu0 0.0
      %2802 = vmatmul.mubr.f32.gmra.mrb[0].mxu0 %v2454
      %v2803 = vpop.f32.mrb[0].mxu0
      %v2804 = vadd.f32 %v2436, %v2803
      %v2805 = vpop.f32.mrb[0].mxu0
      %v2806 = vadd.f32 %v2436, %v2805
      %2807 = vmatprep.mubr.f32.mxu0 0.0
      %2808 = vmatmul.mubr.f32.gmra.mrb[0].mxu0 %v2456
      %v2809 = vpop.f32.mrb[0].mxu0
      %v2810 = vadd.f32 %v2440, %v2809
      %v2811 = vpop.f32.mrb[0].mxu0
      %v2812 = vadd.f32 %v2440, %v2811
      %2813 = vdwg.mxu0
      %2814 = vmatprep.subr.mxu0 %v2371
      %2815 = vmatpush1.msra.mxu0 %v2370
      %2816 = vmatprep.subr.mxu0 %v2387
      %2817 = vmatpush1.msra.mxu0 %v2386
      %2818 = vmatprep.subr.mxu0 %v2403
      %2819 = vmatpush1.msra.mxu0 %v2402
      %2820 = vmatprep.subr.mxu0 %v2419
      %2821 = vmatpush1.msra.mxu0 %v2418
      %2822 = vmatprep.subr.mxu0 0.0
      %2823 = vmatpush1.msra.mxu0 0.0
      %2824 = vmatprep.subr.mxu0 0.0
      %2825 = vmatpush1.msra.mxu0 0.0
      %2826 = vmatprep.subr.mxu0 0.0
      %2827 = vmatpush1.msra.mxu0 0.0
      %2828 = vmatprep.subr.mxu0 0.0
      %2829 = vmatpush1.msra.mxu0 0.0
      %2830 = vmatprep.subr.mxu0 0.0
      %2831 = vmatpush1.msra.mxu0 0.0
      %2832 = vmatprep.subr.mxu0 0.0
      %2833 = vmatpush1.msra.mxu0 0.0
      %2834 = vmatprep.subr.mxu0 0.0
      %2835 = vmatpush1.msra.mxu0 0.0
      %2836 = vmatprep.subr.mxu0 0.0
      %2837 = vmatpush1.msra.mxu0 0.0
      %2838 = vmatprep.subr.mxu0 0.0
      %2839 = vmatpush1.msra.mxu0 0.0
      %2840 = vmatprep.subr.mxu0 0.0
      %2841 = vmatpush1.msra.mxu0 0.0
      %2842 = vmatprep.subr.mxu0 0.0
      %2843 = vmatpush1.msra.mxu0 0.0
      %2844 = vmatprep.subr.mxu0 0.0
      %2845 = vmatpush1.msra.mxu0 0.0
      %2846 = vmatprep.subr.mxu0 0.0
      %2847 = vmatpush1.msra.mxu0 0.0
      %2848 = vmatprep.subr.mxu0 0.0
      %2849 = vmatpush1.msra.mxu0 0.0
      %2850 = vmatprep.subr.mxu0 0.0
      %2851 = vmatpush1.msra.mxu0 0.0
      %2852 = vmatprep.subr.mxu0 0.0
      %2853 = vmatpush1.msra.mxu0 0.0
      %2854 = vmatprep.subr.mxu0 0.0
      %2855 = vmatpush1.msra.mxu0 0.0
      %2856 = vmatprep.subr.mxu0 0.0
      %2857 = vmatpush1.msra.mxu0 0.0
      %2858 = vmatprep.subr.mxu0 0.0
      %2859 = vmatpush1.msra.mxu0 0.0
      %2860 = vmatprep.subr.mxu0 0.0
      %2861 = vmatpush1.msra.mxu0 0.0
      %2862 = vmatprep.subr.mxu0 0.0
      %2863 = vmatpush1.msra.mxu0 0.0
      %2864 = vmatprep.subr.mxu0 0.0
      %2865 = vmatpush1.msra.mxu0 0.0
      %2866 = vmatprep.subr.mxu0 0.0
      %2867 = vmatpush1.msra.mxu0 0.0
      %2868 = vmatprep.subr.mxu0 0.0
      %2869 = vmatpush1.msra.mxu0 0.0
      %2870 = vmatprep.subr.mxu0 0.0
      %2871 = vmatpush1.msra.mxu0 0.0
      %2872 = vmatprep.subr.mxu0 0.0
      %2873 = vmatpush1.msra.mxu0 0.0
      %2874 = vmatprep.subr.mxu0 0.0
      %2875 = vmatpush1.msra.mxu0 0.0
      %2876 = vmatprep.subr.mxu0 0.0
      %2877 = vmatpush1.msra.mxu0 0.0
      %2878 = vmatprep.mubr.f32.mxu0 0.0
      %2879 = vmatmul.mubr.f32.gmra.mrb[0].mxu0 %v2450
      %v2880 = vpop.f32.mrb[0].mxu0
      %v2881 = vadd.f32 %v2428, %v2880
      %v2882 = vpop.f32.mrb[0].mxu0
      %v2883 = vadd.f32 %v2428, %v2882
      %2884 = vmatprep.mubr.f32.mxu0 0.0
      %2885 = vmatmul.mubr.f32.gmra.mrb[0].mxu0 %v2452
      %v2886 = vpop.f32.mrb[0].mxu0
      %v2887 = vadd.f32 %v2432, %v2886
      %v2888 = vpop.f32.mrb[0].mxu0
      %v2889 = vadd.f32 %v2432, %v2888
      %2890 = vmatprep.mubr.f32.mxu0 0.0
      %2891 = vmatmul.mubr.f32.gmra.mrb[0].mxu0 %v2454
      %v2892 = vpop.f32.mrb[0].mxu0
      %v2893 = vadd.f32 %v2436, %v2892
      %v2894 = vpop.f32.mrb[0].mxu0
      %v2895 = vadd.f32 %v2436, %v2894
      %2896 = vmatprep.mubr.f32.mxu0 0.0
      %2897 = vmatmul.mubr.f32.gmra.mrb[0].mxu0 %v2456
      %v2898 = vpop.f32.mrb[0].mxu0
      %v2899 = vadd.f32 %v2440, %v2898
      %v2900 = vpop.f32.mrb[0].mxu0
      %v2901 = vadd.f32 %v2440, %v2900
      %2902 = vdwg.mxu0
      %2903 = vmatprep.subr.mxu0 %v2373
      %2904 = vmatpush1.msra.mxu0 %v2372
      %2905 = vmatprep.subr.mxu0 %v2389
      %2906 = vmatpush1.msra.mxu0 %v2388
      %2907 = vmatprep.subr.mxu0 %v2405
      %2908 = vmatpush1.msra.mxu0 %v2404
      %2909 = vmatprep.subr.mxu0 %v2421
      %2910 = vmatpush1.msra.mxu0 %v2420
      %2911 = vmatprep.subr.mxu0 0.0
      %2912 = vmatpush1.msra.mxu0 0.0
      %2913 = vmatprep.subr.mxu0 0.0
      %2914 = vmatpush1.msra.mxu0 0.0
      %2915 = vmatprep.subr.mxu0 0.0
      %2916 = vmatpush1.msra.mxu0 0.0
      %2917 = vmatprep.subr.mxu0 0.0
      %2918 = vmatpush1.msra.mxu0 0.0
      %2919 = vmatprep.subr.mxu0 0.0
      %2920 = vmatpush1.msra.mxu0 0.0
      %2921 = vmatprep.subr.mxu0 0.0
      %2922 = vmatpush1.msra.mxu0 0.0
      %2923 = vmatprep.subr.mxu0 0.0
      %2924 = vmatpush1.msra.mxu0 0.0
      %2925 = vmatprep.subr.mxu0 0.0
      %2926 = vmatpush1.msra.mxu0 0.0
      %2927 = vmatprep.subr.mxu0 0.0
      %2928 = vmatpush1.msra.mxu0 0.0
      %2929 = vmatprep.subr.mxu0 0.0
      %2930 = vmatpush1.msra.mxu0 0.0
      %2931 = vmatprep.subr.mxu0 0.0
      %2932 = vmatpush1.msra.mxu0 0.0
      %2933 = vmatprep.subr.mxu0 0.0
      %2934 = vmatpush1.msra.mxu0 0.0
      %2935 = vmatprep.subr.mxu0 0.0
      %2936 = vmatpush1.msra.mxu0 0.0
      %2937 = vmatprep.subr.mxu0 0.0
      %2938 = vmatpush1.msra.mxu0 0.0
      %2939 = vmatprep.subr.mxu0 0.0
      %2940 = vmatpush1.msra.mxu0 0.0
      %2941 = vmatprep.subr.mxu0 0.0
      %2942 = vmatpush1.msra.mxu0 0.0
      %2943 = vmatprep.subr.mxu0 0.0
      %2944 = vmatpush1.msra.mxu0 0.0
      %2945 = vmatprep.subr.mxu0 0.0
      %2946 = vmatpush1.msra.mxu0 0.0
      %2947 = vmatprep.subr.mxu0 0.0
      %2948 = vmatpush1.msra.mxu0 0.0
      %2949 = vmatprep.subr.mxu0 0.0
      %2950 = vmatpush1.msra.mxu0 0.0
      %2951 = vmatprep.subr.mxu0 0.0
      %2952 = vmatpush1.msra.mxu0 0.0
      %2953 = vmatprep.subr.mxu0 0.0
      %2954 = vmatpush1.msra.mxu0 0.0
      %2955 = vmatprep.subr.mxu0 0.0
      %2956 = vmatpush1.msra.mxu0 0.0
      %2957 = vmatprep.subr.mxu0 0.0
      %2958 = vmatpush1.msra.mxu0 0.0
      %2959 = vmatprep.subr.mxu0 0.0
      %2960 = vmatpush1.msra.mxu0 0.0
      %2961 = vmatprep.subr.mxu0 0.0
      %2962 = vmatpush1.msra.mxu0 0.0
      %2963 = vmatprep.subr.mxu0 0.0
      %2964 = vmatpush1.msra.mxu0 0.0
      %2965 = vmatprep.subr.mxu0 0.0
      %2966 = vmatpush1.msra.mxu0 0.0
      %2967 = vmatprep.mubr.f32.mxu0 0.0
      %2968 = vmatmul.mubr.f32.gmra.mrb[0].mxu0 %v2450
      %v2969 = vpop.f32.mrb[0].mxu0
      %v2970 = vadd.f32 %v2428, %v2969
      %v2971 = vpop.f32.mrb[0].mxu0
      %v2972 = vadd.f32 %v2428, %v2971
      %2973 = vmatprep.mubr.f32.mxu0 0.0
      %2974 = vmatmul.mubr.f32.gmra.mrb[0].mxu0 %v2452
      %v2975 = vpop.f32.mrb[0].mxu0
      %v2976 = vadd.f32 %v2432, %v2975
      %v2977 = vpop.f32.mrb[0].mxu0
      %v2978 = vadd.f32 %v2432, %v2977
      %2979 = vmatprep.mubr.f32.mxu0 0.0
      %2980 = vmatmul.mubr.f32.gmra.mrb[0].mxu0 %v2454
      %v2981 = vpop.f32.mrb[0].mxu0
      %v2982 = vadd.f32 %v2436, %v2981
      %v2983 = vpop.f32.mrb[0].mxu0
      %v2984 = vadd.f32 %v2436, %v2983
      %2985 = vmatprep.mubr.f32.mxu0 0.0
      %2986 = vmatmul.mubr.f32.gmra.mrb[0].mxu0 %v2456
      %v2987 = vpop.f32.mrb[0].mxu0
      %v2988 = vadd.f32 %v2440, %v2987
      %v2989 = vpop.f32.mrb[0].mxu0
      %v2990 = vadd.f32 %v2440, %v2989
      %2991 = vdwg.mxu0
      %2992 = vmatprep.subr.mxu0 %v2375
      %2993 = vmatpush1.msra.mxu0 %v2374
      %2994 = vmatprep.subr.mxu0 %v2391
      %2995 = vmatpush1.msra.mxu0 %v2390
      %2996 = vmatprep.subr.mxu0 %v2407
      %2997 = vmatpush1.msra.mxu0 %v2406
      %2998 = vmatprep.subr.mxu0 %v2423
      %2999 = vmatpush1.msra.mxu0 %v2422
      %3000 = vmatprep.subr.mxu0 0.0
      %3001 = vmatpush1.msra.mxu0 0.0
      %3002 = vmatprep.subr.mxu0 0.0
      %3003 = vmatpush1.msra.mxu0 0.0
      %3004 = vmatprep.subr.mxu0 0.0
      %3005 = vmatpush1.msra.mxu0 0.0
      %3006 = vmatprep.subr.mxu0 0.0
      %3007 = vmatpush1.msra.mxu0 0.0
      %3008 = vmatprep.subr.mxu0 0.0
      %3009 = vmatpush1.msra.mxu0 0.0
      %3010 = vmatprep.subr.mxu0 0.0
      %3011 = vmatpush1.msra.mxu0 0.0
      %3012 = vmatprep.subr.mxu0 0.0
      %3013 = vmatpush1.msra.mxu0 0.0
      %3014 = vmatprep.subr.mxu0 0.0
      %3015 = vmatpush1.msra.mxu0 0.0
      %3016 = vmatprep.subr.mxu0 0.0
      %3017 = vmatpush1.msra.mxu0 0.0
      %3018 = vmatprep.subr.mxu0 0.0
      %3019 = vmatpush1.msra.mxu0 0.0
      %3020 = vmatprep.subr.mxu0 0.0
      %3021 = vmatpush1.msra.mxu0 0.0
      %3022 = vmatprep.subr.mxu0 0.0
      %3023 = vmatpush1.msra.mxu0 0.0
      %3024 = vmatprep.subr.mxu0 0.0
      %3025 = vmatpush1.msra.mxu0 0.0
      %3026 = vmatprep.subr.mxu0 0.0
      %3027 = vmatpush1.msra.mxu0 0.0
      %3028 = vmatprep.subr.mxu0 0.0
      %3029 = vmatpush1.msra.mxu0 0.0
      %3030 = vmatprep.subr.mxu0 0.0
      %3031 = vmatpush1.msra.mxu0 0.0
      %3032 = vmatprep.subr.mxu0 0.0
      %3033 = vmatpush1.msra.mxu0 0.0
      %3034 = vmatprep.subr.mxu0 0.0
      %3035 = vmatpush1.msra.mxu0 0.0
      %3036 = vmatprep.subr.mxu0 0.0
      %3037 = vmatpush1.msra.mxu0 0.0
      %3038 = vmatprep.subr.mxu0 0.0
      %3039 = vmatpush1.msra.mxu0 0.0
      %3040 = vmatprep.subr.mxu0 0.0
      %3041 = vmatpush1.msra.mxu0 0.0
      %3042 = vmatprep.subr.mxu0 0.0
      %3043 = vmatpush1.msra.mxu0 0.0
      %3044 = vmatprep.subr.mxu0 0.0
      %3045 = vmatpush1.msra.mxu0 0.0
      %3046 = vmatprep.subr.mxu0 0.0
      %3047 = vmatpush1.msra.mxu0 0.0
      %3048 = vmatprep.subr.mxu0 0.0
      %3049 = vmatpush1.msra.mxu0 0.0
      %3050 = vmatprep.subr.mxu0 0.0
      %3051 = vmatpush1.msra.mxu0 0.0
      %3052 = vmatprep.subr.mxu0 0.0
      %3053 = vmatpush1.msra.mxu0 0.0
      %3054 = vmatprep.subr.mxu0 0.0
      %3055 = vmatpush1.msra.mxu0 0.0
      %3056 = vmatprep.mubr.f32.mxu0 0.0
      %3057 = vmatmul.mubr.f32.gmra.mrb[0].mxu0 %v2450
      %v3058 = vpop.f32.mrb[0].mxu0
      %v3059 = vadd.f32 %v2428, %v3058
      %v3060 = vpop.f32.mrb[0].mxu0
      %v3061 = vadd.f32 %v2428, %v3060
      %3062 = vmatprep.mubr.f32.mxu0 0.0
      %3063 = vmatmul.mubr.f32.gmra.mrb[0].mxu0 %v2452
      %v3064 = vpop.f32.mrb[0].mxu0
      %v3065 = vadd.f32 %v2432, %v3064
      %v3066 = vpop.f32.mrb[0].mxu0
      %v3067 = vadd.f32 %v2432, %v3066
      %3068 = vmatprep.mubr.f32.mxu0 0.0
      %3069 = vmatmul.mubr.f32.gmra.mrb[0].mxu0 %v2454
      %v3070 = vpop.f32.mrb[0].mxu0
      %v3071 = vadd.f32 %v2436, %v3070
      %v3072 = vpop.f32.mrb[0].mxu0
      %v3073 = vadd.f32 %v2436, %v3072
      %3074 = vmatprep.mubr.f32.mxu0 0.0
      %3075 = vmatmul.mubr.f32.gmra.mrb[0].mxu0 %v2456
      %v3076 = vpop.f32.mrb[0].mxu0
      %v3077 = vadd.f32 %v2440, %v3076
      %v3078 = vpop.f32.mrb[0].mxu0
      %v3079 = vadd.f32 %v2440, %v3078
      %3080 = vdwg.mxu0
      %3081 = vmatprep.subr.mxu0 %v2377
      %3082 = vmatpush1.msra.mxu0 %v2376
      %3083 = vmatprep.subr.mxu0 %v2393
      %3084 = vmatpush1.msra.mxu0 %v2392
      %3085 = vmatprep.subr.mxu0 %v2409
      %3086 = vmatpush1.msra.mxu0 %v2408
      %3087 = vmatprep.subr.mxu0 %v2425
      %3088 = vmatpush1.msra.mxu0 %v2424
      %3089 = vmatprep.subr.mxu0 0.0
      %3090 = vmatpush1.msra.mxu0 0.0
      %3091 = vmatprep.subr.mxu0 0.0
      %3092 = vmatpush1.msra.mxu0 0.0
      %3093 = vmatprep.subr.mxu0 0.0
      %3094 = vmatpush1.msra.mxu0 0.0
      %3095 = vmatprep.subr.mxu0 0.0
      %3096 = vmatpush1.msra.mxu0 0.0
      %3097 = vmatprep.subr.mxu0 0.0
      %3098 = vmatpush1.msra.mxu0 0.0
      %3099 = vmatprep.subr.mxu0 0.0
      %3100 = vmatpush1.msra.mxu0 0.0
      %3101 = vmatprep.subr.mxu0 0.0
      %3102 = vmatpush1.msra.mxu0 0.0
      %3103 = vmatprep.subr.mxu0 0.0
      %3104 = vmatpush1.msra.mxu0 0.0
      %3105 = vmatprep.subr.mxu0 0.0
      %3106 = vmatpush1.msra.mxu0 0.0
      %3107 = vmatprep.subr.mxu0 0.0
      %3108 = vmatpush1.msra.mxu0 0.0
      %3109 = vmatprep.subr.mxu0 0.0
      %3110 = vmatpush1.msra.mxu0 0.0
      %3111 = vmatprep.subr.mxu0 0.0
      %3112 = vmatpush1.msra.mxu0 0.0
      %3113 = vmatprep.subr.mxu0 0.0
      %3114 = vmatpush1.msra.mxu0 0.0
      %3115 = vmatprep.subr.mxu0 0.0
      %3116 = vmatpush1.msra.mxu0 0.0
      %3117 = vmatprep.subr.mxu0 0.0
      %3118 = vmatpush1.msra.mxu0 0.0
      %3119 = vmatprep.subr.mxu0 0.0
      %3120 = vmatpush1.msra.mxu0 0.0
      %3121 = vmatprep.subr.mxu0 0.0
      %3122 = vmatpush1.msra.mxu0 0.0
      %3123 = vmatprep.subr.mxu0 0.0
      %3124 = vmatpush1.msra.mxu0 0.0
      %3125 = vmatprep.subr.mxu0 0.0
      %3126 = vmatpush1.msra.mxu0 0.0
      %3127 = vmatprep.subr.mxu0 0.0
      %3128 = vmatpush1.msra.mxu0 0.0
      %3129 = vmatprep.subr.mxu0 0.0
      %3130 = vmatpush1.msra.mxu0 0.0
      %3131 = vmatprep.subr.mxu0 0.0
      %3132 = vmatpush1.msra.mxu0 0.0
      %3133 = vmatprep.subr.mxu0 0.0
      %3134 = vmatpush1.msra.mxu0 0.0
      %3135 = vmatprep.subr.mxu0 0.0
      %3136 = vmatpush1.msra.mxu0 0.0
      %3137 = vmatprep.subr.mxu0 0.0
      %3138 = vmatpush1.msra.mxu0 0.0
      %3139 = vmatprep.subr.mxu0 0.0
      %3140 = vmatpush1.msra.mxu0 0.0
      %3141 = vmatprep.subr.mxu0 0.0
      %3142 = vmatpush1.msra.mxu0 0.0
      %3143 = vmatprep.subr.mxu0 0.0
      %3144 = vmatpush1.msra.mxu0 0.0
      %3145 = vmatprep.mubr.f32.mxu0 0.0
      %3146 = vmatmul.mubr.f32.gmra.mrb[0].mxu0 %v2450
      %v3147 = vpop.f32.mrb[0].mxu0
      %v3148 = vadd.f32 %v2428, %v3147
      %v3149 = vpop.f32.mrb[0].mxu0
      %v3150 = vadd.f32 %v2428, %v3149
      %3151 = vmatprep.mubr.f32.mxu0 0.0
      %3152 = vmatmul.mubr.f32.gmra.mrb[0].mxu0 %v2452
      %v3153 = vpop.f32.mrb[0].mxu0
      %v3154 = vadd.f32 %v2432, %v3153
      %v3155 = vpop.f32.mrb[0].mxu0
      %v3156 = vadd.f32 %v2432, %v3155
      %3157 = vmatprep.mubr.f32.mxu0 0.0
      %3158 = vmatmul.mubr.f32.gmra.mrb[0].mxu0 %v2454
      %v3159 = vpop.f32.mrb[0].mxu0
      %v3160 = vadd.f32 %v2436, %v3159
      %v3161 = vpop.f32.mrb[0].mxu0
      %v3162 = vadd.f32 %v2436, %v3161
      %3163 = vmatprep.mubr.f32.mxu0 0.0
      %3164 = vmatmul.mubr.f32.gmra.mrb[0].mxu0 %v2456
      %v3165 = vpop.f32.mrb[0].mxu0
      %v3166 = vadd.f32 %v2440, %v3165
      %v3167 = vpop.f32.mrb[0].mxu0
      %v3168 = vadd.f32 %v2440, %v3167
      %3169 = vdwg.mxu0
      %v3170 = vtanh.pop %v2525
      %v3171 = vtanh.pop %v2527
      %v3172 = vtanh.pop %v2614
      %v3173 = vtanh.pop %v2616
      %v3174 = vtanh.pop %v2703
      %v3175 = vtanh.pop %v2705
      %v3176 = vtanh.pop %v2792
      %v3177 = vtanh.pop %v2794
      %v3178 = vtanh.pop %v2881
      %v3179 = vtanh.pop %v2883
      %v3180 = vtanh.pop %v2970
      %v3181 = vtanh.pop %v2972
      %v3182 = vtanh.pop %v3059
      %v3183 = vtanh.pop %v3061
      %v3184 = vtanh.pop %v3148
      %v3185 = vtanh.pop %v3150
      %v3186 = vtanh.pop %v2531
      %v3187 = vtanh.pop %v2533
      %v3188 = vtanh.pop %v2620
      %v3189 = vtanh.pop %v2622
      %v3190 = vtanh.pop %v2709
      %v3191 = vtanh.pop %v2711
      %v3192 = vtanh.pop %v2798
      %v3193 = vtanh.pop %v2800
      %v3194 = vtanh.pop %v2887
      %v3195 = vtanh.pop %v2889
      %v3196 = vtanh.pop %v2976
      %v3197 = vtanh.pop %v2978
      %v3198 = vtanh.pop %v3065
      %v3199 = vtanh.pop %v3067
      %v3200 = vtanh.pop %v3154
      %v3201 = vtanh.pop %v3156
      %v3202 = vtanh.pop %v2537
      %v3203 = vtanh.pop %v2539
      %v3204 = vtanh.pop %v2626
      %v3205 = vtanh.pop %v2628
      %v3206 = vtanh.pop %v2715
      %v3207 = vtanh.pop %v2717
      %v3208 = vtanh.pop %v2804
      %v3209 = vtanh.pop %v2806
      %v3210 = vtanh.pop %v2893
      %v3211 = vtanh.pop %v2895
      %v3212 = vtanh.pop %v2982
      %v3213 = vtanh.pop %v2984
      %v3214 = vtanh.pop %v3071
      %v3215 = vtanh.pop %v3073
      %v3216 = vtanh.pop %v3160
      %v3217 = vtanh.pop %v3162
      %v3218 = vtanh.pop %v2543
      %v3219 = vtanh.pop %v2545
      %v3220 = vtanh.pop %v2632
      %v3221 = vtanh.pop %v2634
      %v3222 = vtanh.pop %v2721
      %v3223 = vtanh.pop %v2723
      %v3224 = vtanh.pop %v2810
      %v3225 = vtanh.pop %v2812
      %v3226 = vtanh.pop %v2899
      %v3227 = vtanh.pop %v2901
      %v3228 = vtanh.pop %v2988
      %v3229 = vtanh.pop %v2990
      %v3230 = vtanh.pop %v3077
      %v3231 = vtanh.pop %v3079
      %v3232 = vtanh.pop %v3166
      %v3233 = vtanh.pop %v3168
      %3234 = vset.pattern.permute.xlu0 98
      %3235 = vperm.xlu0 %3234, %v149
      %v3236 = vpop.permute.xlu0 %3235
      %3238 = vset.pattern.permute.xlu0 98
      %3239 = vperm.xlu0 %3238, %v150
      %v3240 = vpop.permute.xlu0 %3239
      %3242 = vset.pattern.permute.xlu0 98
      %3243 = vperm.xlu0 %3242, %v151
      %v3244 = vpop.permute.xlu0 %3243
      %3246 = vset.pattern.permute.xlu0 98
      %3247 = vperm.xlu0 %3246, %v152
      %v3248 = vpop.permute.xlu0 %3247
      %v3250 = vmul.f32 %v3236, %v3170
      %v3251 = vmul.f32 %v3236, %v3171
      %v3252 = vmul.f32 %v3236, %v3172
      %v3253 = vmul.f32 %v3236, %v3173
      %v3254 = vmul.f32 %v3236, %v3174
      %v3255 = vmul.f32 %v3236, %v3175
      %v3256 = vmul.f32 %v3236, %v3176
      %v3257 = vmul.f32 %v3236, %v3177
      %v3258 = vmul.f32 %v3236, %v3178
      %v3259 = vmul.f32 %v3236, %v3179
      %v3260 = vmul.f32 %v3236, %v3180
      %v3261 = vmul.f32 %v3236, %v3181
      %v3262 = vmul.f32 %v3236, %v3182
      %v3263 = vmul.f32 %v3236, %v3183
      %v3264 = vmul.f32 %v3236, %v3184
      %v3265 = vmul.f32 %v3236, %v3185
      %v3266 = vmul.f32 %v3240, %v3186
      %v3267 = vmul.f32 %v3240, %v3187
      %v3268 = vmul.f32 %v3240, %v3188
      %v3269 = vmul.f32 %v3240, %v3189
      %v3270 = vmul.f32 %v3240, %v3190
      %v3271 = vmul.f32 %v3240, %v3191
      %v3272 = vmul.f32 %v3240, %v3192
      %v3273 = vmul.f32 %v3240, %v3193
      %v3274 = vmul.f32 %v3240, %v3194
      %v3275 = vmul.f32 %v3240, %v3195
      %v3276 = vmul.f32 %v3240, %v3196
      %v3277 = vmul.f32 %v3240, %v3197
      %v3278 = vmul.f32 %v3240, %v3198
      %v3279 = vmul.f32 %v3240, %v3199
      %v3280 = vmul.f32 %v3240, %v3200
      %v3281 = vmul.f32 %v3240, %v3201
      %v3282 = vmul.f32 %v3244, %v3202
      %v3283 = vmul.f32 %v3244, %v3203
      %v3284 = vmul.f32 %v3244, %v3204
      %v3285 = vmul.f32 %v3244, %v3205
      %v3286 = vmul.f32 %v3244, %v3206
      %v3287 = vmul.f32 %v3244, %v3207
      %v3288 = vmul.f32 %v3244, %v3208
      %v3289 = vmul.f32 %v3244, %v3209
      %v3290 = vmul.f32 %v3244, %v3210
      %v3291 = vmul.f32 %v3244, %v3211
      %v3292 = vmul.f32 %v3244, %v3212
      %v3293 = vmul.f32 %v3244, %v3213
      %v3294 = vmul.f32 %v3244, %v3214
      %v3295 = vmul.f32 %v3244, %v3215
      %v3296 = vmul.f32 %v3244, %v3216
      %v3297 = vmul.f32 %v3244, %v3217
      %v3298 = vmul.f32 %v3248, %v3218
      %v3299 = vmul.f32 %v3248, %v3219
      %v3300 = vmul.f32 %v3248, %v3220
      %v3301 = vmul.f32 %v3248, %v3221
      %v3302 = vmul.f32 %v3248, %v3222
      %v3303 = vmul.f32 %v3248, %v3223
      %v3304 = vmul.f32 %v3248, %v3224
      %v3305 = vmul.f32 %v3248, %v3225
      %v3306 = vmul.f32 %v3248, %v3226
      %v3307 = vmul.f32 %v3248, %v3227
      %v3308 = vmul.f32 %v3248, %v3228
      %v3309 = vmul.f32 %v3248, %v3229
      %v3310 = vmul.f32 %v3248, %v3230
      %v3311 = vmul.f32 %v3248, %v3231
      %v3312 = vmul.f32 %v3248, %v3232
      %v3313 = vmul.f32 %v3248, %v3233
      %v3314 = vadd.f32 %v3250, %v3266
      %v3315 = vadd.f32 %v3314, %v3282
      %v3316 = vadd.f32 %v3315, %v3298
      %v3317 = vrot.slane %v3316, 4
      %v3318 = vadd.f32 %v3316, %v3317
      %v3319 = vrot.slane %v3318, 2
      %v3320 = vadd.f32 %v3318, %v3319
      %v3321 = vrot.slane %v3320, 1
      %v3322 = vadd.f32 %v3320, %v3321
      %v3323 = vadd.f32 %v3251, %v3267
      %v3324 = vadd.f32 %v3323, %v3283
      %v3325 = vadd.f32 %v3324, %v3299
      %v3326 = vrot.slane %v3325, 4
      %v3327 = vadd.f32 %v3325, %v3326
      %v3328 = vrot.slane %v3327, 2
      %v3329 = vadd.f32 %v3327, %v3328
      %v3330 = vrot.slane %v3329, 1
      %v3331 = vadd.f32 %v3329, %v3330
      %v3332 = vadd.f32 %v3252, %v3268
      %v3333 = vadd.f32 %v3332, %v3284
      %v3334 = vadd.f32 %v3333, %v3300
      %v3335 = vrot.slane %v3334, 4
      %v3336 = vadd.f32 %v3334, %v3335
      %v3337 = vrot.slane %v3336, 2
      %v3338 = vadd.f32 %v3336, %v3337
      %v3339 = vrot.slane %v3338, 1
      %v3340 = vadd.f32 %v3338, %v3339
      %v3341 = vadd.f32 %v3253, %v3269
      %v3342 = vadd.f32 %v3341, %v3285
      %v3343 = vadd.f32 %v3342, %v3301
      %v3344 = vrot.slane %v3343, 4
      %v3345 = vadd.f32 %v3343, %v3344
      %v3346 = vrot.slane %v3345, 2
      %v3347 = vadd.f32 %v3345, %v3346
      %v3348 = vrot.slane %v3347, 1
      %v3349 = vadd.f32 %v3347, %v3348
      %v3350 = vadd.f32 %v3254, %v3270
      %v3351 = vadd.f32 %v3350, %v3286
      %v3352 = vadd.f32 %v3351, %v3302
      %v3353 = vrot.slane %v3352, 4
      %v3354 = vadd.f32 %v3352, %v3353
      %v3355 = vrot.slane %v3354, 2
      %v3356 = vadd.f32 %v3354, %v3355
      %v3357 = vrot.slane %v3356, 1
      %v3358 = vadd.f32 %v3356, %v3357
      %v3359 = vadd.f32 %v3255, %v3271
      %v3360 = vadd.f32 %v3359, %v3287
      %v3361 = vadd.f32 %v3360, %v3303
      %v3362 = vrot.slane %v3361, 4
      %v3363 = vadd.f32 %v3361, %v3362
      %v3364 = vrot.slane %v3363, 2
      %v3365 = vadd.f32 %v3363, %v3364
      %v3366 = vrot.slane %v3365, 1
      %v3367 = vadd.f32 %v3365, %v3366
      %v3368 = vadd.f32 %v3256, %v3272
      %v3369 = vadd.f32 %v3368, %v3288
      %v3370 = vadd.f32 %v3369, %v3304
      %v3371 = vrot.slane %v3370, 4
      %v3372 = vadd.f32 %v3370, %v3371
      %v3373 = vrot.slane %v3372, 2
      %v3374 = vadd.f32 %v3372, %v3373
      %v3375 = vrot.slane %v3374, 1
      %v3376 = vadd.f32 %v3374, %v3375
      %v3377 = vadd.f32 %v3257, %v3273
      %v3378 = vadd.f32 %v3377, %v3289
      %v3379 = vadd.f32 %v3378, %v3305
      %v3380 = vrot.slane %v3379, 4
      %v3381 = vadd.f32 %v3379, %v3380
      %v3382 = vrot.slane %v3381, 2
      %v3383 = vadd.f32 %v3381, %v3382
      %v3384 = vrot.slane %v3383, 1
      %v3385 = vadd.f32 %v3383, %v3384
      %v3386 = vadd.f32 %v3258, %v3274
      %v3387 = vadd.f32 %v3386, %v3290
      %v3388 = vadd.f32 %v3387, %v3306
      %v3389 = vrot.slane %v3388, 4
      %v3390 = vadd.f32 %v3388, %v3389
      %v3391 = vrot.slane %v3390, 2
      %v3392 = vadd.f32 %v3390, %v3391
      %v3393 = vrot.slane %v3392, 1
      %v3394 = vadd.f32 %v3392, %v3393
      %v3395 = vadd.f32 %v3259, %v3275
      %v3396 = vadd.f32 %v3395, %v3291
      %v3397 = vadd.f32 %v3396, %v3307
      %v3398 = vrot.slane %v3397, 4
      %v3399 = vadd.f32 %v3397, %v3398
      %v3400 = vrot.slane %v3399, 2
      %v3401 = vadd.f32 %v3399, %v3400
      %v3402 = vrot.slane %v3401, 1
      %v3403 = vadd.f32 %v3401, %v3402
      %v3404 = vadd.f32 %v3260, %v3276
      %v3405 = vadd.f32 %v3404, %v3292
      %v3406 = vadd.f32 %v3405, %v3308
      %v3407 = vrot.slane %v3406, 4
      %v3408 = vadd.f32 %v3406, %v3407
      %v3409 = vrot.slane %v3408, 2
      %v3410 = vadd.f32 %v3408, %v3409
      %v3411 = vrot.slane %v3410, 1
      %v3412 = vadd.f32 %v3410, %v3411
      %v3413 = vadd.f32 %v3261, %v3277
      %v3414 = vadd.f32 %v3413, %v3293
      %v3415 = vadd.f32 %v3414, %v3309
      %v3416 = vrot.slane %v3415, 4
      %v3417 = vadd.f32 %v3415, %v3416
      %v3418 = vrot.slane %v3417, 2
      %v3419 = vadd.f32 %v3417, %v3418
      %v3420 = vrot.slane %v3419, 1
      %v3421 = vadd.f32 %v3419, %v3420
      %v3422 = vadd.f32 %v3262, %v3278
      %v3423 = vadd.f32 %v3422, %v3294
      %v3424 = vadd.f32 %v3423, %v3310
      %v3425 = vrot.slane %v3424, 4
      %v3426 = vadd.f32 %v3424, %v3425
      %v3427 = vrot.slane %v3426, 2
      %v3428 = vadd.f32 %v3426, %v3427
      %v3429 = vrot.slane %v3428, 1
      %v3430 = vadd.f32 %v3428, %v3429
      %v3431 = vadd.f32 %v3263, %v3279
      %v3432 = vadd.f32 %v3431, %v3295
      %v3433 = vadd.f32 %v3432, %v3311
      %v3434 = vrot.slane %v3433, 4
      %v3435 = vadd.f32 %v3433, %v3434
      %v3436 = vrot.slane %v3435, 2
      %v3437 = vadd.f32 %v3435, %v3436
      %v3438 = vrot.slane %v3437, 1
      %v3439 = vadd.f32 %v3437, %v3438
      %v3440 = vadd.f32 %v3264, %v3280
      %v3441 = vadd.f32 %v3440, %v3296
      %v3442 = vadd.f32 %v3441, %v3312
      %v3443 = vrot.slane %v3442, 4
      %v3444 = vadd.f32 %v3442, %v3443
      %v3445 = vrot.slane %v3444, 2
      %v3446 = vadd.f32 %v3444, %v3445
      %v3447 = vrot.slane %v3446, 1
      %v3448 = vadd.f32 %v3446, %v3447
      %v3449 = vadd.f32 %v3265, %v3281
      %v3450 = vadd.f32 %v3449, %v3297
      %v3451 = vadd.f32 %v3450, %v3313
      %v3452 = vrot.slane %v3451, 4
      %v3453 = vadd.f32 %v3451, %v3452
      %v3454 = vrot.slane %v3453, 2
      %v3455 = vadd.f32 %v3453, %v3454
      %v3456 = vrot.slane %v3455, 1
      %v3457 = vadd.f32 %v3455, %v3456
      %3458 = vset.pattern.permute.xlu0 103
      %3459 = vperm.xlu0 %3458, %v149
      %v3460 = vpop.permute.xlu0 %3459
      %v3462 = vadd.f32 %v3322, %v3460
      %v3463 = vadd.f32 %v3331, %v3460
      %v3464 = vadd.f32 %v3340, %v3460
      %v3465 = vadd.f32 %v3349, %v3460
      %v3466 = vadd.f32 %v3358, %v3460
      %v3467 = vadd.f32 %v3367, %v3460
      %v3468 = vadd.f32 %v3376, %v3460
      %v3469 = vadd.f32 %v3385, %v3460
      %v3470 = vadd.f32 %v3394, %v3460
      %v3471 = vadd.f32 %v3403, %v3460
      %v3472 = vadd.f32 %v3412, %v3460
      %v3473 = vadd.f32 %v3421, %v3460
      %v3474 = vadd.f32 %v3430, %v3460
      %v3475 = vadd.f32 %v3439, %v3460
      %v3476 = vadd.f32 %v3448, %v3460
      %v3477 = vadd.f32 %v3457, %v3460
      %v3494 = vcombine.low %v3462, %v3463
      %v3495 = vcombine.low %v3464, %v3465
      %v3496 = vcombine.low %v3466, %v3467
      %v3497 = vcombine.low %v3468, %v3469
      %v3499 = vunpack.c.l.s4 1966171168
      %v3500 = vunpack.c.0.s8 %v3499
      %v3501 = vlaneseq
      %v3502 = vshrl.u32 %v3501, 7
      %v3503 = vsub.s32 %v3500, %v3502
      %v3504 = vrot.slane %v3494, %v3503
      %v3506 = vunpack.c.l.s4 1966171168
      %v3507 = vunpack.c.0.s8 %v3506
      %v3508 = vlaneseq
      %v3509 = vshrl.u32 %v3508, 7
      %v3510 = vsub.s32 %v3507, %v3509
      %v3511 = vrot.slane %v3495, %v3510
      %v3513 = vunpack.c.l.s4 1966171168
      %v3514 = vunpack.c.0.s8 %v3513
      %v3515 = vlaneseq
      %v3516 = vshrl.u32 %v3515, 7
      %v3517 = vsub.s32 %v3514, %v3516
      %v3518 = vrot.slane %v3496, %v3517
      %v3520 = vunpack.c.l.s4 1966171168
      %v3521 = vunpack.c.0.s8 %v3520
      %v3522 = vlaneseq
      %v3523 = vshrl.u32 %v3522, 7
      %v3524 = vsub.s32 %v3521, %v3523
      %v3525 = vrot.slane %v3497, %v3524
      %v3526 = vcombine.low %v3504, %v3511
      %v3527 = vcombine.low %v3518, %v3525
      %v3529 = vunpack.c.l.s4 1966171168
      %v3530 = vunpack.c.0.s8 %v3529
      %v3531 = vlaneseq
      %v3532 = vshrl.u32 %v3531, 7
      %v3533 = vsub.s32 %v3530, %v3532
      %v3534 = vrot.slane %v3526, %v3533
      %v3536 = vunpack.c.l.s4 1966171168
      %v3537 = vunpack.c.0.s8 %v3536
      %v3538 = vlaneseq
      %v3539 = vshrl.u32 %v3538, 7
      %v3540 = vsub.s32 %v3537, %v3539
      %v3541 = vrot.slane %v3527, %v3540
      %v3542 = vcombine.low %v3534, %v3541
      %v3543 = vcombine.low %v3470, %v3471
      %v3544 = vcombine.low %v3472, %v3473
      %v3545 = vcombine.low %v3474, %v3475
      %v3546 = vcombine.low %v3476, %v3477
      %v3548 = vunpack.c.l.s4 1966171168
      %v3549 = vunpack.c.0.s8 %v3548
      %v3550 = vlaneseq
      %v3551 = vshrl.u32 %v3550, 7
      %v3552 = vsub.s32 %v3549, %v3551
      %v3553 = vrot.slane %v3543, %v3552
      %v3555 = vunpack.c.l.s4 1966171168
      %v3556 = vunpack.c.0.s8 %v3555
      %v3557 = vlaneseq
      %v3558 = vshrl.u32 %v3557, 7
      %v3559 = vsub.s32 %v3556, %v3558
      %v3560 = vrot.slane %v3544, %v3559
      %v3562 = vunpack.c.l.s4 1966171168
      %v3563 = vunpack.c.0.s8 %v3562
      %v3564 = vlaneseq
      %v3565 = vshrl.u32 %v3564, 7
      %v3566 = vsub.s32 %v3563, %v3565
      %v3567 = vrot.slane %v3545, %v3566
      %v3569 = vunpack.c.l.s4 1966171168
      %v3570 = vunpack.c.0.s8 %v3569
      %v3571 = vlaneseq
      %v3572 = vshrl.u32 %v3571, 7
      %v3573 = vsub.s32 %v3570, %v3572
      %v3574 = vrot.slane %v3546, %v3573
      %v3575 = vcombine.low %v3553, %v3560
      %v3576 = vcombine.low %v3567, %v3574
      %v3578 = vunpack.c.l.s4 1966171168
      %v3579 = vunpack.c.0.s8 %v3578
      %v3580 = vlaneseq
      %v3581 = vshrl.u32 %v3580, 7
      %v3582 = vsub.s32 %v3579, %v3581
      %v3583 = vrot.slane %v3575, %v3582
      %v3585 = vunpack.c.l.s4 1966171168
      %v3586 = vunpack.c.0.s8 %v3585
      %v3587 = vlaneseq
      %v3588 = vshrl.u32 %v3587, 7
      %v3589 = vsub.s32 %v3586, %v3588
      %v3590 = vrot.slane %v3576, %v3589
      %v3591 = vcombine.low %v3583, %v3590
      %3594 = vst [vmem:[%s143] sm:$0xff] %v3542
      %3595 = vst [vmem:[%s143 + $0x8] sm:$0xff] %v3591
      %s3596 = smul.u32 16, %s13
      %p3597 = scmp.lt.s32.totalorder %s3596, 31
      %s3598 = scalar_select %p3597, %s3596, 31
      %s3599 = scalar_lea.vmem %s2, %s3598
      // Predicated region
      $region29: #{mlp_forward.1} parent=27 // pred_check
        %p3600 = pneg %p78
      $region30: #{mlp_forward.1} parent=27 // pred_check_branch
        %3602 = sbr.rel (%p3600) target = $region32
      $region31: #{mlp_forward.1} parent=27 // pred_region
        %s3603 = smul.u32 16, %s13
      $region32: #{mlp_forward.1} parent=27 // pred_fallthru
        _
    $region28: #{mlp_forward.1} parent=5 // pred_fallthru
      _
    %p3604 = scmp.le.s32.totalorder 2, %s8
    // Predicated region
    $region33: #{mlp_forward.1} parent=5 // pred_check
      %p3605 = pneg %p3604
    $region34: #{mlp_forward.1} parent=5 // pred_check_branch
      %3607 = sbr.rel (%p3605) target = $region36
    $region35: #{mlp_forward.1} parent=5 // pred_region
      %s3608 = ssub.s32 %s8, 2
      // Predicated region
      $region37: #{mlp_forward.1} parent=35 // pred_check
        %p3609 = pneg %p84
      $region38: #{mlp_forward.1} parent=35 // pred_check_branch
        %3611 = sbr.rel (%p3609) target = $region40
      $region39: #{mlp_forward.1} parent=35 // pred_region
        %s3612 = smul.u32 16, %s14
        %p3613 = scmp.lt.s32.totalorder %s3612, 31
        %s3614 = scalar_select %p3613, %s3612, 31
        %s3615 = scalar_lea.vmem %s2, %s3614
      $region40: #{mlp_forward.1} parent=35 // pred_fallthru
        _
    $region36: #{mlp_forward.1} parent=5 // pred_fallthru
      _
  $region6: #{mlp_forward.1} parent=0 // loop_footer
    %s12 = sadd.s32 1, %s8
  $region7: #{mlp_forward.1} parent=0 // loop_footer_branch
    %7 = sbr.rel target = $region3
  $region8: #{mlp_forward.1} parent=0 // loop_exit
    _

</llo_original>
